<compile_context>
chip_gen: v6e
topology: v6e:2x2x1
jax: 0.10.0
libtpu: 0.0.40
codegen_flags: <defaults>
</compile_context>

<pallas_src>
import functools
import math

import numpy as np

import jax
import jax.numpy as jnp
from jax.experimental import pallas as pl
from jax.experimental.pallas import tpu as pltpu  # noqa: F401 (TPU backend)

# ----------------------------------------------------------------------------
# Config (synthetic stand-in for output_size=1024, style_dim=512)
# ----------------------------------------------------------------------------
BATCH = 2
IN_CH = 3
IN_RES = 16
OUTPUT_SIZE = 16
N_STYLES = int(math.log(OUTPUT_SIZE, 2)) * 2 - 2   # = 6
N_BLOCKS = int(math.log(OUTPUT_SIZE, 2)) - 2       # = 2 (resolutions 8..OUTPUT_SIZE)
N_CONV = 2 * N_BLOCKS + 1                          # conv1 + 2 per block = 5
STYLE_DIM = 64
DEC_CH = 32
POOL_OUT = 4                                        # face_pool target (same /4 ratio)
SQRT2 = 1.4142135623730951


# ----------------------------------------------------------------------------
# Constant helper matrices (host numpy, cached; shared across batch — no kron)
# ----------------------------------------------------------------------------
@functools.lru_cache(maxsize=None)
def _upsample_matrix(res):
    # nearest-neighbor 2x upsample of a row-major (res,res) map as (hw, 4hw).
    hw = res * res
    u = np.zeros((hw, 4 * hw), np.float32)
    for i in range(res):
        for j in range(res):
            src = i * res + j
            for di in range(2):
                for dj in range(2):
                    u[src, (2 * i + di) * (2 * res) + (2 * j + dj)] = 1.0
    return u


@functools.lru_cache(maxsize=None)
def _pool_matrix(res, out_res):
    # adaptive average pool res->out_res as (hw, out_hw).
    k = res // out_res
    hw = res * res
    p = np.zeros((hw, out_res * out_res), np.float32)
    for i in range(res):
        for j in range(res):
            p[i * res + j, (i // k) * out_res + (j // k)] = 1.0 / (k * k)
    return p


@functools.lru_cache(maxsize=None)
def _rgb_out_matrix(res, final_res, pool_res):
    # composed nearest-up (res -> final_res) and optional adaptive-avg-pool:
    # lets every ToRGB output be accumulated directly at output resolution
    # (skip chain is linear, so this is exact). Values are exact in bf16.
    m = np.eye(res * res, dtype=np.float32)
    r = res
    while r < final_res:
        m = m @ _upsample_matrix(r)
        r *= 2
    if pool_res is not None:
        m = m @ _pool_matrix(final_res, pool_res)
    return m


# ----------------------------------------------------------------------------
# Pallas kernels
# ----------------------------------------------------------------------------
def encoder_kernel(x_ref, w_ref, b_ref, out_ref):
    # Stand-alone encoder (only used on the latent_mask / iterative paths).
    out_ref[...] = jnp.dot(x_ref[...], w_ref[...],
                           preferred_element_type=jnp.float32) + b_ref[...]


def fused_forward_kernel(*refs, batch, n_blocks, n_out_mats, n_conv, ch,
                         fuse_encoder):
    """Encoder + StyleGAN2-like synthesis network + face_pool, fully fused.

    Inputs (in order):
      x (flat image, bf16) [, w_enc, enc_bias if fuse_encoder],
      wmod_big, bmod_cat, wconv_c, bconv_c, wconv_r, bconv_r, const,
      up[0..n_blocks-1], out_mat[0..n_out_mats-1]
    Outputs: img (B, 3, out_hw), codes (B, n_styles*style_dim)
    """
    it = iter(refs)
    x_ref = next(it)
    if fuse_encoder:
        wenc_ref = next(it)
        benc_ref = next(it)
    wmod_ref = next(it)
    bmod_ref = next(it)
    wconv_c_ref = next(it)
    bconv_c_ref = next(it)
    wconv_r_ref = next(it)
    bconv_r_ref = next(it)
    const_ref = next(it)
    up_refs = [next(it) for _ in range(n_blocks)]
    out_mat_refs = [next(it) for _ in range(n_out_mats)]
    img_ref = next(it)
    codes_ref = next(it)

    # ---- encoder fused in (one MXU matmul) + latent_avg broadcast add -------
    # TODO(synk): real ProgressiveBackboneEncoder is a ResNet/IR-SE backbone.
    if fuse_encoder:
        codes = jnp.dot(x_ref[...], wenc_ref[...],
                        preferred_element_type=jnp.float32) + benc_ref[...]
    else:
        codes = x_ref[...].astype(jnp.float32)
    codes_ref[...] = codes                                         # (B, n_styles*S)

    # ---- ALL per-layer modulation scales in ONE matmul ----------------------
    # wmod_big places each layer's EqualLinear in the rows of its style index,
    # so one (B, n_styles*S) x (n_styles*S, L*ch) matmul yields every layer's
    # scale vector; layer l's scales live in columns [l*ch, (l+1)*ch).
    scales = jnp.dot(codes, wmod_ref[...],
                     preferred_element_type=jnp.float32) + bmod_ref[...]

    def conv_layer(feat_b, b, l):
        # modulated + demodulated 1x1 conv (StyledConv) for (batch b, layer l).
        scale_row = scales[b:b + 1, l * ch:(l + 1) * ch]           # (1, Cin)
        ws = wconv_c_ref[l] * scale_row                            # (Cout, Cin)
        # demod from modulated weights: lane reduction (stays off the MXU);
        # fused-leaky-relu sqrt(2) gain folded in (0.5 factor, eps*0.5).
        d = jax.lax.rsqrt(0.5 * jnp.sum(ws * ws, axis=1, keepdims=True) + 0.5e-8)
        w_eff = (ws * d).astype(jnp.bfloat16)
        out = jnp.dot(w_eff, feat_b,
                      preferred_element_type=jnp.float32) + bconv_c_ref[l]
        # TODO(synk): noise injection (randomize_noise) not modeled.
        return jnp.maximum(out, 0.2 * out).astype(jnp.bfloat16)    # leaky-relu

    def rgb_layer(feat_b, b, r):
        # ToRGB: modulated 1x1 conv, no demod, no activation.
        off = (n_conv + r) * ch
        scale_row = scales[b:b + 1, off:off + ch]                  # (1, Cin)
        w_eff = (wconv_r_ref[r] * scale_row).astype(jnp.bfloat16)  # (3, Cin)
        return jnp.dot(w_eff, feat_b,
                       preferred_element_type=jnp.float32) + bconv_r_ref[r]

    const = const_ref[...]                                         # (ch, 16) bf16
    # Trace-time loop over batch with SHARED up/out matrices (no kron(eye(B))).
    for b in range(batch):
        feat = conv_layer(const, b, 0)                             # conv1   (style 0)
        rgb = rgb_layer(feat, b, 0)                                # to_rgb1 (style 1)
        if n_out_mats > 0:
            img = jnp.dot(rgb.astype(jnp.bfloat16), out_mat_refs[0][...],
                          preferred_element_type=jnp.float32)
        else:
            img = rgb
        cl = 1
        for blk in range(n_blocks):
            feat = jnp.dot(feat, up_refs[blk][...],                # nearest 2x up
                           preferred_element_type=jnp.float32).astype(jnp.bfloat16)
            feat = conv_layer(feat, b, cl)
            feat = conv_layer(feat, b, cl + 1)
            rgb = rgb_layer(feat, b, blk + 1)
            if blk + 1 < n_out_mats:
                # skip-upsample chain + face_pool pre-composed into out_mat.
                img = img + jnp.dot(rgb.astype(jnp.bfloat16),
                                    out_mat_refs[blk + 1][...],
                                    preferred_element_type=jnp.float32)
            else:
                img = img + rgb
            cl += 2
        img_ref[b] = img                                           # (3, out_hw) f32


# ----------------------------------------------------------------------------
# Wrappers
# ----------------------------------------------------------------------------
def run_encoder(x, packed):
    B = x.shape[0]
    x_flat = x.reshape(B, -1).astype(jnp.bfloat16)
    F = N_STYLES * STYLE_DIM
    codes = pl.pallas_call(
        encoder_kernel,
        out_shape=jax.ShapeDtypeStruct((B, F), jnp.float32),
    )(x_flat, packed["w_enc"], packed["enc_bias"])
    return codes.reshape(B, N_STYLES, STYLE_DIM)


def _fused_call(first_input, packed, *, resize, fuse_encoder):
    B = first_input.shape[0]
    n_out = N_BLOCKS + 1 if resize else N_BLOCKS
    pool_res = POOL_OUT if resize else None
    ups = [jnp.asarray(_upsample_matrix(4 * (2 ** r)), dtype=jnp.bfloat16)
           for r in range(N_BLOCKS)]
    out_mats = [jnp.asarray(_rgb_out_matrix(4 * (2 ** k), OUTPUT_SIZE, pool_res),
                            dtype=jnp.bfloat16) for k in range(n_out)]
    out_res = POOL_OUT if resize else OUTPUT_SIZE

    inputs = [first_input]
    if fuse_encoder:
        inputs += [packed["w_enc"], packed["enc_bias"]]
    inputs += [packed["wmod_big"], packed["bmod_cat"],
               packed["wconv_c"], packed["bconv_c"],
               packed["wconv_r"], packed["bconv_r"],
               packed["const"], *ups, *out_mats]

    kernel = functools.partial(
        fused_forward_kernel, batch=B, n_blocks=N_BLOCKS, n_out_mats=n_out,
        n_conv=N_CONV, ch=DEC_CH, fuse_encoder=fuse_encoder)

    # TODO(synk): at real scale add an HW-tiled grid here, mark the spatial axis
    # "parallel" (v7x 2-TC megacore) and set pltpu.CompilerParams(vmem_limit_bytes).
    img_flat, codes_flat = pl.pallas_call(
        kernel,
        out_shape=(jax.ShapeDtypeStruct((B, 3, out_res * out_res), jnp.float32),
                   jax.ShapeDtypeStruct((B, N_STYLES * STYLE_DIM), jnp.float32)),
    )(*inputs)

    images = img_flat.reshape(B, 3, out_res, out_res)
    return images, codes_flat.reshape(B, N_STYLES, STYLE_DIM)


def e4e_forward(x, params, latent=None, resize=True, latent_mask=None,
                input_code=False, randomize_noise=True, inject_latent=None,
                return_latents=False, alpha=None, average_code=False):
    packed = params["packed"]

    if input_code or latent_mask is not None:
        # codes must be materialized / edited between encoder and decoder.
        if input_code:
            codes = x
        else:
            codes = run_encoder(x, packed)
            # TODO(synk): the x.shape[1]==6 iterative-refinement branch
            # (codes + latent) is not exercised (3-channel input path only).
        if latent_mask is not None:
            for i in latent_mask:
                if inject_latent is not None:
                    if alpha is not None:
                        codes = codes.at[:, i].set(
                            alpha * inject_latent[:, i] + (1 - alpha) * codes[:, i])
                    else:
                        codes = codes.at[:, i].set(inject_latent[:, i])
                else:
                    codes = codes.at[:, i].set(0.0)
        codes_flat = codes.reshape(codes.shape[0], -1)
        images, result_latent = _fused_call(codes_flat, packed,
                                            resize=resize, fuse_encoder=False)
    else:
        # default path: encoder + (+latent_avg) + decoder + face_pool in ONE kernel.
        x_flat = x.reshape(x.shape[0], -1).astype(jnp.bfloat16)
        images, result_latent = _fused_call(x_flat, packed,
                                            resize=resize, fuse_encoder=True)

    if return_latents:
        return images, result_latent
    return images


# ----------------------------------------------------------------------------
# Deterministic parameter init + packing for the fused kernel
# ----------------------------------------------------------------------------
def pack_params(params):
    """Pack per-layer modconv params into the fused-kernel layouts.

    conv layers (demod + fused leaky-relu): conv1, blk{i}.conv_up, blk{i}.conv.
    rgb layers: to_rgb1, blk{i}.to_rgb. wmod_big is a single style->scale matrix
    with per-layer blocks placed at the rows of that layer's style index, so one
    matmul against codes yields every layer's modulation vector.
    """
    conv_layers = [params["conv1"]]
    rgb_layers = [params["to_rgb1"]]
    for blk in params["blocks"]:
        conv_layers += [blk["conv_up"], blk["conv"]]
        rgb_layers += [blk["to_rgb"]]
    conv_styles = [0] + [s for b in range(N_BLOCKS) for s in (2 * b + 1, 2 * b + 2)]
    rgb_styles = [1] + [2 * b + 3 for b in range(N_BLOCKS)]

    all_layers = conv_layers + rgb_layers
    all_styles = conv_styles + rgb_styles
    total_cin = DEC_CH * len(all_layers)

    wmod_big = np.zeros((N_STYLES * STYLE_DIM, total_cin), np.float32)
    bmods = []
    for l, ((wm, bm, _, _), si) in enumerate(zip(all_layers, all_styles)):
        wmod_big[si * STYLE_DIM:(si + 1) * STYLE_DIM,
                 l * DEC_CH:(l + 1) * DEC_CH] = np.asarray(wm)
        bmods.append(np.asarray(bm))
    bmod_cat = np.concatenate(bmods, axis=1)                     # (1, L*ch)

    wconv_c = jnp.stack([l[2] for l in conv_layers])             # (5, ch, ch) f32
    bconv_c = jnp.stack([l[3] for l in conv_layers]) * SQRT2     # (5, ch, 1) gain folded
    wconv_r = jnp.stack([l[2] for l in rgb_layers])              # (3, 3, ch) f32
    bconv_r = jnp.stack([l[3] for l in rgb_layers])              # (3, 3, 1)

    return dict(
        w_enc=params["w_enc"].astype(jnp.bfloat16),
        # b_enc + latent_avg pre-summed (single bias, one less DMA / add).
        enc_bias=params["b_enc"] + params["latent_avg"].reshape(1, -1),
        wmod_big=jnp.asarray(wmod_big),
        bmod_cat=jnp.asarray(bmod_cat),
        wconv_c=wconv_c, bconv_c=bconv_c,
        wconv_r=wconv_r, bconv_r=bconv_r,
        const=params["const"].reshape(DEC_CH, 16).astype(jnp.bfloat16),
    )


def init_params(key):
    ks = iter(jax.random.split(key, 64))

    def nrm(shape, scale=0.1):
        return (scale * jax.random.normal(next(ks), shape)).astype(jnp.float32)

    def modconv_params(cin, cout):
        return (
            nrm((STYLE_DIM, cin)),                     # w_mod (EqualLinear)
            jnp.ones((1, cin), jnp.float32),           # b_mod (init 1.0, StyleGAN2)
            nrm((cout, cin)),                          # w_conv (1x1)
            jnp.zeros((cout, 1), jnp.float32),         # b_conv
        )

    params = {
        "w_enc": nrm((IN_CH * IN_RES * IN_RES, N_STYLES * STYLE_DIM), 0.02),
        "b_enc": jnp.zeros((1, N_STYLES * STYLE_DIM), jnp.float32),
        "latent_avg": nrm((N_STYLES, STYLE_DIM), 0.05),
        "const": nrm((DEC_CH, 4, 4), 1.0),
        "conv1": modconv_params(DEC_CH, DEC_CH),
        "to_rgb1": modconv_params(DEC_CH, 3),
        "blocks": [
            {
                "conv_up": modconv_params(DEC_CH, DEC_CH),
                "conv": modconv_params(DEC_CH, DEC_CH),
                "to_rgb": modconv_params(DEC_CH, 3),
            }
            for _ in range(N_BLOCKS)
        ],
    }
    params["packed"] = pack_params(params)
    return params


# ----------------------------------------------------------------------------
# Main
# ----------------------------------------------------------------------------
if __name__ == "__main__":
    key = jax.random.PRNGKey(0)
    k_x, k_p = jax.random.split(key)
    x = jax.random.normal(k_x, (BATCH, IN_CH, IN_RES, IN_RES), dtype=jnp.float32)
    params = init_params(k_p)

    # One jit over the whole forward: constants baked, wrapper glue fused away.
    fwd = jax.jit(functools.partial(e4e_forward, resize=True, return_latents=False))
    images = jax.block_until_ready(fwd(x, params))

    assert images.shape == (BATCH, 3, POOL_OUT, POOL_OUT), images.shape
    assert jnp.all(jnp.isfinite(images))
    print("KERNEL_OK")
</pallas_src>

<mosaic_0001>
module attributes {stable_mosaic.version = 11 : i64} {
  func.func @fused_forward_kernel(%arg0: memref<2x768xbf16, #tpu.memory_space<vmem>>, %arg1: memref<768x384xbf16, #tpu.memory_space<vmem>>, %arg2: memref<1x384xf32, #tpu.memory_space<vmem>>, %arg3: memref<384x256xf32, #tpu.memory_space<vmem>>, %arg4: memref<1x256xf32, #tpu.memory_space<vmem>>, %arg5: memref<5x32x32xf32, #tpu.memory_space<vmem>>, %arg6: memref<5x32x1xf32, #tpu.memory_space<vmem>>, %arg7: memref<3x3x32xf32, #tpu.memory_space<vmem>>, %arg8: memref<3x3x1xf32, #tpu.memory_space<vmem>>, %arg9: memref<32x16xbf16, #tpu.memory_space<vmem>>, %arg10: memref<16x64xbf16, #tpu.memory_space<vmem>>, %arg11: memref<64x256xbf16, #tpu.memory_space<vmem>>, %arg12: memref<16x16xbf16, #tpu.memory_space<vmem>>, %arg13: memref<64x16xbf16, #tpu.memory_space<vmem>>, %arg14: memref<256x16xbf16, #tpu.memory_space<vmem>>, %arg15: memref<2x3x16xf32, #tpu.memory_space<vmem>>, %arg16: memref<2x384xf32, #tpu.memory_space<vmem>>) attributes {dimension_semantics = [], scalar_prefetch = 0 : i64, scratch_operands = 0 : i64, tpu.core_type = #tpu.core_type<tc>} {
    %c0 = arith.constant 0 : index
    %c0_0 = arith.constant 0 : index
    %0 = vector.load %arg0[%c0, %c0_0] : memref<2x768xbf16, #tpu.memory_space<vmem>>, vector<2x768xbf16>
    %c0_1 = arith.constant 0 : index
    %c0_2 = arith.constant 0 : index
    %1 = vector.load %arg1[%c0_1, %c0_2] : memref<768x384xbf16, #tpu.memory_space<vmem>>, vector<768x384xbf16>
    %cst = arith.constant dense<0.000000e+00> : vector<2x384xf32>
    %2 = tpu.matmul %0, %1, %cst {dimension_numbers = #tpu.dot_dimension_numbers<[1], [0], [0], [1], [0, 0, 1, 1], [], []>} : vector<2x768xbf16>, vector<768x384xbf16>, vector<2x384xf32> -> vector<2x384xf32>
    %c0_3 = arith.constant 0 : index
    %c0_4 = arith.constant 0 : index
    %3 = vector.load %arg2[%c0_3, %c0_4] : memref<1x384xf32, #tpu.memory_space<vmem>>, vector<1x384xf32>
    %4 = vector.broadcast %3 : vector<1x384xf32> to vector<2x384xf32>
    %5 = arith.addf %2, %4 : vector<2x384xf32>
    %c0_5 = arith.constant 0 : index
    %c0_6 = arith.constant 0 : index
    %6 = vector.load %arg16[%c0_5, %c0_6] : memref<2x384xf32, #tpu.memory_space<vmem>>, vector<2x384xf32>
    tpu.vector_store %arg16[%c0_5, %c0_6], %5 {strides = array<i32>} : memref<2x384xf32, #tpu.memory_space<vmem>>, vector<2x384xf32>,
    %c0_7 = arith.constant 0 : index
    %c0_8 = arith.constant 0 : index
    %7 = vector.load %arg3[%c0_7, %c0_8] : memref<384x256xf32, #tpu.memory_space<vmem>>, vector<384x256xf32>
    %cst_9 = arith.constant dense<0.000000e+00> : vector<2x256xf32>
    %8 = tpu.matmul %5, %7, %cst_9 {dimension_numbers = #tpu.dot_dimension_numbers<[1], [0], [0], [1], [0, 0, 1, 1], [], []>} : vector<2x384xf32>, vector<384x256xf32>, vector<2x256xf32> -> vector<2x256xf32>
    %c0_10 = arith.constant 0 : index
    %c0_11 = arith.constant 0 : index
    %9 = vector.load %arg4[%c0_10, %c0_11] : memref<1x256xf32, #tpu.memory_space<vmem>>, vector<1x256xf32>
    %10 = vector.broadcast %9 : vector<1x256xf32> to vector<2x256xf32>
    %11 = arith.addf %8, %10 : vector<2x256xf32>
    %c0_12 = arith.constant 0 : index
    %c0_13 = arith.constant 0 : index
    %12 = vector.load %arg9[%c0_12, %c0_13] : memref<32x16xbf16, #tpu.memory_space<vmem>>, vector<32x16xbf16>
    %13 = vector.extract_strided_slice %11 {offsets = [0, 0], sizes = [1, 32], strides = [1, 1]} : vector<2x256xf32> to vector<1x32xf32>
    %c0_14 = arith.constant 0 : index
    %c0_15 = arith.constant 0 : index
    %c0_16 = arith.constant 0 : index
    %14 = vector.load %arg5[%c0_14, %c0_15, %c0_16] : memref<5x32x32xf32, #tpu.memory_space<vmem>>, vector<1x32x32xf32>
    %15 = vector.shape_cast %14 : vector<1x32x32xf32> to vector<32x32xf32>
    %16 = vector.broadcast %13 : vector<1x32xf32> to vector<32x32xf32>
    %17 = arith.mulf %15, %16 : vector<32x32xf32>
    %18 = arith.mulf %17, %17 : vector<32x32xf32>
    %cst_17 = arith.constant dense<0.000000e+00> : vector<32xf32>
    %19 = vector.multi_reduction <add>, %18, %cst_17 [1] : vector<32x32xf32> to vector<32xf32>
    %20 = vector.shape_cast %19 : vector<32xf32> to vector<32x1xf32>
    %cst_18 = arith.constant 5.000000e-01 : f32
    %21 = vector.broadcast %cst_18 : f32 to vector<32x1xf32>
    %22 = arith.mulf %21, %20 : vector<32x1xf32>
    %cst_19 = arith.constant 5.000000e-09 : f32
    %23 = vector.broadcast %cst_19 : f32 to vector<32x1xf32>
    %24 = arith.addf %22, %23 : vector<32x1xf32>
    %25 = math.rsqrt %24 : vector<32x1xf32>
    %26 = vector.broadcast %25 : vector<32x1xf32> to vector<32x32xf32>
    %27 = arith.mulf %17, %26 : vector<32x32xf32>
    %28 = arith.truncf %27 : vector<32x32xf32> to vector<32x32xbf16>
    %cst_20 = arith.constant dense<0.000000e+00> : vector<32x16xf32>
    %29 = tpu.matmul %28, %12, %cst_20 {dimension_numbers = #tpu.dot_dimension_numbers<[1], [0], [0], [1], [0, 0, 1, 1], [], []>} : vector<32x32xbf16>, vector<32x16xbf16>, vector<32x16xf32> -> vector<32x16xf32>
    %c0_21 = arith.constant 0 : index
    %c0_22 = arith.constant 0 : index
    %c0_23 = arith.constant 0 : index
    %30 = vector.load %arg6[%c0_21, %c0_22, %c0_23] : memref<5x32x1xf32, #tpu.memory_space<vmem>>, vector<1x32x1xf32>
    %31 = vector.shape_cast %30 : vector<1x32x1xf32> to vector<32x1xf32>
    %32 = vector.broadcast %31 : vector<32x1xf32> to vector<32x16xf32>
    %33 = arith.addf %29, %32 : vector<32x16xf32>
    %cst_24 = arith.constant 2.000000e-01 : f32
    %34 = vector.broadcast %cst_24 : f32 to vector<32x16xf32>
    %35 = arith.mulf %34, %33 : vector<32x16xf32>
    %36 = arith.maximumf %33, %35 : vector<32x16xf32>
    %37 = arith.truncf %36 : vector<32x16xf32> to vector<32x16xbf16>
    %38 = vector.extract_strided_slice %11 {offsets = [0, 160], sizes = [1, 32], strides = [1, 1]} : vector<2x256xf32> to vector<1x32xf32>
    %c0_25 = arith.constant 0 : index
    %c0_26 = arith.constant 0 : index
    %c0_27 = arith.constant 0 : index
    %39 = vector.load %arg7[%c0_25, %c0_26, %c0_27] : memref<3x3x32xf32, #tpu.memory_space<vmem>>, vector<1x3x32xf32>
    %40 = vector.shape_cast %39 : vector<1x3x32xf32> to vector<3x32xf32>
    %41 = vector.broadcast %38 : vector<1x32xf32> to vector<3x32xf32>
    %42 = arith.mulf %40, %41 : vector<3x32xf32>
    %43 = arith.truncf %42 : vector<3x32xf32> to vector<3x32xbf16>
    %cst_28 = arith.constant dense<0.000000e+00> : vector<3x16xf32>
    %44 = tpu.matmul %43, %37, %cst_28 {dimension_numbers = #tpu.dot_dimension_numbers<[1], [0], [0], [1], [0, 0, 1, 1], [], []>} : vector<3x32xbf16>, vector<32x16xbf16>, vector<3x16xf32> -> vector<3x16xf32>
    %c0_29 = arith.constant 0 : index
    %c0_30 = arith.constant 0 : index
    %c0_31 = arith.constant 0 : index
    %45 = vector.load %arg8[%c0_29, %c0_30, %c0_31] : memref<3x3x1xf32, #tpu.memory_space<vmem>>, vector<1x3x1xf32>
    %46 = vector.shape_cast %45 : vector<1x3x1xf32> to vector<3x1xf32>
    %47 = vector.broadcast %46 : vector<3x1xf32> to vector<3x16xf32>
    %48 = arith.addf %44, %47 : vector<3x16xf32>
    %49 = arith.truncf %48 : vector<3x16xf32> to vector<3x16xbf16>
    %c0_32 = arith.constant 0 : index
    %c0_33 = arith.constant 0 : index
    %50 = vector.load %arg12[%c0_32, %c0_33] : memref<16x16xbf16, #tpu.memory_space<vmem>>, vector<16x16xbf16>
    %cst_34 = arith.constant dense<0.000000e+00> : vector<3x16xf32>
    %51 = tpu.matmul %49, %50, %cst_34 {dimension_numbers = #tpu.dot_dimension_numbers<[1], [0], [0], [1], [0, 0, 1, 1], [], []>} : vector<3x16xbf16>, vector<16x16xbf16>, vector<3x16xf32> -> vector<3x16xf32>
    %c0_35 = arith.constant 0 : index
    %c0_36 = arith.constant 0 : index
    %52 = vector.load %arg10[%c0_35, %c0_36] : memref<16x64xbf16, #tpu.memory_space<vmem>>, vector<16x64xbf16>
    %cst_37 = arith.constant dense<0.000000e+00> : vector<32x64xf32>
    %53 = tpu.matmul %37, %52, %cst_37 {dimension_numbers = #tpu.dot_dimension_numbers<[1], [0], [0], [1], [0, 0, 1, 1], [], []>} : vector<32x16xbf16>, vector<16x64xbf16>, vector<32x64xf32> -> vector<32x64xf32>
    %54 = arith.truncf %53 : vector<32x64xf32> to vector<32x64xbf16>
    %55 = vector.extract_strided_slice %11 {offsets = [0, 32], sizes = [1, 32], strides = [1, 1]} : vector<2x256xf32> to vector<1x32xf32>
    %c1 = arith.constant 1 : index
    %c0_38 = arith.constant 0 : index
    %c0_39 = arith.constant 0 : index
    %56 = vector.load %arg5[%c1, %c0_38, %c0_39] : memref<5x32x32xf32, #tpu.memory_space<vmem>>, vector<1x32x32xf32>
    %57 = vector.shape_cast %56 : vector<1x32x32xf32> to vector<32x32xf32>
    %58 = vector.broadcast %55 : vector<1x32xf32> to vector<32x32xf32>
    %59 = arith.mulf %57, %58 : vector<32x32xf32>
    %60 = arith.mulf %59, %59 : vector<32x32xf32>
    %cst_40 = arith.constant dense<0.000000e+00> : vector<32xf32>
    %61 = vector.multi_reduction <add>, %60, %cst_40 [1] : vector<32x32xf32> to vector<32xf32>
    %62 = vector.shape_cast %61 : vector<32xf32> to vector<32x1xf32>
    %cst_41 = arith.constant 5.000000e-01 : f32
    %63 = vector.broadcast %cst_41 : f32 to vector<32x1xf32>
    %64 = arith.mulf %63, %62 : vector<32x1xf32>
    %cst_42 = arith.constant 5.000000e-09 : f32
    %65 = vector.broadcast %cst_42 : f32 to vector<32x1xf32>
    %66 = arith.addf %64, %65 : vector<32x1xf32>
    %67 = math.rsqrt %66 : vector<32x1xf32>
    %68 = vector.broadcast %67 : vector<32x1xf32> to vector<32x32xf32>
    %69 = arith.mulf %59, %68 : vector<32x32xf32>
    %70 = arith.truncf %69 : vector<32x32xf32> to vector<32x32xbf16>
    %cst_43 = arith.constant dense<0.000000e+00> : vector<32x64xf32>
    %71 = tpu.matmul %70, %54, %cst_43 {dimension_numbers = #tpu.dot_dimension_numbers<[1], [0], [0], [1], [0, 0, 1, 1], [], []>} : vector<32x32xbf16>, vector<32x64xbf16>, vector<32x64xf32> -> vector<32x64xf32>
    %c1_44 = arith.constant 1 : index
    %c0_45 = arith.constant 0 : index
    %c0_46 = arith.constant 0 : index
    %72 = vector.load %arg6[%c1_44, %c0_45, %c0_46] : memref<5x32x1xf32, #tpu.memory_space<vmem>>, vector<1x32x1xf32>
    %73 = vector.shape_cast %72 : vector<1x32x1xf32> to vector<32x1xf32>
    %74 = vector.broadcast %73 : vector<32x1xf32> to vector<32x64xf32>
    %75 = arith.addf %71, %74 : vector<32x64xf32>
    %cst_47 = arith.constant 2.000000e-01 : f32
    %76 = vector.broadcast %cst_47 : f32 to vector<32x64xf32>
    %77 = arith.mulf %76, %75 : vector<32x64xf32>
    %78 = arith.maximumf %75, %77 : vector<32x64xf32>
    %79 = arith.truncf %78 : vector<32x64xf32> to vector<32x64xbf16>
    %80 = vector.extract_strided_slice %11 {offsets = [0, 64], sizes = [1, 32], strides = [1, 1]} : vector<2x256xf32> to vector<1x32xf32>
    %c2 = arith.constant 2 : index
    %c0_48 = arith.constant 0 : index
    %c0_49 = arith.constant 0 : index
    %81 = vector.load %arg5[%c2, %c0_48, %c0_49] : memref<5x32x32xf32, #tpu.memory_space<vmem>>, vector<1x32x32xf32>
    %82 = vector.shape_cast %81 : vector<1x32x32xf32> to vector<32x32xf32>
    %83 = vector.broadcast %80 : vector<1x32xf32> to vector<32x32xf32>
    %84 = arith.mulf %82, %83 : vector<32x32xf32>
    %85 = arith.mulf %84, %84 : vector<32x32xf32>
    %cst_50 = arith.constant dense<0.000000e+00> : vector<32xf32>
    %86 = vector.multi_reduction <add>, %85, %cst_50 [1] : vector<32x32xf32> to vector<32xf32>
    %87 = vector.shape_cast %86 : vector<32xf32> to vector<32x1xf32>
    %cst_51 = arith.constant 5.000000e-01 : f32
    %88 = vector.broadcast %cst_51 : f32 to vector<32x1xf32>
    %89 = arith.mulf %88, %87 : vector<32x1xf32>
    %cst_52 = arith.constant 5.000000e-09 : f32
    %90 = vector.broadcast %cst_52 : f32 to vector<32x1xf32>
    %91 = arith.addf %89, %90 : vector<32x1xf32>
    %92 = math.rsqrt %91 : vector<32x1xf32>
    %93 = vector.broadcast %92 : vector<32x1xf32> to vector<32x32xf32>
    %94 = arith.mulf %84, %93 : vector<32x32xf32>
    %95 = arith.truncf %94 : vector<32x32xf32> to vector<32x32xbf16>
    %cst_53 = arith.constant dense<0.000000e+00> : vector<32x64xf32>
    %96 = tpu.matmul %95, %79, %cst_53 {dimension_numbers = #tpu.dot_dimension_numbers<[1], [0], [0], [1], [0, 0, 1, 1], [], []>} : vector<32x32xbf16>, vector<32x64xbf16>, vector<32x64xf32> -> vector<32x64xf32>
    %c2_54 = arith.constant 2 : index
    %c0_55 = arith.constant 0 : index
    %c0_56 = arith.constant 0 : index
    %97 = vector.load %arg6[%c2_54, %c0_55, %c0_56] : memref<5x32x1xf32, #tpu.memory_space<vmem>>, vector<1x32x1xf32>
    %98 = vector.shape_cast %97 : vector<1x32x1xf32> to vector<32x1xf32>
    %99 = vector.broadcast %98 : vector<32x1xf32> to vector<32x64xf32>
    %100 = arith.addf %96, %99 : vector<32x64xf32>
    %cst_57 = arith.constant 2.000000e-01 : f32
    %101 = vector.broadcast %cst_57 : f32 to vector<32x64xf32>
    %102 = arith.mulf %101, %100 : vector<32x64xf32>
    %103 = arith.maximumf %100, %102 : vector<32x64xf32>
    %104 = arith.truncf %103 : vector<32x64xf32> to vector<32x64xbf16>
    %105 = vector.extract_strided_slice %11 {offsets = [0, 192], sizes = [1, 32], strides = [1, 1]} : vector<2x256xf32> to vector<1x32xf32>
    %c1_58 = arith.constant 1 : index
    %c0_59 = arith.constant 0 : index
    %c0_60 = arith.constant 0 : index
    %106 = vector.load %arg7[%c1_58, %c0_59, %c0_60] : memref<3x3x32xf32, #tpu.memory_space<vmem>>, vector<1x3x32xf32>
    %107 = vector.shape_cast %106 : vector<1x3x32xf32> to vector<3x32xf32>
    %108 = vector.broadcast %105 : vector<1x32xf32> to vector<3x32xf32>
    %109 = arith.mulf %107, %108 : vector<3x32xf32>
    %110 = arith.truncf %109 : vector<3x32xf32> to vector<3x32xbf16>
    %cst_61 = arith.constant dense<0.000000e+00> : vector<3x64xf32>
    %111 = tpu.matmul %110, %104, %cst_61 {dimension_numbers = #tpu.dot_dimension_numbers<[1], [0], [0], [1], [0, 0, 1, 1], [], []>} : vector<3x32xbf16>, vector<32x64xbf16>, vector<3x64xf32> -> vector<3x64xf32>
    %c1_62 = arith.constant 1 : index
    %c0_63 = arith.constant 0 : index
    %c0_64 = arith.constant 0 : index
    %112 = vector.load %arg8[%c1_62, %c0_63, %c0_64] : memref<3x3x1xf32, #tpu.memory_space<vmem>>, vector<1x3x1xf32>
    %113 = vector.shape_cast %112 : vector<1x3x1xf32> to vector<3x1xf32>
    %114 = vector.broadcast %113 : vector<3x1xf32> to vector<3x64xf32>
    %115 = arith.addf %111, %114 : vector<3x64xf32>
    %116 = arith.truncf %115 : vector<3x64xf32> to vector<3x64xbf16>
    %c0_65 = arith.constant 0 : index
    %c0_66 = arith.constant 0 : index
    %117 = vector.load %arg13[%c0_65, %c0_66] : memref<64x16xbf16, #tpu.memory_space<vmem>>, vector<64x16xbf16>
    %cst_67 = arith.constant dense<0.000000e+00> : vector<3x16xf32>
    %118 = tpu.matmul %116, %117, %cst_67 {dimension_numbers = #tpu.dot_dimension_numbers<[1], [0], [0], [1], [0, 0, 1, 1], [], []>} : vector<3x64xbf16>, vector<64x16xbf16>, vector<3x16xf32> -> vector<3x16xf32>
    %119 = arith.addf %51, %118 : vector<3x16xf32>
    %c0_68 = arith.constant 0 : index
    %c0_69 = arith.constant 0 : index
    %120 = vector.load %arg11[%c0_68, %c0_69] : memref<64x256xbf16, #tpu.memory_space<vmem>>, vector<64x256xbf16>
    %cst_70 = arith.constant dense<0.000000e+00> : vector<32x256xf32>
    %121 = tpu.matmul %104, %120, %cst_70 {dimension_numbers = #tpu.dot_dimension_numbers<[1], [0], [0], [1], [0, 0, 1, 1], [], []>} : vector<32x64xbf16>, vector<64x256xbf16>, vector<32x256xf32> -> vector<32x256xf32>
    %122 = arith.truncf %121 : vector<32x256xf32> to vector<32x256xbf16>
    %123 = vector.extract_strided_slice %11 {offsets = [0, 96], sizes = [1, 32], strides = [1, 1]} : vector<2x256xf32> to vector<1x32xf32>
    %c3 = arith.constant 3 : index
    %c0_71 = arith.constant 0 : index
    %c0_72 = arith.constant 0 : index
    %124 = vector.load %arg5[%c3, %c0_71, %c0_72] : memref<5x32x32xf32, #tpu.memory_space<vmem>>, vector<1x32x32xf32>
    %125 = vector.shape_cast %124 : vector<1x32x32xf32> to vector<32x32xf32>
    %126 = vector.broadcast %123 : vector<1x32xf32> to vector<32x32xf32>
    %127 = arith.mulf %125, %126 : vector<32x32xf32>
    %128 = arith.mulf %127, %127 : vector<32x32xf32>
    %cst_73 = arith.constant dense<0.000000e+00> : vector<32xf32>
    %129 = vector.multi_reduction <add>, %128, %cst_73 [1] : vector<32x32xf32> to vector<32xf32>
    %130 = vector.shape_cast %129 : vector<32xf32> to vector<32x1xf32>
    %cst_74 = arith.constant 5.000000e-01 : f32
    %131 = vector.broadcast %cst_74 : f32 to vector<32x1xf32>
    %132 = arith.mulf %131, %130 : vector<32x1xf32>
    %cst_75 = arith.constant 5.000000e-09 : f32
    %133 = vector.broadcast %cst_75 : f32 to vector<32x1xf32>
    %134 = arith.addf %132, %133 : vector<32x1xf32>
    %135 = math.rsqrt %134 : vector<32x1xf32>
    %136 = vector.broadcast %135 : vector<32x1xf32> to vector<32x32xf32>
    %137 = arith.mulf %127, %136 : vector<32x32xf32>
    %138 = arith.truncf %137 : vector<32x32xf32> to vector<32x32xbf16>
    %cst_76 = arith.constant dense<0.000000e+00> : vector<32x256xf32>
    %139 = tpu.matmul %138, %122, %cst_76 {dimension_numbers = #tpu.dot_dimension_numbers<[1], [0], [0], [1], [0, 0, 1, 1], [], []>} : vector<32x32xbf16>, vector<32x256xbf16>, vector<32x256xf32> -> vector<32x256xf32>
    %c3_77 = arith.constant 3 : index
    %c0_78 = arith.constant 0 : index
    %c0_79 = arith.constant 0 : index
    %140 = vector.load %arg6[%c3_77, %c0_78, %c0_79] : memref<5x32x1xf32, #tpu.memory_space<vmem>>, vector<1x32x1xf32>
    %141 = vector.shape_cast %140 : vector<1x32x1xf32> to vector<32x1xf32>
    %142 = vector.broadcast %141 : vector<32x1xf32> to vector<32x256xf32>
    %143 = arith.addf %139, %142 : vector<32x256xf32>
    %cst_80 = arith.constant 2.000000e-01 : f32
    %144 = vector.broadcast %cst_80 : f32 to vector<32x256xf32>
    %145 = arith.mulf %144, %143 : vector<32x256xf32>
    %146 = arith.maximumf %143, %145 : vector<32x256xf32>
    %147 = arith.truncf %146 : vector<32x256xf32> to vector<32x256xbf16>
    %148 = vector.extract_strided_slice %11 {offsets = [0, 128], sizes = [1, 32], strides = [1, 1]} : vector<2x256xf32> to vector<1x32xf32>
    %c4 = arith.constant 4 : index
    %c0_81 = arith.constant 0 : index
    %c0_82 = arith.constant 0 : index
    %149 = vector.load %arg5[%c4, %c0_81, %c0_82] : memref<5x32x32xf32, #tpu.memory_space<vmem>>, vector<1x32x32xf32>
    %150 = vector.shape_cast %149 : vector<1x32x32xf32> to vector<32x32xf32>
    %151 = vector.broadcast %148 : vector<1x32xf32> to vector<32x32xf32>
    %152 = arith.mulf %150, %151 : vector<32x32xf32>
    %153 = arith.mulf %152, %152 : vector<32x32xf32>
    %cst_83 = arith.constant dense<0.000000e+00> : vector<32xf32>
    %154 = vector.multi_reduction <add>, %153, %cst_83 [1] : vector<32x32xf32> to vector<32xf32>
    %155 = vector.shape_cast %154 : vector<32xf32> to vector<32x1xf32>
    %cst_84 = arith.constant 5.000000e-01 : f32
    %156 = vector.broadcast %cst_84 : f32 to vector<32x1xf32>
    %157 = arith.mulf %156, %155 : vector<32x1xf32>
    %cst_85 = arith.constant 5.000000e-09 : f32
    %158 = vector.broadcast %cst_85 : f32 to vector<32x1xf32>
    %159 = arith.addf %157, %158 : vector<32x1xf32>
    %160 = math.rsqrt %159 : vector<32x1xf32>
    %161 = vector.broadcast %160 : vector<32x1xf32> to vector<32x32xf32>
    %162 = arith.mulf %152, %161 : vector<32x32xf32>
    %163 = arith.truncf %162 : vector<32x32xf32> to vector<32x32xbf16>
    %cst_86 = arith.constant dense<0.000000e+00> : vector<32x256xf32>
    %164 = tpu.matmul %163, %147, %cst_86 {dimension_numbers = #tpu.dot_dimension_numbers<[1], [0], [0], [1], [0, 0, 1, 1], [], []>} : vector<32x32xbf16>, vector<32x256xbf16>, vector<32x256xf32> -> vector<32x256xf32>
    %c4_87 = arith.constant 4 : index
    %c0_88 = arith.constant 0 : index
    %c0_89 = arith.constant 0 : index
    %165 = vector.load %arg6[%c4_87, %c0_88, %c0_89] : memref<5x32x1xf32, #tpu.memory_space<vmem>>, vector<1x32x1xf32>
    %166 = vector.shape_cast %165 : vector<1x32x1xf32> to vector<32x1xf32>
    %167 = vector.broadcast %166 : vector<32x1xf32> to vector<32x256xf32>
    %168 = arith.addf %164, %167 : vector<32x256xf32>
    %cst_90 = arith.constant 2.000000e-01 : f32
    %169 = vector.broadcast %cst_90 : f32 to vector<32x256xf32>
    %170 = arith.mulf %169, %168 : vector<32x256xf32>
    %171 = arith.maximumf %168, %170 : vector<32x256xf32>
    %172 = arith.truncf %171 : vector<32x256xf32> to vector<32x256xbf16>
    %173 = vector.extract_strided_slice %11 {offsets = [0, 224], sizes = [1, 32], strides = [1, 1]} : vector<2x256xf32> to vector<1x32xf32>
    %c2_91 = arith.constant 2 : index
    %c0_92 = arith.constant 0 : index
    %c0_93 = arith.constant 0 : index
    %174 = vector.load %arg7[%c2_91, %c0_92, %c0_93] : memref<3x3x32xf32, #tpu.memory_space<vmem>>, vector<1x3x32xf32>
    %175 = vector.shape_cast %174 : vector<1x3x32xf32> to vector<3x32xf32>
    %176 = vector.broadcast %173 : vector<1x32xf32> to vector<3x32xf32>
    %177 = arith.mulf %175, %176 : vector<3x32xf32>
    %178 = arith.truncf %177 : vector<3x32xf32> to vector<3x32xbf16>
    %cst_94 = arith.constant dense<0.000000e+00> : vector<3x256xf32>
    %179 = tpu.matmul %178, %172, %cst_94 {dimension_numbers = #tpu.dot_dimension_numbers<[1], [0], [0], [1], [0, 0, 1, 1], [], []>} : vector<3x32xbf16>, vector<32x256xbf16>, vector<3x256xf32> -> vector<3x256xf32>
    %c2_95 = arith.constant 2 : index
    %c0_96 = arith.constant 0 : index
    %c0_97 = arith.constant 0 : index
    %180 = vector.load %arg8[%c2_95, %c0_96, %c0_97] : memref<3x3x1xf32, #tpu.memory_space<vmem>>, vector<1x3x1xf32>
    %181 = vector.shape_cast %180 : vector<1x3x1xf32> to vector<3x1xf32>
    %182 = vector.broadcast %181 : vector<3x1xf32> to vector<3x256xf32>
    %183 = arith.addf %179, %182 : vector<3x256xf32>
    %184 = arith.truncf %183 : vector<3x256xf32> to vector<3x256xbf16>
    %c0_98 = arith.constant 0 : index
    %c0_99 = arith.constant 0 : index
    %185 = vector.load %arg14[%c0_98, %c0_99] : memref<256x16xbf16, #tpu.memory_space<vmem>>, vector<256x16xbf16>
    %cst_100 = arith.constant dense<0.000000e+00> : vector<3x16xf32>
    %186 = tpu.matmul %184, %185, %cst_100 {dimension_numbers = #tpu.dot_dimension_numbers<[1], [0], [0], [1], [0, 0, 1, 1], [], []>} : vector<3x256xbf16>, vector<256x16xbf16>, vector<3x16xf32> -> vector<3x16xf32>
    %187 = arith.addf %119, %186 : vector<3x16xf32>
    %c0_101 = arith.constant 0 : index
    %c0_102 = arith.constant 0 : index
    %c0_103 = arith.constant 0 : index
    %188 = vector.load %arg15[%c0_101, %c0_102, %c0_103] : memref<2x3x16xf32, #tpu.memory_space<vmem>>, vector<1x3x16xf32>
    %189 = vector.shape_cast %188 : vector<1x3x16xf32> to vector<3x16xf32>
    %190 = vector.shape_cast %187 : vector<3x16xf32> to vector<1x3x16xf32>
    tpu.vector_store %arg15[%c0_101, %c0_102, %c0_103], %190 {strides = array<i32>} : memref<2x3x16xf32, #tpu.memory_space<vmem>>, vector<1x3x16xf32>,
    %191 = vector.extract_strided_slice %11 {offsets = [1, 0], sizes = [1, 32], strides = [1, 1]} : vector<2x256xf32> to vector<1x32xf32>
    %c0_104 = arith.constant 0 : index
    %c0_105 = arith.constant 0 : index
    %c0_106 = arith.constant 0 : index
    %192 = vector.load %arg5[%c0_104, %c0_105, %c0_106] : memref<5x32x32xf32, #tpu.memory_space<vmem>>, vector<1x32x32xf32>
    %193 = vector.shape_cast %192 : vector<1x32x32xf32> to vector<32x32xf32>
    %194 = vector.broadcast %191 : vector<1x32xf32> to vector<32x32xf32>
    %195 = arith.mulf %193, %194 : vector<32x32xf32>
    %196 = arith.mulf %195, %195 : vector<32x32xf32>
    %cst_107 = arith.constant dense<0.000000e+00> : vector<32xf32>
    %197 = vector.multi_reduction <add>, %196, %cst_107 [1] : vector<32x32xf32> to vector<32xf32>
    %198 = vector.shape_cast %197 : vector<32xf32> to vector<32x1xf32>
    %cst_108 = arith.constant 5.000000e-01 : f32
    %199 = vector.broadcast %cst_108 : f32 to vector<32x1xf32>
    %200 = arith.mulf %199, %198 : vector<32x1xf32>
    %cst_109 = arith.constant 5.000000e-09 : f32
    %201 = vector.broadcast %cst_109 : f32 to vector<32x1xf32>
    %202 = arith.addf %200, %201 : vector<32x1xf32>
    %203 = math.rsqrt %202 : vector<32x1xf32>
    %204 = vector.broadcast %203 : vector<32x1xf32> to vector<32x32xf32>
    %205 = arith.mulf %195, %204 : vector<32x32xf32>
    %206 = arith.truncf %205 : vector<32x32xf32> to vector<32x32xbf16>
    %cst_110 = arith.constant dense<0.000000e+00> : vector<32x16xf32>
    %207 = tpu.matmul %206, %12, %cst_110 {dimension_numbers = #tpu.dot_dimension_numbers<[1], [0], [0], [1], [0, 0, 1, 1], [], []>} : vector<32x32xbf16>, vector<32x16xbf16>, vector<32x16xf32> -> vector<32x16xf32>
    %c0_111 = arith.constant 0 : index
    %c0_112 = arith.constant 0 : index
    %c0_113 = arith.constant 0 : index
    %208 = vector.load %arg6[%c0_111, %c0_112, %c0_113] : memref<5x32x1xf32, #tpu.memory_space<vmem>>, vector<1x32x1xf32>
    %209 = vector.shape_cast %208 : vector<1x32x1xf32> to vector<32x1xf32>
    %210 = vector.broadcast %209 : vector<32x1xf32> to vector<32x16xf32>
    %211 = arith.addf %207, %210 : vector<32x16xf32>
    %cst_114 = arith.constant 2.000000e-01 : f32
    %212 = vector.broadcast %cst_114 : f32 to vector<32x16xf32>
    %213 = arith.mulf %212, %211 : vector<32x16xf32>
    %214 = arith.maximumf %211, %213 : vector<32x16xf32>
    %215 = arith.truncf %214 : vector<32x16xf32> to vector<32x16xbf16>
    %216 = vector.extract_strided_slice %11 {offsets = [1, 160], sizes = [1, 32], strides = [1, 1]} : vector<2x256xf32> to vector<1x32xf32>
    %c0_115 = arith.constant 0 : index
    %c0_116 = arith.constant 0 : index
    %c0_117 = arith.constant 0 : index
    %217 = vector.load %arg7[%c0_115, %c0_116, %c0_117] : memref<3x3x32xf32, #tpu.memory_space<vmem>>, vector<1x3x32xf32>
    %218 = vector.shape_cast %217 : vector<1x3x32xf32> to vector<3x32xf32>
    %219 = vector.broadcast %216 : vector<1x32xf32> to vector<3x32xf32>
    %220 = arith.mulf %218, %219 : vector<3x32xf32>
    %221 = arith.truncf %220 : vector<3x32xf32> to vector<3x32xbf16>
    %cst_118 = arith.constant dense<0.000000e+00> : vector<3x16xf32>
    %222 = tpu.matmul %221, %215, %cst_118 {dimension_numbers = #tpu.dot_dimension_numbers<[1], [0], [0], [1], [0, 0, 1, 1], [], []>} : vector<3x32xbf16>, vector<32x16xbf16>, vector<3x16xf32> -> vector<3x16xf32>
    %c0_119 = arith.constant 0 : index
    %c0_120 = arith.constant 0 : index
    %c0_121 = arith.constant 0 : index
    %223 = vector.load %arg8[%c0_119, %c0_120, %c0_121] : memref<3x3x1xf32, #tpu.memory_space<vmem>>, vector<1x3x1xf32>
    %224 = vector.shape_cast %223 : vector<1x3x1xf32> to vector<3x1xf32>
    %225 = vector.broadcast %224 : vector<3x1xf32> to vector<3x16xf32>
    %226 = arith.addf %222, %225 : vector<3x16xf32>
    %227 = arith.truncf %226 : vector<3x16xf32> to vector<3x16xbf16>
    %c0_122 = arith.constant 0 : index
    %c0_123 = arith.constant 0 : index
    %228 = vector.load %arg12[%c0_122, %c0_123] : memref<16x16xbf16, #tpu.memory_space<vmem>>, vector<16x16xbf16>
    %cst_124 = arith.constant dense<0.000000e+00> : vector<3x16xf32>
    %229 = tpu.matmul %227, %228, %cst_124 {dimension_numbers = #tpu.dot_dimension_numbers<[1], [0], [0], [1], [0, 0, 1, 1], [], []>} : vector<3x16xbf16>, vector<16x16xbf16>, vector<3x16xf32> -> vector<3x16xf32>
    %c0_125 = arith.constant 0 : index
    %c0_126 = arith.constant 0 : index
    %230 = vector.load %arg10[%c0_125, %c0_126] : memref<16x64xbf16, #tpu.memory_space<vmem>>, vector<16x64xbf16>
    %cst_127 = arith.constant dense<0.000000e+00> : vector<32x64xf32>
    %231 = tpu.matmul %215, %230, %cst_127 {dimension_numbers = #tpu.dot_dimension_numbers<[1], [0], [0], [1], [0, 0, 1, 1], [], []>} : vector<32x16xbf16>, vector<16x64xbf16>, vector<32x64xf32> -> vector<32x64xf32>
    %232 = arith.truncf %231 : vector<32x64xf32> to vector<32x64xbf16>
    %233 = vector.extract_strided_slice %11 {offsets = [1, 32], sizes = [1, 32], strides = [1, 1]} : vector<2x256xf32> to vector<1x32xf32>
    %c1_128 = arith.constant 1 : index
    %c0_129 = arith.constant 0 : index
    %c0_130 = arith.constant 0 : index
    %234 = vector.load %arg5[%c1_128, %c0_129, %c0_130] : memref<5x32x32xf32, #tpu.memory_space<vmem>>, vector<1x32x32xf32>
    %235 = vector.shape_cast %234 : vector<1x32x32xf32> to vector<32x32xf32>
    %236 = vector.broadcast %233 : vector<1x32xf32> to vector<32x32xf32>
    %237 = arith.mulf %235, %236 : vector<32x32xf32>
    %238 = arith.mulf %237, %237 : vector<32x32xf32>
    %cst_131 = arith.constant dense<0.000000e+00> : vector<32xf32>
    %239 = vector.multi_reduction <add>, %238, %cst_131 [1] : vector<32x32xf32> to vector<32xf32>
    %240 = vector.shape_cast %239 : vector<32xf32> to vector<32x1xf32>
    %cst_132 = arith.constant 5.000000e-01 : f32
    %241 = vector.broadcast %cst_132 : f32 to vector<32x1xf32>
    %242 = arith.mulf %241, %240 : vector<32x1xf32>
    %cst_133 = arith.constant 5.000000e-09 : f32
    %243 = vector.broadcast %cst_133 : f32 to vector<32x1xf32>
    %244 = arith.addf %242, %243 : vector<32x1xf32>
    %245 = math.rsqrt %244 : vector<32x1xf32>
    %246 = vector.broadcast %245 : vector<32x1xf32> to vector<32x32xf32>
    %247 = arith.mulf %237, %246 : vector<32x32xf32>
    %248 = arith.truncf %247 : vector<32x32xf32> to vector<32x32xbf16>
    %cst_134 = arith.constant dense<0.000000e+00> : vector<32x64xf32>
    %249 = tpu.matmul %248, %232, %cst_134 {dimension_numbers = #tpu.dot_dimension_numbers<[1], [0], [0], [1], [0, 0, 1, 1], [], []>} : vector<32x32xbf16>, vector<32x64xbf16>, vector<32x64xf32> -> vector<32x64xf32>
    %c1_135 = arith.constant 1 : index
    %c0_136 = arith.constant 0 : index
    %c0_137 = arith.constant 0 : index
    %250 = vector.load %arg6[%c1_135, %c0_136, %c0_137] : memref<5x32x1xf32, #tpu.memory_space<vmem>>, vector<1x32x1xf32>
    %251 = vector.shape_cast %250 : vector<1x32x1xf32> to vector<32x1xf32>
    %252 = vector.broadcast %251 : vector<32x1xf32> to vector<32x64xf32>
    %253 = arith.addf %249, %252 : vector<32x64xf32>
    %cst_138 = arith.constant 2.000000e-01 : f32
    %254 = vector.broadcast %cst_138 : f32 to vector<32x64xf32>
    %255 = arith.mulf %254, %253 : vector<32x64xf32>
    %256 = arith.maximumf %253, %255 : vector<32x64xf32>
    %257 = arith.truncf %256 : vector<32x64xf32> to vector<32x64xbf16>
    %258 = vector.extract_strided_slice %11 {offsets = [1, 64], sizes = [1, 32], strides = [1, 1]} : vector<2x256xf32> to vector<1x32xf32>
    %c2_139 = arith.constant 2 : index
    %c0_140 = arith.constant 0 : index
    %c0_141 = arith.constant 0 : index
    %259 = vector.load %arg5[%c2_139, %c0_140, %c0_141] : memref<5x32x32xf32, #tpu.memory_space<vmem>>, vector<1x32x32xf32>
    %260 = vector.shape_cast %259 : vector<1x32x32xf32> to vector<32x32xf32>
    %261 = vector.broadcast %258 : vector<1x32xf32> to vector<32x32xf32>
    %262 = arith.mulf %260, %261 : vector<32x32xf32>
    %263 = arith.mulf %262, %262 : vector<32x32xf32>
    %cst_142 = arith.constant dense<0.000000e+00> : vector<32xf32>
    %264 = vector.multi_reduction <add>, %263, %cst_142 [1] : vector<32x32xf32> to vector<32xf32>
    %265 = vector.shape_cast %264 : vector<32xf32> to vector<32x1xf32>
    %cst_143 = arith.constant 5.000000e-01 : f32
    %266 = vector.broadcast %cst_143 : f32 to vector<32x1xf32>
    %267 = arith.mulf %266, %265 : vector<32x1xf32>
    %cst_144 = arith.constant 5.000000e-09 : f32
    %268 = vector.broadcast %cst_144 : f32 to vector<32x1xf32>
    %269 = arith.addf %267, %268 : vector<32x1xf32>
    %270 = math.rsqrt %269 : vector<32x1xf32>
    %271 = vector.broadcast %270 : vector<32x1xf32> to vector<32x32xf32>
    %272 = arith.mulf %262, %271 : vector<32x32xf32>
    %273 = arith.truncf %272 : vector<32x32xf32> to vector<32x32xbf16>
    %cst_145 = arith.constant dense<0.000000e+00> : vector<32x64xf32>
    %274 = tpu.matmul %273, %257, %cst_145 {dimension_numbers = #tpu.dot_dimension_numbers<[1], [0], [0], [1], [0, 0, 1, 1], [], []>} : vector<32x32xbf16>, vector<32x64xbf16>, vector<32x64xf32> -> vector<32x64xf32>
    %c2_146 = arith.constant 2 : index
    %c0_147 = arith.constant 0 : index
    %c0_148 = arith.constant 0 : index
    %275 = vector.load %arg6[%c2_146, %c0_147, %c0_148] : memref<5x32x1xf32, #tpu.memory_space<vmem>>, vector<1x32x1xf32>
    %276 = vector.shape_cast %275 : vector<1x32x1xf32> to vector<32x1xf32>
    %277 = vector.broadcast %276 : vector<32x1xf32> to vector<32x64xf32>
    %278 = arith.addf %274, %277 : vector<32x64xf32>
    %cst_149 = arith.constant 2.000000e-01 : f32
    %279 = vector.broadcast %cst_149 : f32 to vector<32x64xf32>
    %280 = arith.mulf %279, %278 : vector<32x64xf32>
    %281 = arith.maximumf %278, %280 : vector<32x64xf32>
    %282 = arith.truncf %281 : vector<32x64xf32> to vector<32x64xbf16>
    %283 = vector.extract_strided_slice %11 {offsets = [1, 192], sizes = [1, 32], strides = [1, 1]} : vector<2x256xf32> to vector<1x32xf32>
    %c1_150 = arith.constant 1 : index
    %c0_151 = arith.constant 0 : index
    %c0_152 = arith.constant 0 : index
    %284 = vector.load %arg7[%c1_150, %c0_151, %c0_152] : memref<3x3x32xf32, #tpu.memory_space<vmem>>, vector<1x3x32xf32>
    %285 = vector.shape_cast %284 : vector<1x3x32xf32> to vector<3x32xf32>
    %286 = vector.broadcast %283 : vector<1x32xf32> to vector<3x32xf32>
    %287 = arith.mulf %285, %286 : vector<3x32xf32>
    %288 = arith.truncf %287 : vector<3x32xf32> to vector<3x32xbf16>
    %cst_153 = arith.constant dense<0.000000e+00> : vector<3x64xf32>
    %289 = tpu.matmul %288, %282, %cst_153 {dimension_numbers = #tpu.dot_dimension_numbers<[1], [0], [0], [1], [0, 0, 1, 1], [], []>} : vector<3x32xbf16>, vector<32x64xbf16>, vector<3x64xf32> -> vector<3x64xf32>
    %c1_154 = arith.constant 1 : index
    %c0_155 = arith.constant 0 : index
    %c0_156 = arith.constant 0 : index
    %290 = vector.load %arg8[%c1_154, %c0_155, %c0_156] : memref<3x3x1xf32, #tpu.memory_space<vmem>>, vector<1x3x1xf32>
    %291 = vector.shape_cast %290 : vector<1x3x1xf32> to vector<3x1xf32>
    %292 = vector.broadcast %291 : vector<3x1xf32> to vector<3x64xf32>
    %293 = arith.addf %289, %292 : vector<3x64xf32>
    %294 = arith.truncf %293 : vector<3x64xf32> to vector<3x64xbf16>
    %c0_157 = arith.constant 0 : index
    %c0_158 = arith.constant 0 : index
    %295 = vector.load %arg13[%c0_157, %c0_158] : memref<64x16xbf16, #tpu.memory_space<vmem>>, vector<64x16xbf16>
    %cst_159 = arith.constant dense<0.000000e+00> : vector<3x16xf32>
    %296 = tpu.matmul %294, %295, %cst_159 {dimension_numbers = #tpu.dot_dimension_numbers<[1], [0], [0], [1], [0, 0, 1, 1], [], []>} : vector<3x64xbf16>, vector<64x16xbf16>, vector<3x16xf32> -> vector<3x16xf32>
    %297 = arith.addf %229, %296 : vector<3x16xf32>
    %c0_160 = arith.constant 0 : index
    %c0_161 = arith.constant 0 : index
    %298 = vector.load %arg11[%c0_160, %c0_161] : memref<64x256xbf16, #tpu.memory_space<vmem>>, vector<64x256xbf16>
    %cst_162 = arith.constant dense<0.000000e+00> : vector<32x256xf32>
    %299 = tpu.matmul %282, %298, %cst_162 {dimension_numbers = #tpu.dot_dimension_numbers<[1], [0], [0], [1], [0, 0, 1, 1], [], []>} : vector<32x64xbf16>, vector<64x256xbf16>, vector<32x256xf32> -> vector<32x256xf32>
    %300 = arith.truncf %299 : vector<32x256xf32> to vector<32x256xbf16>
    %301 = vector.extract_strided_slice %11 {offsets = [1, 96], sizes = [1, 32], strides = [1, 1]} : vector<2x256xf32> to vector<1x32xf32>
    %c3_163 = arith.constant 3 : index
    %c0_164 = arith.constant 0 : index
    %c0_165 = arith.constant 0 : index
    %302 = vector.load %arg5[%c3_163, %c0_164, %c0_165] : memref<5x32x32xf32, #tpu.memory_space<vmem>>, vector<1x32x32xf32>
    %303 = vector.shape_cast %302 : vector<1x32x32xf32> to vector<32x32xf32>
    %304 = vector.broadcast %301 : vector<1x32xf32> to vector<32x32xf32>
    %305 = arith.mulf %303, %304 : vector<32x32xf32>
    %306 = arith.mulf %305, %305 : vector<32x32xf32>
    %cst_166 = arith.constant dense<0.000000e+00> : vector<32xf32>
    %307 = vector.multi_reduction <add>, %306, %cst_166 [1] : vector<32x32xf32> to vector<32xf32>
    %308 = vector.shape_cast %307 : vector<32xf32> to vector<32x1xf32>
    %cst_167 = arith.constant 5.000000e-01 : f32
    %309 = vector.broadcast %cst_167 : f32 to vector<32x1xf32>
    %310 = arith.mulf %309, %308 : vector<32x1xf32>
    %cst_168 = arith.constant 5.000000e-09 : f32
    %311 = vector.broadcast %cst_168 : f32 to vector<32x1xf32>
    %312 = arith.addf %310, %311 : vector<32x1xf32>
    %313 = math.rsqrt %312 : vector<32x1xf32>
    %314 = vector.broadcast %313 : vector<32x1xf32> to vector<32x32xf32>
    %315 = arith.mulf %305, %314 : vector<32x32xf32>
    %316 = arith.truncf %315 : vector<32x32xf32> to vector<32x32xbf16>
    %cst_169 = arith.constant dense<0.000000e+00> : vector<32x256xf32>
    %317 = tpu.matmul %316, %300, %cst_169 {dimension_numbers = #tpu.dot_dimension_numbers<[1], [0], [0], [1], [0, 0, 1, 1], [], []>} : vector<32x32xbf16>, vector<32x256xbf16>, vector<32x256xf32> -> vector<32x256xf32>
    %c3_170 = arith.constant 3 : index
    %c0_171 = arith.constant 0 : index
    %c0_172 = arith.constant 0 : index
    %318 = vector.load %arg6[%c3_170, %c0_171, %c0_172] : memref<5x32x1xf32, #tpu.memory_space<vmem>>, vector<1x32x1xf32>
    %319 = vector.shape_cast %318 : vector<1x32x1xf32> to vector<32x1xf32>
    %320 = vector.broadcast %319 : vector<32x1xf32> to vector<32x256xf32>
    %321 = arith.addf %317, %320 : vector<32x256xf32>
    %cst_173 = arith.constant 2.000000e-01 : f32
    %322 = vector.broadcast %cst_173 : f32 to vector<32x256xf32>
    %323 = arith.mulf %322, %321 : vector<32x256xf32>
    %324 = arith.maximumf %321, %323 : vector<32x256xf32>
    %325 = arith.truncf %324 : vector<32x256xf32> to vector<32x256xbf16>
    %326 = vector.extract_strided_slice %11 {offsets = [1, 128], sizes = [1, 32], strides = [1, 1]} : vector<2x256xf32> to vector<1x32xf32>
    %c4_174 = arith.constant 4 : index
    %c0_175 = arith.constant 0 : index
    %c0_176 = arith.constant 0 : index
    %327 = vector.load %arg5[%c4_174, %c0_175, %c0_176] : memref<5x32x32xf32, #tpu.memory_space<vmem>>, vector<1x32x32xf32>
    %328 = vector.shape_cast %327 : vector<1x32x32xf32> to vector<32x32xf32>
    %329 = vector.broadcast %326 : vector<1x32xf32> to vector<32x32xf32>
    %330 = arith.mulf %328, %329 : vector<32x32xf32>
    %331 = arith.mulf %330, %330 : vector<32x32xf32>
    %cst_177 = arith.constant dense<0.000000e+00> : vector<32xf32>
    %332 = vector.multi_reduction <add>, %331, %cst_177 [1] : vector<32x32xf32> to vector<32xf32>
    %333 = vector.shape_cast %332 : vector<32xf32> to vector<32x1xf32>
    %cst_178 = arith.constant 5.000000e-01 : f32
    %334 = vector.broadcast %cst_178 : f32 to vector<32x1xf32>
    %335 = arith.mulf %334, %333 : vector<32x1xf32>
    %cst_179 = arith.constant 5.000000e-09 : f32
    %336 = vector.broadcast %cst_179 : f32 to vector<32x1xf32>
    %337 = arith.addf %335, %336 : vector<32x1xf32>
    %338 = math.rsqrt %337 : vector<32x1xf32>
    %339 = vector.broadcast %338 : vector<32x1xf32> to vector<32x32xf32>
    %340 = arith.mulf %330, %339 : vector<32x32xf32>
    %341 = arith.truncf %340 : vector<32x32xf32> to vector<32x32xbf16>
    %cst_180 = arith.constant dense<0.000000e+00> : vector<32x256xf32>
    %342 = tpu.matmul %341, %325, %cst_180 {dimension_numbers = #tpu.dot_dimension_numbers<[1], [0], [0], [1], [0, 0, 1, 1], [], []>} : vector<32x32xbf16>, vector<32x256xbf16>, vector<32x256xf32> -> vector<32x256xf32>
    %c4_181 = arith.constant 4 : index
    %c0_182 = arith.constant 0 : index
    %c0_183 = arith.constant 0 : index
    %343 = vector.load %arg6[%c4_181, %c0_182, %c0_183] : memref<5x32x1xf32, #tpu.memory_space<vmem>>, vector<1x32x1xf32>
    %344 = vector.shape_cast %343 : vector<1x32x1xf32> to vector<32x1xf32>
    %345 = vector.broadcast %344 : vector<32x1xf32> to vector<32x256xf32>
    %346 = arith.addf %342, %345 : vector<32x256xf32>
    %cst_184 = arith.constant 2.000000e-01 : f32
    %347 = vector.broadcast %cst_184 : f32 to vector<32x256xf32>
    %348 = arith.mulf %347, %346 : vector<32x256xf32>
    %349 = arith.maximumf %346, %348 : vector<32x256xf32>
    %350 = arith.truncf %349 : vector<32x256xf32> to vector<32x256xbf16>
    %351 = vector.extract_strided_slice %11 {offsets = [1, 224], sizes = [1, 32], strides = [1, 1]} : vector<2x256xf32> to vector<1x32xf32>
    %c2_185 = arith.constant 2 : index
    %c0_186 = arith.constant 0 : index
    %c0_187 = arith.constant 0 : index
    %352 = vector.load %arg7[%c2_185, %c0_186, %c0_187] : memref<3x3x32xf32, #tpu.memory_space<vmem>>, vector<1x3x32xf32>
    %353 = vector.shape_cast %352 : vector<1x3x32xf32> to vector<3x32xf32>
    %354 = vector.broadcast %351 : vector<1x32xf32> to vector<3x32xf32>
    %355 = arith.mulf %353, %354 : vector<3x32xf32>
    %356 = arith.truncf %355 : vector<3x32xf32> to vector<3x32xbf16>
    %cst_188 = arith.constant dense<0.000000e+00> : vector<3x256xf32>
    %357 = tpu.matmul %356, %350, %cst_188 {dimension_numbers = #tpu.dot_dimension_numbers<[1], [0], [0], [1], [0, 0, 1, 1], [], []>} : vector<3x32xbf16>, vector<32x256xbf16>, vector<3x256xf32> -> vector<3x256xf32>
    %c2_189 = arith.constant 2 : index
    %c0_190 = arith.constant 0 : index
    %c0_191 = arith.constant 0 : index
    %358 = vector.load %arg8[%c2_189, %c0_190, %c0_191] : memref<3x3x1xf32, #tpu.memory_space<vmem>>, vector<1x3x1xf32>
    %359 = vector.shape_cast %358 : vector<1x3x1xf32> to vector<3x1xf32>
    %360 = vector.broadcast %359 : vector<3x1xf32> to vector<3x256xf32>
    %361 = arith.addf %357, %360 : vector<3x256xf32>
    %362 = arith.truncf %361 : vector<3x256xf32> to vector<3x256xbf16>
    %c0_192 = arith.constant 0 : index
    %c0_193 = arith.constant 0 : index
    %363 = vector.load %arg14[%c0_192, %c0_193] : memref<256x16xbf16, #tpu.memory_space<vmem>>, vector<256x16xbf16>
    %cst_194 = arith.constant dense<0.000000e+00> : vector<3x16xf32>
    %364 = tpu.matmul %362, %363, %cst_194 {dimension_numbers = #tpu.dot_dimension_numbers<[1], [0], [0], [1], [0, 0, 1, 1], [], []>} : vector<3x256xbf16>, vector<256x16xbf16>, vector<3x16xf32> -> vector<3x16xf32>
    %365 = arith.addf %297, %364 : vector<3x16xf32>
    %c1_195 = arith.constant 1 : index
    %c0_196 = arith.constant 0 : index
    %c0_197 = arith.constant 0 : index
    %366 = vector.load %arg15[%c1_195, %c0_196, %c0_197] : memref<2x3x16xf32, #tpu.memory_space<vmem>>, vector<1x3x16xf32>
    %367 = vector.shape_cast %366 : vector<1x3x16xf32> to vector<3x16xf32>
    %368 = vector.shape_cast %365 : vector<3x16xf32> to vector<1x3x16xf32>
    tpu.vector_store %arg15[%c1_195, %c0_196, %c0_197], %368 {strides = array<i32>} : memref<2x3x16xf32, #tpu.memory_space<vmem>>, vector<1x3x16xf32>,
    return
  }
}

</mosaic_0001>

<llo_original>
// kernel: e4e_forward.1
$region0: #{e4e_forward.1}
  #allocation0 [shape = 'u32[]', space=smem, size = 0x4, offset = 0x4, fixed_abs, tag = 'smem constant byte address 0x4 - core index']
  #allocation1 [shape = 'u32[144,128]{1,0:T(1,128)}', space=vmem, size = 0x12000, scoped, tag = 'internal scratch']
  %s0 = inlined_call_operand.vmem [shape: bf16[2,768], index: 0, kind: input, shape index: {}]
  %s1 = inlined_call_operand.hbm [shape: bf16[768,384], index: 1, kind: input, shape index: {}]
  %s2 = inlined_call_operand.hbm [shape: f32[1,384], index: 2, kind: input, shape index: {}]
  %s3 = inlined_call_operand.hbm [shape: f32[384,256], index: 3, kind: input, shape index: {}]
  %s4 = inlined_call_operand.hbm [shape: f32[1,256], index: 4, kind: input, shape index: {}]
  %s5 = inlined_call_operand.vmem [shape: f32[5,32,32], index: 5, kind: input, shape index: {}]
  %s6 = inlined_call_operand.vmem [shape: f32[5,32,1], index: 6, kind: input, shape index: {}]
  %s7 = inlined_call_operand.vmem [shape: f32[3,3,32], index: 7, kind: input, shape index: {}]
  %s8 = inlined_call_operand.vmem [shape: f32[3,3,1], index: 8, kind: input, shape index: {}]
  %s9 = inlined_call_operand.vmem [shape: bf16[32,16], index: 9, kind: input, shape index: {}]
  %s10 = inlined_call_operand.vmem [shape: bf16[16,64], index: 10, kind: input, shape index: {}]
  %s11 = inlined_call_operand.vmem [shape: bf16[64,256], index: 11, kind: input, shape index: {}]
  %s12 = inlined_call_operand.vmem [shape: bf16[16,16], index: 12, kind: input, shape index: {}]
  %s13 = inlined_call_operand.vmem [shape: bf16[64,16], index: 13, kind: input, shape index: {}]
  %s14 = inlined_call_operand.vmem [shape: bf16[256,16], index: 14, kind: input, shape index: {}]
  %s15 = inlined_call_operand.vmem [shape: f32[2,3,16], index: 15, kind: output, shape index: {0}]
  %s16 = inlined_call_operand.hbm [shape: f32[2,384], index: 16, kind: output, shape index: {1}]
  %17 = xla_tuple %s15, %s16
  %s18 = sld [smem:[#allocation0]]
  $region94: #{e4e_forward.1} parent=0
    _
  %s20 = ssub.s32 1, %s18
  %s21 = scalar_select 0, %s20, %s18
  $region1: #{e4e_forward.1} parent=0
    #allocation2 [shape = 'u8[589824]{0}', space=vmem, size = 0x90000, scoped, tag = 'input window, operand 1, single buffered']
    #allocation3 [shape = 's32[1]{0}', space=sflag, size = 0x4, scoped, tag = 'scoped memory for e4e_forward.1']
    #allocation4 [shape = 's32[1]{0}', space=sflag, size = 0x4, scoped, tag = 'scoped memory for e4e_forward.1']
    #allocation5 [shape = 'u8[1536]{0}', space=vmem, size = 0x800, scoped, tag = 'input window, operand 2, single buffered']
    #allocation6 [shape = 's32[1]{0}', space=sflag, size = 0x4, scoped, tag = 'scoped memory for e4e_forward.1']
    #allocation7 [shape = 'u8[393216]{0}', space=vmem, size = 0x60000, scoped, tag = 'input window, operand 3, single buffered']
    #allocation8 [shape = 'u8[1024]{0}', space=vmem, size = 0x400, scoped, tag = 'input window, operand 4, single buffered']
    #allocation9 [shape = 's32[1]{0}', space=sflag, size = 0x4, scoped, tag = 'scoped memory for e4e_forward.1']
    #allocation10 [shape = 'u8[3072]{0}', space=vmem, size = 0xc00, scoped, tag = 'output window, operand 1, single buffered']
    %22 = vsyncpa [#allocation3], 0
    %23 = vsyncpa [#allocation6], 0
    %24 = vsyncpa [#allocation9], 0
    %25 = vsyncpa [#allocation4], 0
    // Predicated region
    $region2: #{e4e_forward.1} parent=1 // pred_check
      _
    $region3: #{e4e_forward.1} parent=1 // pred_check_branch
      %27 = sbr.rel (0) target = $region5
    $region4: #{e4e_forward.1} parent=1 // pred_region
      _
    $region5: #{e4e_forward.1} parent=1 // pred_fallthru
      _
    // Predicated region
    $region6: #{e4e_forward.1} parent=1 // pred_check
      _
    $region7: #{e4e_forward.1} parent=1 // pred_check_branch
      %29 = sbr.rel (0) target = $region9
    $region8: #{e4e_forward.1} parent=1 // pred_region
      %s31 = ssub.s32 18432, 18432
      %32 = vsyncadd [#allocation3], %s31
      %s33 = sshll.u32 [#allocation2], 4
      %s34 = int_to_ptr.vmem [resolvable:$true] %s33
      %39 = dma.hbm_to_vmem [thread:$0]  %s1, 18432, %s34, [#allocation3], 192, 192, 12
    $region9: #{e4e_forward.1} parent=1 // pred_fallthru
      _
    // Predicated region
    $region10: #{e4e_forward.1} parent=1 // pred_check
      _
    $region11: #{e4e_forward.1} parent=1 // pred_check_branch
      %41 = sbr.rel (0) target = $region13
    $region12: #{e4e_forward.1} parent=1 // pred_region
      %s43 = ssub.s32 48, 48
      %44 = vsyncadd [#allocation6], %s43
      %s46 = sshll.u32 [#allocation5], 4
      %s47 = int_to_ptr.vmem [resolvable:$true] %s46
      %49 = dma.hbm_to_vmem [thread:$0]  %s2, 48, %s47, [#allocation6]
    $region13: #{e4e_forward.1} parent=1 // pred_fallthru
      _
    // Predicated region
    $region14: #{e4e_forward.1} parent=1 // pred_check
      _
    $region15: #{e4e_forward.1} parent=1 // pred_check_branch
      %51 = sbr.rel (0) target = $region17
    $region16: #{e4e_forward.1} parent=1 // pred_region
      %s53 = ssub.s32 12288, 12288
      %54 = vsyncadd [#allocation6], %s53
      %s55 = sshll.u32 [#allocation7], 4
      %s56 = int_to_ptr.vmem [resolvable:$true] %s55
      %61 = dma.hbm_to_vmem [thread:$0]  %s3, 12288, %s56, [#allocation6], 256, 256, 16
    $region17: #{e4e_forward.1} parent=1 // pred_fallthru
      _
    // Predicated region
    $region18: #{e4e_forward.1} parent=1 // pred_check
      _
    $region19: #{e4e_forward.1} parent=1 // pred_check_branch
      %63 = sbr.rel (0) target = $region21
    $region20: #{e4e_forward.1} parent=1 // pred_region
      %s65 = ssub.s32 32, 32
      %66 = vsyncadd [#allocation9], %s65
      %s68 = sshll.u32 [#allocation8], 4
      %s69 = int_to_ptr.vmem [resolvable:$true] %s68
      %71 = dma.hbm_to_vmem [thread:$0]  %s4, 32, %s69, [#allocation9]
    $region21: #{e4e_forward.1} parent=1 // pred_fallthru
      _
    // Predicated region
    $region22: #{e4e_forward.1} parent=1 // pred_check
      _
    $region23: #{e4e_forward.1} parent=1 // pred_check_branch
      %73 = sbr.rel (0) target = $region25
    $region24: #{e4e_forward.1} parent=1 // pred_region
      _
    $region25: #{e4e_forward.1} parent=1 // pred_fallthru
      _
    // Predicated region
    $region26: #{e4e_forward.1} parent=1 // pred_check
      _
    $region27: #{e4e_forward.1} parent=1 // pred_check_branch
      %75 = sbr.rel (0) target = $region29
    $region28: #{e4e_forward.1} parent=1 // pred_region
      _
    $region29: #{e4e_forward.1} parent=1 // pred_fallthru
      _
    // Predicated region
    $region30: #{e4e_forward.1} parent=1 // pred_check
      _
    $region31: #{e4e_forward.1} parent=1 // pred_check_branch
      %77 = sbr.rel (0) target = $region33
    $region32: #{e4e_forward.1} parent=1 // pred_region
      _
    $region33: #{e4e_forward.1} parent=1 // pred_fallthru
      _
    // Predicated region
    $region34: #{e4e_forward.1} parent=1 // pred_check
      _
    $region35: #{e4e_forward.1} parent=1 // pred_check_branch
      %79 = sbr.rel (0) target = $region37
    $region36: #{e4e_forward.1} parent=1 // pred_region
      _
    $region37: #{e4e_forward.1} parent=1 // pred_fallthru
      _
    // Predicated region
    $region38: #{e4e_forward.1} parent=1 // pred_check
      _
    $region39: #{e4e_forward.1} parent=1 // pred_check_branch
      %81 = sbr.rel (0) target = $region41
    $region40: #{e4e_forward.1} parent=1 // pred_region
      _
    $region41: #{e4e_forward.1} parent=1 // pred_fallthru
      _
    // Predicated region
    $region42: #{e4e_forward.1} parent=1 // pred_check
      _
    $region43: #{e4e_forward.1} parent=1 // pred_check_branch
      %83 = sbr.rel (0) target = $region45
    $region44: #{e4e_forward.1} parent=1 // pred_region
      _
    $region45: #{e4e_forward.1} parent=1 // pred_fallthru
      _
    // Predicated region
    $region46: #{e4e_forward.1} parent=1 // pred_check
      _
    $region47: #{e4e_forward.1} parent=1 // pred_check_branch
      %85 = sbr.rel (0) target = $region49
    $region48: #{e4e_forward.1} parent=1 // pred_region
      _
    $region49: #{e4e_forward.1} parent=1 // pred_fallthru
      _
    // Predicated region
    $region50: #{e4e_forward.1} parent=1 // pred_check
      _
    $region51: #{e4e_forward.1} parent=1 // pred_check_branch
      %87 = sbr.rel (0) target = $region53
    $region52: #{e4e_forward.1} parent=1 // pred_region
      _
    $region53: #{e4e_forward.1} parent=1 // pred_fallthru
      _
    // Predicated region
    $region54: #{e4e_forward.1} parent=1 // pred_check
      _
    $region55: #{e4e_forward.1} parent=1 // pred_check_branch
      %89 = sbr.rel (0) target = $region57
    $region56: #{e4e_forward.1} parent=1 // pred_region
      _
    $region57: #{e4e_forward.1} parent=1 // pred_fallthru
      _
    // Predicated region
    $region58: #{e4e_forward.1} parent=1 // pred_check
      _
    $region59: #{e4e_forward.1} parent=1 // pred_check_branch
      %91 = sbr.rel (0) target = $region61
    $region60: #{e4e_forward.1} parent=1 // pred_region
      _
    $region61: #{e4e_forward.1} parent=1 // pred_fallthru
      _
    // Predicated region
    $region62: #{e4e_forward.1} parent=1 // pred_check
      _
    $region63: #{e4e_forward.1} parent=1 // pred_check_branch
      %93 = sbr.rel (0) target = $region65
    $region64: #{e4e_forward.1} parent=1 // pred_region
      %94 = dma.done [#allocation3], 18432
    $region65: #{e4e_forward.1} parent=1 // pred_fallthru
      _
    // Predicated region
    $region66: #{e4e_forward.1} parent=1 // pred_check
      _
    $region67: #{e4e_forward.1} parent=1 // pred_check_branch
      %96 = sbr.rel (0) target = $region69
    $region68: #{e4e_forward.1} parent=1 // pred_region
      %97 = dma.done [#allocation6], 48
    $region69: #{e4e_forward.1} parent=1 // pred_fallthru
      _
    // Predicated region
    $region70: #{e4e_forward.1} parent=1 // pred_check
      _
    $region71: #{e4e_forward.1} parent=1 // pred_check_branch
      %99 = sbr.rel (0) target = $region73
    $region72: #{e4e_forward.1} parent=1 // pred_region
      %100 = dma.done [#allocation6], 12288
    $region73: #{e4e_forward.1} parent=1 // pred_fallthru
      _
    // Predicated region
    $region74: #{e4e_forward.1} parent=1 // pred_check
      _
    $region75: #{e4e_forward.1} parent=1 // pred_check_branch
      %102 = sbr.rel (0) target = $region77
    $region76: #{e4e_forward.1} parent=1 // pred_region
      %103 = dma.done [#allocation9], 32
    $region77: #{e4e_forward.1} parent=1 // pred_fallthru
      _
    %v105 = vld [vmem:[%s0] sm:$0x3f]
    %v106 = vld [vmem:[#allocation2] sm:$0xff]
    %v107 = vld [vmem:[#allocation2 + $0x8] sm:$0xf]
    %v108 = vld [vmem:[#allocation2 + $0xc] sm:$0xff]
    %v109 = vld [vmem:[#allocation2 + $0x14] sm:$0xf]
    %v110 = vld [vmem:[#allocation2 + $0x18] sm:$0xff]
    %v111 = vld [vmem:[#allocation2 + $0x20] sm:$0xf]
    %v112 = vld [vmem:[#allocation2 + $0x24] sm:$0xff]
    %v113 = vld [vmem:[#allocation2 + $0x2c] sm:$0xf]
    %v114 = vld [vmem:[#allocation2 + $0x30] sm:$0xff]
    %v115 = vld [vmem:[#allocation2 + $0x38] sm:$0xf]
    %v116 = vld [vmem:[#allocation2 + $0x3c] sm:$0xff]
    %v117 = vld [vmem:[#allocation2 + $0x44] sm:$0xf]
    %v118 = vld [vmem:[#allocation2 + $0x48] sm:$0xff]
    %v119 = vld [vmem:[#allocation2 + $0x50] sm:$0xf]
    %v120 = vld [vmem:[#allocation2 + $0x54] sm:$0xff]
    %v121 = vld [vmem:[#allocation2 + $0x5c] sm:$0xf]
    %v122 = vld [vmem:[#allocation2 + $0x60] sm:$0xff]
    %v123 = vld [vmem:[#allocation2 + $0x68] sm:$0xf]
    %v124 = vld [vmem:[#allocation2 + $0x6c] sm:$0xff]
    %v125 = vld [vmem:[#allocation2 + $0x74] sm:$0xf]
    %v126 = vld [vmem:[#allocation2 + $0x78] sm:$0xff]
    %v127 = vld [vmem:[#allocation2 + $0x80] sm:$0xf]
    %v128 = vld [vmem:[#allocation2 + $0x84] sm:$0xff]
    %v129 = vld [vmem:[#allocation2 + $0x8c] sm:$0xf]
    %v130 = vld [vmem:[#allocation2 + $0x90] sm:$0xff]
    %v131 = vld [vmem:[#allocation2 + $0x98] sm:$0xf]
    %v132 = vld [vmem:[#allocation2 + $0x9c] sm:$0xff]
    %v133 = vld [vmem:[#allocation2 + $0xa4] sm:$0xf]
    %v134 = vld [vmem:[#allocation2 + $0xa8] sm:$0xff]
    %v135 = vld [vmem:[#allocation2 + $0xb0] sm:$0xf]
    %v136 = vld [vmem:[#allocation2 + $0xb4] sm:$0xff]
    %v137 = vld [vmem:[#allocation2 + $0xbc] sm:$0xf]
    %v138 = vld [vmem:[#allocation2 + $0xc0] sm:$0xff]
    %v139 = vld [vmem:[#allocation2 + $0xc8] sm:$0xf]
    %v140 = vld [vmem:[#allocation2 + $0xcc] sm:$0xff]
    %v141 = vld [vmem:[#allocation2 + $0xd4] sm:$0xf]
    %v142 = vld [vmem:[#allocation2 + $0xd8] sm:$0xff]
    %v143 = vld [vmem:[#allocation2 + $0xe0] sm:$0xf]
    %v144 = vld [vmem:[#allocation2 + $0xe4] sm:$0xff]
    %v145 = vld [vmem:[#allocation2 + $0xec] sm:$0xf]
    %v146 = vld [vmem:[#allocation2 + $0xf0] sm:$0xff]
    %v147 = vld [vmem:[#allocation2 + $0xf8] sm:$0xf]
    %v148 = vld [vmem:[#allocation2 + $0xfc] sm:$0xff]
    %v149 = vld [vmem:[#allocation2 + $0x104] sm:$0xf]
    %v150 = vld [vmem:[#allocation2 + $0x108] sm:$0xff]
    %v151 = vld [vmem:[#allocation2 + $0x110] sm:$0xf]
    %v152 = vld [vmem:[#allocation2 + $0x114] sm:$0xff]
    %v153 = vld [vmem:[#allocation2 + $0x11c] sm:$0xf]
    %v154 = vld [vmem:[#allocation2 + $0x120] sm:$0xff]
    %v155 = vld [vmem:[#allocation2 + $0x128] sm:$0xf]
    %v156 = vld [vmem:[#allocation2 + $0x12c] sm:$0xff]
    %v157 = vld [vmem:[#allocation2 + $0x134] sm:$0xf]
    %v158 = vld [vmem:[#allocation2 + $0x138] sm:$0xff]
    %v159 = vld [vmem:[#allocation2 + $0x140] sm:$0xf]
    %v160 = vld [vmem:[#allocation2 + $0x144] sm:$0xff]
    %v161 = vld [vmem:[#allocation2 + $0x14c] sm:$0xf]
    %v162 = vld [vmem:[#allocation2 + $0x150] sm:$0xff]
    %v163 = vld [vmem:[#allocation2 + $0x158] sm:$0xf]
    %v164 = vld [vmem:[#allocation2 + $0x15c] sm:$0xff]
    %v165 = vld [vmem:[#allocation2 + $0x164] sm:$0xf]
    %v166 = vld [vmem:[#allocation2 + $0x168] sm:$0xff]
    %v167 = vld [vmem:[#allocation2 + $0x170] sm:$0xf]
    %v168 = vld [vmem:[#allocation2 + $0x174] sm:$0xff]
    %v169 = vld [vmem:[#allocation2 + $0x17c] sm:$0xf]
    %v170 = vld [vmem:[#allocation2 + $0x180] sm:$0xff]
    %v171 = vld [vmem:[#allocation2 + $0x188] sm:$0xf]
    %v172 = vld [vmem:[#allocation2 + $0x18c] sm:$0xff]
    %v173 = vld [vmem:[#allocation2 + $0x194] sm:$0xf]
    %v174 = vld [vmem:[#allocation2 + $0x198] sm:$0xff]
    %v175 = vld [vmem:[#allocation2 + $0x1a0] sm:$0xf]
    %v176 = vld [vmem:[#allocation2 + $0x1a4] sm:$0xff]
    %v177 = vld [vmem:[#allocation2 + $0x1ac] sm:$0xf]
    %v178 = vld [vmem:[#allocation2 + $0x1b0] sm:$0xff]
    %v179 = vld [vmem:[#allocation2 + $0x1b8] sm:$0xf]
    %v180 = vld [vmem:[#allocation2 + $0x1bc] sm:$0xff]
    %v181 = vld [vmem:[#allocation2 + $0x1c4] sm:$0xf]
    %v182 = vld [vmem:[#allocation2 + $0x1c8] sm:$0xff]
    %v183 = vld [vmem:[#allocation2 + $0x1d0] sm:$0xf]
    %v184 = vld [vmem:[#allocation2 + $0x1d4] sm:$0xff]
    %v185 = vld [vmem:[#allocation2 + $0x1dc] sm:$0xf]
    %v186 = vld [vmem:[#allocation2 + $0x1e0] sm:$0xff]
    %v187 = vld [vmem:[#allocation2 + $0x1e8] sm:$0xf]
    %v188 = vld [vmem:[#allocation2 + $0x1ec] sm:$0xff]
    %v189 = vld [vmem:[#allocation2 + $0x1f4] sm:$0xf]
    %v190 = vld [vmem:[#allocation2 + $0x1f8] sm:$0xff]
    %v191 = vld [vmem:[#allocation2 + $0x200] sm:$0xf]
    %v192 = vld [vmem:[#allocation2 + $0x204] sm:$0xff]
    %v193 = vld [vmem:[#allocation2 + $0x20c] sm:$0xf]
    %v194 = vld [vmem:[#allocation2 + $0x210] sm:$0xff]
    %v195 = vld [vmem:[#allocation2 + $0x218] sm:$0xf]
    %v196 = vld [vmem:[#allocation2 + $0x21c] sm:$0xff]
    %v197 = vld [vmem:[#allocation2 + $0x224] sm:$0xf]
    %v198 = vld [vmem:[#allocation2 + $0x228] sm:$0xff]
    %v199 = vld [vmem:[#allocation2 + $0x230] sm:$0xf]
    %v200 = vld [vmem:[#allocation2 + $0x234] sm:$0xff]
    %v201 = vld [vmem:[#allocation2 + $0x23c] sm:$0xf]
    %v202 = vld [vmem:[#allocation2 + $0x240] sm:$0xff]
    %v203 = vld [vmem:[#allocation2 + $0x248] sm:$0xf]
    %v204 = vld [vmem:[#allocation2 + $0x24c] sm:$0xff]
    %v205 = vld [vmem:[#allocation2 + $0x254] sm:$0xf]
    %v206 = vld [vmem:[#allocation2 + $0x258] sm:$0xff]
    %v207 = vld [vmem:[#allocation2 + $0x260] sm:$0xf]
    %v208 = vld [vmem:[#allocation2 + $0x264] sm:$0xff]
    %v209 = vld [vmem:[#allocation2 + $0x26c] sm:$0xf]
    %v210 = vld [vmem:[#allocation2 + $0x270] sm:$0xff]
    %v211 = vld [vmem:[#allocation2 + $0x278] sm:$0xf]
    %v212 = vld [vmem:[#allocation2 + $0x27c] sm:$0xff]
    %v213 = vld [vmem:[#allocation2 + $0x284] sm:$0xf]
    %v214 = vld [vmem:[#allocation2 + $0x288] sm:$0xff]
    %v215 = vld [vmem:[#allocation2 + $0x290] sm:$0xf]
    %v216 = vld [vmem:[#allocation2 + $0x294] sm:$0xff]
    %v217 = vld [vmem:[#allocation2 + $0x29c] sm:$0xf]
    %v218 = vld [vmem:[#allocation2 + $0x2a0] sm:$0xff]
    %v219 = vld [vmem:[#allocation2 + $0x2a8] sm:$0xf]
    %v220 = vld [vmem:[#allocation2 + $0x2ac] sm:$0xff]
    %v221 = vld [vmem:[#allocation2 + $0x2b4] sm:$0xf]
    %v222 = vld [vmem:[#allocation2 + $0x2b8] sm:$0xff]
    %v223 = vld [vmem:[#allocation2 + $0x2c0] sm:$0xf]
    %v224 = vld [vmem:[#allocation2 + $0x2c4] sm:$0xff]
    %v225 = vld [vmem:[#allocation2 + $0x2cc] sm:$0xf]
    %v226 = vld [vmem:[#allocation2 + $0x2d0] sm:$0xff]
    %v227 = vld [vmem:[#allocation2 + $0x2d8] sm:$0xf]
    %v228 = vld [vmem:[#allocation2 + $0x2dc] sm:$0xff]
    %v229 = vld [vmem:[#allocation2 + $0x2e4] sm:$0xf]
    %v230 = vld [vmem:[#allocation2 + $0x2e8] sm:$0xff]
    %v231 = vld [vmem:[#allocation2 + $0x2f0] sm:$0xf]
    %v232 = vld [vmem:[#allocation2 + $0x2f4] sm:$0xff]
    %v233 = vld [vmem:[#allocation2 + $0x2fc] sm:$0xf]
    %v234 = vld [vmem:[#allocation2 + $0x300] sm:$0xff]
    %v235 = vld [vmem:[#allocation2 + $0x308] sm:$0xf]
    %v236 = vld [vmem:[#allocation2 + $0x30c] sm:$0xff]
    %v237 = vld [vmem:[#allocation2 + $0x314] sm:$0xf]
    %v238 = vld [vmem:[#allocation2 + $0x318] sm:$0xff]
    %v239 = vld [vmem:[#allocation2 + $0x320] sm:$0xf]
    %v240 = vld [vmem:[#allocation2 + $0x324] sm:$0xff]
    %v241 = vld [vmem:[#allocation2 + $0x32c] sm:$0xf]
    %v242 = vld [vmem:[#allocation2 + $0x330] sm:$0xff]
    %v243 = vld [vmem:[#allocation2 + $0x338] sm:$0xf]
    %v244 = vld [vmem:[#allocation2 + $0x33c] sm:$0xff]
    %v245 = vld [vmem:[#allocation2 + $0x344] sm:$0xf]
    %v246 = vld [vmem:[#allocation2 + $0x348] sm:$0xff]
    %v247 = vld [vmem:[#allocation2 + $0x350] sm:$0xf]
    %v248 = vld [vmem:[#allocation2 + $0x354] sm:$0xff]
    %v249 = vld [vmem:[#allocation2 + $0x35c] sm:$0xf]
    %v250 = vld [vmem:[#allocation2 + $0x360] sm:$0xff]
    %v251 = vld [vmem:[#allocation2 + $0x368] sm:$0xf]
    %v252 = vld [vmem:[#allocation2 + $0x36c] sm:$0xff]
    %v253 = vld [vmem:[#allocation2 + $0x374] sm:$0xf]
    %v254 = vld [vmem:[#allocation2 + $0x378] sm:$0xff]
    %v255 = vld [vmem:[#allocation2 + $0x380] sm:$0xf]
    %v256 = vld [vmem:[#allocation2 + $0x384] sm:$0xff]
    %v257 = vld [vmem:[#allocation2 + $0x38c] sm:$0xf]
    %v258 = vld [vmem:[#allocation2 + $0x390] sm:$0xff]
    %v259 = vld [vmem:[#allocation2 + $0x398] sm:$0xf]
    %v260 = vld [vmem:[#allocation2 + $0x39c] sm:$0xff]
    %v261 = vld [vmem:[#allocation2 + $0x3a4] sm:$0xf]
    %v262 = vld [vmem:[#allocation2 + $0x3a8] sm:$0xff]
    %v263 = vld [vmem:[#allocation2 + $0x3b0] sm:$0xf]
    %v264 = vld [vmem:[#allocation2 + $0x3b4] sm:$0xff]
    %v265 = vld [vmem:[#allocation2 + $0x3bc] sm:$0xf]
    %v266 = vld [vmem:[#allocation2 + $0x3c0] sm:$0xff]
    %v267 = vld [vmem:[#allocation2 + $0x3c8] sm:$0xf]
    %v268 = vld [vmem:[#allocation2 + $0x3cc] sm:$0xff]
    %v269 = vld [vmem:[#allocation2 + $0x3d4] sm:$0xf]
    %v270 = vld [vmem:[#allocation2 + $0x3d8] sm:$0xff]
    %v271 = vld [vmem:[#allocation2 + $0x3e0] sm:$0xf]
    %v272 = vld [vmem:[#allocation2 + $0x3e4] sm:$0xff]
    %v273 = vld [vmem:[#allocation2 + $0x3ec] sm:$0xf]
    %v274 = vld [vmem:[#allocation2 + $0x3f0] sm:$0xff]
    %v275 = vld [vmem:[#allocation2 + $0x3f8] sm:$0xf]
    %v276 = vld [vmem:[#allocation2 + $0x3fc] sm:$0xff]
    %v277 = vld [vmem:[#allocation2 + $0x404] sm:$0xf]
    %v278 = vld [vmem:[#allocation2 + $0x408] sm:$0xff]
    %v279 = vld [vmem:[#allocation2 + $0x410] sm:$0xf]
    %v280 = vld [vmem:[#allocation2 + $0x414] sm:$0xff]
    %v281 = vld [vmem:[#allocation2 + $0x41c] sm:$0xf]
    %v282 = vld [vmem:[#allocation2 + $0x420] sm:$0xff]
    %v283 = vld [vmem:[#allocation2 + $0x428] sm:$0xf]
    %v284 = vld [vmem:[#allocation2 + $0x42c] sm:$0xff]
    %v285 = vld [vmem:[#allocation2 + $0x434] sm:$0xf]
    %v286 = vld [vmem:[#allocation2 + $0x438] sm:$0xff]
    %v287 = vld [vmem:[#allocation2 + $0x440] sm:$0xf]
    %v288 = vld [vmem:[#allocation2 + $0x444] sm:$0xff]
    %v289 = vld [vmem:[#allocation2 + $0x44c] sm:$0xf]
    %v290 = vld [vmem:[#allocation2 + $0x450] sm:$0xff]
    %v291 = vld [vmem:[#allocation2 + $0x458] sm:$0xf]
    %v292 = vld [vmem:[#allocation2 + $0x45c] sm:$0xff]
    %v293 = vld [vmem:[#allocation2 + $0x464] sm:$0xf]
    %v294 = vld [vmem:[#allocation2 + $0x468] sm:$0xff]
    %v295 = vld [vmem:[#allocation2 + $0x470] sm:$0xf]
    %v296 = vld [vmem:[#allocation2 + $0x474] sm:$0xff]
    %v297 = vld [vmem:[#allocation2 + $0x47c] sm:$0xf]
    %v298 = vld [vmem:[#allocation5] sm:$0x7]
    %v300 = vlaneseq
    %v301 = vshrl.u32 %v300, 7
    %v302 = vsub.s32 0, %v301
    %v303 = vrot.slane %v298, %v302
    %v304 = vlaneseq
    %v305 = vshrl.u32 %v304, 7
    %v306 = vsub.s32 1, %v305
    %v307 = vrot.slane %v298, %v306
    %v308 = vlaneseq
    %v309 = vshrl.u32 %v308, 7
    %v310 = vsub.s32 2, %v309
    %v311 = vrot.slane %v298, %v310
    %v316 = vcombine.high %v105, %v105
    %v318 = vunpack.c.l.s4 1966171168
    %v319 = vunpack.c.0.s8 %v318
    %v320 = vlaneseq
    %v321 = vshrl.u32 %v320, 7
    %v322 = vsub.s32 %v319, %v321
    %v323 = vrot.slane %v105, %v322
    %v325 = vunpack.c.l.s4 1966171168
    %v326 = vunpack.c.0.s8 %v325
    %v327 = vlaneseq
    %v328 = vshrl.u32 %v327, 7
    %v329 = vsub.s32 %v326, %v328
    %v330 = vrot.slane %v316, %v329
    %v331 = vcombine.high %v323, %v323
    %v332 = vcombine.high %v330, %v330
    %v334 = vunpack.c.l.s4 1966171168
    %v335 = vunpack.c.0.s8 %v334
    %v336 = vlaneseq
    %v337 = vshrl.u32 %v336, 7
    %v338 = vsub.s32 %v335, %v337
    %v339 = vrot.slane %v323, %v338
    %v341 = vunpack.c.l.s4 1966171168
    %v342 = vunpack.c.0.s8 %v341
    %v343 = vlaneseq
    %v344 = vshrl.u32 %v343, 7
    %v345 = vsub.s32 %v342, %v344
    %v346 = vrot.slane %v330, %v345
    %v348 = vunpack.c.l.s4 1966171168
    %v349 = vunpack.c.0.s8 %v348
    %v350 = vlaneseq
    %v351 = vshrl.u32 %v350, 7
    %v352 = vsub.s32 %v349, %v351
    %v353 = vrot.slane %v331, %v352
    %v355 = vunpack.c.l.s4 1966171168
    %v356 = vunpack.c.0.s8 %v355
    %v357 = vlaneseq
    %v358 = vshrl.u32 %v357, 7
    %v359 = vsub.s32 %v356, %v358
    %v360 = vrot.slane %v332, %v359
    %v361 = vcombine.high %v339, %v339
    %v362 = vcombine.high %v353, %v353
    %v561 = vunpack.c.l.b16 %v106
    %v562 = vunpack.c.h.b16 %v106
    %v563 = vunpack.c.l.b16 %v107
    %v564 = vunpack.c.l.b16 %v108
    %v565 = vunpack.c.h.b16 %v108
    %v566 = vunpack.c.l.b16 %v109
    %v567 = vunpack.c.l.b16 %v110
    %v568 = vunpack.c.h.b16 %v110
    %v569 = vunpack.c.l.b16 %v111
    %v570 = vunpack.c.l.b16 %v112
    %v571 = vunpack.c.h.b16 %v112
    %v572 = vunpack.c.l.b16 %v113
    %v573 = vunpack.c.l.b16 %v114
    %v574 = vunpack.c.h.b16 %v114
    %v575 = vunpack.c.l.b16 %v115
    %v576 = vunpack.c.l.b16 %v116
    %v577 = vunpack.c.h.b16 %v116
    %v578 = vunpack.c.l.b16 %v117
    %v579 = vunpack.c.l.b16 %v118
    %v580 = vunpack.c.h.b16 %v118
    %v581 = vunpack.c.l.b16 %v119
    %v582 = vunpack.c.l.b16 %v120
    %v583 = vunpack.c.h.b16 %v120
    %v584 = vunpack.c.l.b16 %v121
    %v585 = vunpack.c.l.b16 %v122
    %v586 = vunpack.c.h.b16 %v122
    %v587 = vunpack.c.l.b16 %v123
    %v588 = vunpack.c.l.b16 %v124
    %v589 = vunpack.c.h.b16 %v124
    %v590 = vunpack.c.l.b16 %v125
    %v591 = vunpack.c.l.b16 %v126
    %v592 = vunpack.c.h.b16 %v126
    %v593 = vunpack.c.l.b16 %v127
    %v594 = vunpack.c.l.b16 %v128
    %v595 = vunpack.c.h.b16 %v128
    %v596 = vunpack.c.l.b16 %v129
    %v597 = vunpack.c.l.b16 %v130
    %v598 = vunpack.c.h.b16 %v130
    %v599 = vunpack.c.l.b16 %v131
    %v600 = vunpack.c.l.b16 %v132
    %v601 = vunpack.c.h.b16 %v132
    %v602 = vunpack.c.l.b16 %v133
    %v603 = vunpack.c.l.b16 %v134
    %v604 = vunpack.c.h.b16 %v134
    %v605 = vunpack.c.l.b16 %v135
    %v606 = vunpack.c.l.b16 %v136
    %v607 = vunpack.c.h.b16 %v136
    %v608 = vunpack.c.l.b16 %v137
    %v609 = vunpack.c.l.b16 %v138
    %v610 = vunpack.c.h.b16 %v138
    %v611 = vunpack.c.l.b16 %v139
    %v612 = vunpack.c.l.b16 %v140
    %v613 = vunpack.c.h.b16 %v140
    %v614 = vunpack.c.l.b16 %v141
    %v615 = vunpack.c.l.b16 %v142
    %v616 = vunpack.c.h.b16 %v142
    %v617 = vunpack.c.l.b16 %v143
    %v618 = vunpack.c.l.b16 %v144
    %v619 = vunpack.c.h.b16 %v144
    %v620 = vunpack.c.l.b16 %v145
    %v621 = vunpack.c.l.b16 %v146
    %v622 = vunpack.c.h.b16 %v146
    %v623 = vunpack.c.l.b16 %v147
    %v624 = vunpack.c.l.b16 %v148
    %v625 = vunpack.c.h.b16 %v148
    %v626 = vunpack.c.l.b16 %v149
    %v627 = vunpack.c.l.b16 %v150
    %v628 = vunpack.c.h.b16 %v150
    %v629 = vunpack.c.l.b16 %v151
    %v630 = vunpack.c.l.b16 %v152
    %v631 = vunpack.c.h.b16 %v152
    %v632 = vunpack.c.l.b16 %v153
    %v633 = vunpack.c.l.b16 %v154
    %v634 = vunpack.c.h.b16 %v154
    %v635 = vunpack.c.l.b16 %v155
    %v636 = vunpack.c.l.b16 %v156
    %v637 = vunpack.c.h.b16 %v156
    %v638 = vunpack.c.l.b16 %v157
    %v639 = vunpack.c.l.b16 %v158
    %v640 = vunpack.c.h.b16 %v158
    %v641 = vunpack.c.l.b16 %v159
    %v642 = vunpack.c.l.b16 %v160
    %v643 = vunpack.c.h.b16 %v160
    %v644 = vunpack.c.l.b16 %v161
    %v645 = vunpack.c.l.b16 %v162
    %v646 = vunpack.c.h.b16 %v162
    %v647 = vunpack.c.l.b16 %v163
    %v648 = vunpack.c.l.b16 %v164
    %v649 = vunpack.c.h.b16 %v164
    %v650 = vunpack.c.l.b16 %v165
    %v651 = vunpack.c.l.b16 %v166
    %v652 = vunpack.c.h.b16 %v166
    %v653 = vunpack.c.l.b16 %v167
    %v654 = vunpack.c.l.b16 %v168
    %v655 = vunpack.c.h.b16 %v168
    %v656 = vunpack.c.l.b16 %v169
    %v657 = vunpack.c.l.b16 %v170
    %v658 = vunpack.c.h.b16 %v170
    %v659 = vunpack.c.l.b16 %v171
    %v660 = vunpack.c.l.b16 %v172
    %v661 = vunpack.c.h.b16 %v172
    %v662 = vunpack.c.l.b16 %v173
    %v663 = vunpack.c.l.b16 %v174
    %v664 = vunpack.c.h.b16 %v174
    %v665 = vunpack.c.l.b16 %v175
    %v666 = vunpack.c.l.b16 %v176
    %v667 = vunpack.c.h.b16 %v176
    %v668 = vunpack.c.l.b16 %v177
    %v669 = vunpack.c.l.b16 %v178
    %v670 = vunpack.c.h.b16 %v178
    %v671 = vunpack.c.l.b16 %v179
    %v672 = vunpack.c.l.b16 %v180
    %v673 = vunpack.c.h.b16 %v180
    %v674 = vunpack.c.l.b16 %v181
    %v675 = vunpack.c.l.b16 %v182
    %v676 = vunpack.c.h.b16 %v182
    %v677 = vunpack.c.l.b16 %v183
    %v678 = vunpack.c.l.b16 %v184
    %v679 = vunpack.c.h.b16 %v184
    %v680 = vunpack.c.l.b16 %v185
    %v681 = vunpack.c.l.b16 %v186
    %v682 = vunpack.c.h.b16 %v186
    %v683 = vunpack.c.l.b16 %v187
    %v684 = vunpack.c.l.b16 %v188
    %v685 = vunpack.c.h.b16 %v188
    %v686 = vunpack.c.l.b16 %v189
    %v687 = vunpack.c.l.b16 %v190
    %v688 = vunpack.c.h.b16 %v190
    %v689 = vunpack.c.l.b16 %v191
    %v690 = vunpack.c.l.b16 %v192
    %v691 = vunpack.c.h.b16 %v192
    %v692 = vunpack.c.l.b16 %v193
    %v693 = vunpack.c.l.b16 %v194
    %v694 = vunpack.c.h.b16 %v194
    %v695 = vunpack.c.l.b16 %v195
    %v696 = vunpack.c.l.b16 %v196
    %v697 = vunpack.c.h.b16 %v196
    %v698 = vunpack.c.l.b16 %v197
    %v699 = vunpack.c.l.b16 %v198
    %v700 = vunpack.c.h.b16 %v198
    %v701 = vunpack.c.l.b16 %v199
    %v702 = vunpack.c.l.b16 %v200
    %v703 = vunpack.c.h.b16 %v200
    %v704 = vunpack.c.l.b16 %v201
    %v705 = vunpack.c.l.b16 %v202
    %v706 = vunpack.c.h.b16 %v202
    %v707 = vunpack.c.l.b16 %v203
    %v708 = vunpack.c.l.b16 %v204
    %v709 = vunpack.c.h.b16 %v204
    %v710 = vunpack.c.l.b16 %v205
    %v711 = vunpack.c.l.b16 %v206
    %v712 = vunpack.c.h.b16 %v206
    %v713 = vunpack.c.l.b16 %v207
    %v714 = vunpack.c.l.b16 %v208
    %v715 = vunpack.c.h.b16 %v208
    %v716 = vunpack.c.l.b16 %v209
    %v717 = vunpack.c.l.b16 %v210
    %v718 = vunpack.c.h.b16 %v210
    %v719 = vunpack.c.l.b16 %v211
    %v720 = vunpack.c.l.b16 %v212
    %v721 = vunpack.c.h.b16 %v212
    %v722 = vunpack.c.l.b16 %v213
    %v723 = vunpack.c.l.b16 %v214
    %v724 = vunpack.c.h.b16 %v214
    %v725 = vunpack.c.l.b16 %v215
    %v726 = vunpack.c.l.b16 %v216
    %v727 = vunpack.c.h.b16 %v216
    %v728 = vunpack.c.l.b16 %v217
    %v729 = vunpack.c.l.b16 %v218
    %v730 = vunpack.c.h.b16 %v218
    %v731 = vunpack.c.l.b16 %v219
    %v732 = vunpack.c.l.b16 %v220
    %v733 = vunpack.c.h.b16 %v220
    %v734 = vunpack.c.l.b16 %v221
    %v735 = vunpack.c.l.b16 %v222
    %v736 = vunpack.c.h.b16 %v222
    %v737 = vunpack.c.l.b16 %v223
    %v738 = vunpack.c.l.b16 %v224
    %v739 = vunpack.c.h.b16 %v224
    %v740 = vunpack.c.l.b16 %v225
    %v741 = vunpack.c.l.b16 %v226
    %v742 = vunpack.c.h.b16 %v226
    %v743 = vunpack.c.l.b16 %v227
    %v744 = vunpack.c.l.b16 %v228
    %v745 = vunpack.c.h.b16 %v228
    %v746 = vunpack.c.l.b16 %v229
    %v747 = vunpack.c.l.b16 %v230
    %v748 = vunpack.c.h.b16 %v230
    %v749 = vunpack.c.l.b16 %v231
    %v750 = vunpack.c.l.b16 %v232
    %v751 = vunpack.c.h.b16 %v232
    %v752 = vunpack.c.l.b16 %v233
    %v753 = vunpack.c.l.b16 %v234
    %v754 = vunpack.c.h.b16 %v234
    %v755 = vunpack.c.l.b16 %v235
    %v756 = vunpack.c.l.b16 %v236
    %v757 = vunpack.c.h.b16 %v236
    %v758 = vunpack.c.l.b16 %v237
    %v759 = vunpack.c.l.b16 %v238
    %v760 = vunpack.c.h.b16 %v238
    %v761 = vunpack.c.l.b16 %v239
    %v762 = vunpack.c.l.b16 %v240
    %v763 = vunpack.c.h.b16 %v240
    %v764 = vunpack.c.l.b16 %v241
    %v765 = vunpack.c.l.b16 %v242
    %v766 = vunpack.c.h.b16 %v242
    %v767 = vunpack.c.l.b16 %v243
    %v768 = vunpack.c.l.b16 %v244
    %v769 = vunpack.c.h.b16 %v244
    %v770 = vunpack.c.l.b16 %v245
    %v771 = vunpack.c.l.b16 %v246
    %v772 = vunpack.c.h.b16 %v246
    %v773 = vunpack.c.l.b16 %v247
    %v774 = vunpack.c.l.b16 %v248
    %v775 = vunpack.c.h.b16 %v248
    %v776 = vunpack.c.l.b16 %v249
    %v777 = vunpack.c.l.b16 %v250
    %v778 = vunpack.c.h.b16 %v250
    %v779 = vunpack.c.l.b16 %v251
    %v780 = vunpack.c.l.b16 %v252
    %v781 = vunpack.c.h.b16 %v252
    %v782 = vunpack.c.l.b16 %v253
    %v783 = vunpack.c.l.b16 %v254
    %v784 = vunpack.c.h.b16 %v254
    %v785 = vunpack.c.l.b16 %v255
    %v786 = vunpack.c.l.b16 %v256
    %v787 = vunpack.c.h.b16 %v256
    %v788 = vunpack.c.l.b16 %v257
    %v789 = vunpack.c.l.b16 %v258
    %v790 = vunpack.c.h.b16 %v258
    %v791 = vunpack.c.l.b16 %v259
    %v792 = vunpack.c.l.b16 %v260
    %v793 = vunpack.c.h.b16 %v260
    %v794 = vunpack.c.l.b16 %v261
    %v795 = vunpack.c.l.b16 %v262
    %v796 = vunpack.c.h.b16 %v262
    %v797 = vunpack.c.l.b16 %v263
    %v798 = vunpack.c.l.b16 %v264
    %v799 = vunpack.c.h.b16 %v264
    %v800 = vunpack.c.l.b16 %v265
    %v801 = vunpack.c.l.b16 %v266
    %v802 = vunpack.c.h.b16 %v266
    %v803 = vunpack.c.l.b16 %v267
    %v804 = vunpack.c.l.b16 %v268
    %v805 = vunpack.c.h.b16 %v268
    %v806 = vunpack.c.l.b16 %v269
    %v807 = vunpack.c.l.b16 %v270
    %v808 = vunpack.c.h.b16 %v270
    %v809 = vunpack.c.l.b16 %v271
    %v810 = vunpack.c.l.b16 %v272
    %v811 = vunpack.c.h.b16 %v272
    %v812 = vunpack.c.l.b16 %v273
    %v813 = vunpack.c.l.b16 %v274
    %v814 = vunpack.c.h.b16 %v274
    %v815 = vunpack.c.l.b16 %v275
    %v816 = vunpack.c.l.b16 %v276
    %v817 = vunpack.c.h.b16 %v276
    %v818 = vunpack.c.l.b16 %v277
    %v819 = vunpack.c.l.b16 %v278
    %v820 = vunpack.c.h.b16 %v278
    %v821 = vunpack.c.l.b16 %v279
    %v822 = vunpack.c.l.b16 %v280
    %v823 = vunpack.c.h.b16 %v280
    %v824 = vunpack.c.l.b16 %v281
    %v825 = vunpack.c.l.b16 %v282
    %v826 = vunpack.c.h.b16 %v282
    %v827 = vunpack.c.l.b16 %v283
    %v828 = vunpack.c.l.b16 %v284
    %v829 = vunpack.c.h.b16 %v284
    %v830 = vunpack.c.l.b16 %v285
    %v831 = vunpack.c.l.b16 %v286
    %v832 = vunpack.c.h.b16 %v286
    %v833 = vunpack.c.l.b16 %v287
    %v834 = vunpack.c.l.b16 %v288
    %v835 = vunpack.c.h.b16 %v288
    %v836 = vunpack.c.l.b16 %v289
    %v837 = vunpack.c.l.b16 %v290
    %v838 = vunpack.c.h.b16 %v290
    %v839 = vunpack.c.l.b16 %v291
    %v840 = vunpack.c.l.b16 %v292
    %v841 = vunpack.c.h.b16 %v292
    %v842 = vunpack.c.l.b16 %v293
    %v843 = vunpack.c.l.b16 %v294
    %v844 = vunpack.c.h.b16 %v294
    %v845 = vunpack.c.l.b16 %v295
    %v846 = vunpack.c.l.b16 %v296
    %v847 = vunpack.c.h.b16 %v296
    %v848 = vunpack.c.l.b16 %v297
    %v849 = vpack.c.b16 %v564, %v561
    %v850 = vpack.c.b16 %v565, %v562
    %v851 = vpack.c.b16 %v566, %v563
    %v852 = vpack.c.b16 %v570, %v567
    %v853 = vpack.c.b16 %v571, %v568
    %v854 = vpack.c.b16 %v572, %v569
    %v855 = vpack.c.b16 %v576, %v573
    %v856 = vpack.c.b16 %v577, %v574
    %v857 = vpack.c.b16 %v578, %v575
    %v858 = vpack.c.b16 %v582, %v579
    %v859 = vpack.c.b16 %v583, %v580
    %v860 = vpack.c.b16 %v584, %v581
    %v861 = vpack.c.b16 %v588, %v585
    %v862 = vpack.c.b16 %v589, %v586
    %v863 = vpack.c.b16 %v590, %v587
    %v864 = vpack.c.b16 %v594, %v591
    %v865 = vpack.c.b16 %v595, %v592
    %v866 = vpack.c.b16 %v596, %v593
    %v867 = vpack.c.b16 %v600, %v597
    %v868 = vpack.c.b16 %v601, %v598
    %v869 = vpack.c.b16 %v602, %v599
    %v870 = vpack.c.b16 %v606, %v603
    %v871 = vpack.c.b16 %v607, %v604
    %v872 = vpack.c.b16 %v608, %v605
    %v873 = vpack.c.b16 %v612, %v609
    %v874 = vpack.c.b16 %v613, %v610
    %v875 = vpack.c.b16 %v614, %v611
    %v876 = vpack.c.b16 %v618, %v615
    %v877 = vpack.c.b16 %v619, %v616
    %v878 = vpack.c.b16 %v620, %v617
    %v879 = vpack.c.b16 %v624, %v621
    %v880 = vpack.c.b16 %v625, %v622
    %v881 = vpack.c.b16 %v626, %v623
    %v882 = vpack.c.b16 %v630, %v627
    %v883 = vpack.c.b16 %v631, %v628
    %v884 = vpack.c.b16 %v632, %v629
    %v885 = vpack.c.b16 %v636, %v633
    %v886 = vpack.c.b16 %v637, %v634
    %v887 = vpack.c.b16 %v638, %v635
    %v888 = vpack.c.b16 %v642, %v639
    %v889 = vpack.c.b16 %v643, %v640
    %v890 = vpack.c.b16 %v644, %v641
    %v891 = vpack.c.b16 %v648, %v645
    %v892 = vpack.c.b16 %v649, %v646
    %v893 = vpack.c.b16 %v650, %v647
    %v894 = vpack.c.b16 %v654, %v651
    %v895 = vpack.c.b16 %v655, %v652
    %v896 = vpack.c.b16 %v656, %v653
    %v897 = vpack.c.b16 %v660, %v657
    %v898 = vpack.c.b16 %v661, %v658
    %v899 = vpack.c.b16 %v662, %v659
    %v900 = vpack.c.b16 %v666, %v663
    %v901 = vpack.c.b16 %v667, %v664
    %v902 = vpack.c.b16 %v668, %v665
    %v903 = vpack.c.b16 %v672, %v669
    %v904 = vpack.c.b16 %v673, %v670
    %v905 = vpack.c.b16 %v674, %v671
    %v906 = vpack.c.b16 %v678, %v675
    %v907 = vpack.c.b16 %v679, %v676
    %v908 = vpack.c.b16 %v680, %v677
    %v909 = vpack.c.b16 %v684, %v681
    %v910 = vpack.c.b16 %v685, %v682
    %v911 = vpack.c.b16 %v686, %v683
    %v912 = vpack.c.b16 %v690, %v687
    %v913 = vpack.c.b16 %v691, %v688
    %v914 = vpack.c.b16 %v692, %v689
    %v915 = vpack.c.b16 %v696, %v693
    %v916 = vpack.c.b16 %v697, %v694
    %v917 = vpack.c.b16 %v698, %v695
    %v918 = vpack.c.b16 %v702, %v699
    %v919 = vpack.c.b16 %v703, %v700
    %v920 = vpack.c.b16 %v704, %v701
    %v921 = vpack.c.b16 %v708, %v705
    %v922 = vpack.c.b16 %v709, %v706
    %v923 = vpack.c.b16 %v710, %v707
    %v924 = vpack.c.b16 %v714, %v711
    %v925 = vpack.c.b16 %v715, %v712
    %v926 = vpack.c.b16 %v716, %v713
    %v927 = vpack.c.b16 %v720, %v717
    %v928 = vpack.c.b16 %v721, %v718
    %v929 = vpack.c.b16 %v722, %v719
    %v930 = vpack.c.b16 %v726, %v723
    %v931 = vpack.c.b16 %v727, %v724
    %v932 = vpack.c.b16 %v728, %v725
    %v933 = vpack.c.b16 %v732, %v729
    %v934 = vpack.c.b16 %v733, %v730
    %v935 = vpack.c.b16 %v734, %v731
    %v936 = vpack.c.b16 %v738, %v735
    %v937 = vpack.c.b16 %v739, %v736
    %v938 = vpack.c.b16 %v740, %v737
    %v939 = vpack.c.b16 %v744, %v741
    %v940 = vpack.c.b16 %v745, %v742
    %v941 = vpack.c.b16 %v746, %v743
    %v942 = vpack.c.b16 %v750, %v747
    %v943 = vpack.c.b16 %v751, %v748
    %v944 = vpack.c.b16 %v752, %v749
    %v945 = vpack.c.b16 %v756, %v753
    %v946 = vpack.c.b16 %v757, %v754
    %v947 = vpack.c.b16 %v758, %v755
    %v948 = vpack.c.b16 %v762, %v759
    %v949 = vpack.c.b16 %v763, %v760
    %v950 = vpack.c.b16 %v764, %v761
    %v951 = vpack.c.b16 %v768, %v765
    %v952 = vpack.c.b16 %v769, %v766
    %v953 = vpack.c.b16 %v770, %v767
    %v954 = vpack.c.b16 %v774, %v771
    %v955 = vpack.c.b16 %v775, %v772
    %v956 = vpack.c.b16 %v776, %v773
    %v957 = vpack.c.b16 %v780, %v777
    %v958 = vpack.c.b16 %v781, %v778
    %v959 = vpack.c.b16 %v782, %v779
    %v960 = vpack.c.b16 %v786, %v783
    %v961 = vpack.c.b16 %v787, %v784
    %v962 = vpack.c.b16 %v788, %v785
    %v963 = vpack.c.b16 %v792, %v789
    %v964 = vpack.c.b16 %v793, %v790
    %v965 = vpack.c.b16 %v794, %v791
    %v966 = vpack.c.b16 %v798, %v795
    %v967 = vpack.c.b16 %v799, %v796
    %v968 = vpack.c.b16 %v800, %v797
    %v969 = vpack.c.b16 %v804, %v801
    %v970 = vpack.c.b16 %v805, %v802
    %v971 = vpack.c.b16 %v806, %v803
    %v972 = vpack.c.b16 %v810, %v807
    %v973 = vpack.c.b16 %v811, %v808
    %v974 = vpack.c.b16 %v812, %v809
    %v975 = vpack.c.b16 %v816, %v813
    %v976 = vpack.c.b16 %v817, %v814
    %v977 = vpack.c.b16 %v818, %v815
    %v978 = vpack.c.b16 %v822, %v819
    %v979 = vpack.c.b16 %v823, %v820
    %v980 = vpack.c.b16 %v824, %v821
    %v981 = vpack.c.b16 %v828, %v825
    %v982 = vpack.c.b16 %v829, %v826
    %v983 = vpack.c.b16 %v830, %v827
    %v984 = vpack.c.b16 %v834, %v831
    %v985 = vpack.c.b16 %v835, %v832
    %v986 = vpack.c.b16 %v836, %v833
    %v987 = vpack.c.b16 %v840, %v837
    %v988 = vpack.c.b16 %v841, %v838
    %v989 = vpack.c.b16 %v842, %v839
    %v990 = vpack.c.b16 %v846, %v843
    %v991 = vpack.c.b16 %v847, %v844
    %v992 = vpack.c.b16 %v848, %v845
    %1137 = vmatprep.subr.bf16.mxu0 %v871
    %1138 = vmatpush1.bf16.msra.mxu0 %v870
    %1139 = vmatprep.subr.bf16.mxu0 %v868
    %1140 = vmatpush1.bf16.msra.mxu0 %v867
    %1141 = vmatprep.subr.bf16.mxu0 %v865
    %1142 = vmatpush1.bf16.msra.mxu0 %v864
    %1143 = vmatprep.subr.bf16.mxu0 %v862
    %1144 = vmatpush1.bf16.msra.mxu0 %v861
    %1145 = vmatprep.subr.bf16.mxu0 %v859
    %1146 = vmatpush1.bf16.msra.mxu0 %v858
    %1147 = vmatprep.subr.bf16.mxu0 %v856
    %1148 = vmatpush1.bf16.msra.mxu0 %v855
    %1149 = vmatprep.subr.bf16.mxu0 %v853
    %1150 = vmatpush1.bf16.msra.mxu0 %v852
    %1151 = vmatprep.subr.bf16.mxu0 %v850
    %1152 = vmatpush1.bf16.msra.mxu0 %v849
    %1153 = vmatprep.subr.bf16.mxu0 %v895
    %1154 = vmatpush2.bf16.msra.mxu0 %v894
    %1155 = vmatprep.subr.bf16.mxu0 %v892
    %1156 = vmatpush2.bf16.msra.mxu0 %v891
    %1157 = vmatprep.subr.bf16.mxu0 %v889
    %1158 = vmatpush2.bf16.msra.mxu0 %v888
    %1159 = vmatprep.subr.bf16.mxu0 %v886
    %1160 = vmatpush2.bf16.msra.mxu0 %v885
    %1161 = vmatprep.subr.bf16.mxu0 %v883
    %1162 = vmatpush2.bf16.msra.mxu0 %v882
    %1163 = vmatprep.subr.bf16.mxu0 %v880
    %1164 = vmatpush2.bf16.msra.mxu0 %v879
    %1165 = vmatprep.subr.bf16.mxu0 %v877
    %1166 = vmatpush2.bf16.msra.mxu0 %v876
    %1167 = vmatprep.subr.bf16.mxu0 %v874
    %1168 = vmatpush2.bf16.msra.mxu0 %v873
    %1169 = vmatprep.mubr.bf16.mxu0 %v353
    %1170 = vmatmul.mubr.bf16.gmra.mxu0 %v339
    %v1171 = vpop.f32.mrf.mxu0
    %v1172 = vadd.f32 %v303, %v1171
    %v1173 = vpop.f32.mrf.mxu0
    %v1174 = vadd.f32 %v307, %v1173
    %v1175 = vpop.f32.mrf.mxu0
    %v1176 = vpop.f32.mrf.mxu0
    %1177 = vdwg.mxu0
    %1178 = vmatprep.subr.bf16.mxu0 %v919
    %1179 = vmatpush1.bf16.msra.mxu0 %v918
    %1180 = vmatprep.subr.bf16.mxu0 %v916
    %1181 = vmatpush1.bf16.msra.mxu0 %v915
    %1182 = vmatprep.subr.bf16.mxu0 %v913
    %1183 = vmatpush1.bf16.msra.mxu0 %v912
    %1184 = vmatprep.subr.bf16.mxu0 %v910
    %1185 = vmatpush1.bf16.msra.mxu0 %v909
    %1186 = vmatprep.subr.bf16.mxu0 %v907
    %1187 = vmatpush1.bf16.msra.mxu0 %v906
    %1188 = vmatprep.subr.bf16.mxu0 %v904
    %1189 = vmatpush1.bf16.msra.mxu0 %v903
    %1190 = vmatprep.subr.bf16.mxu0 %v901
    %1191 = vmatpush1.bf16.msra.mxu0 %v900
    %1192 = vmatprep.subr.bf16.mxu0 %v898
    %1193 = vmatpush1.bf16.msra.mxu0 %v897
    %1194 = vmatprep.subr.bf16.mxu0 %v943
    %1195 = vmatpush2.bf16.msra.mxu0 %v942
    %1196 = vmatprep.subr.bf16.mxu0 %v940
    %1197 = vmatpush2.bf16.msra.mxu0 %v939
    %1198 = vmatprep.subr.bf16.mxu0 %v937
    %1199 = vmatpush2.bf16.msra.mxu0 %v936
    %1200 = vmatprep.subr.bf16.mxu0 %v934
    %1201 = vmatpush2.bf16.msra.mxu0 %v933
    %1202 = vmatprep.subr.bf16.mxu0 %v931
    %1203 = vmatpush2.bf16.msra.mxu0 %v930
    %1204 = vmatprep.subr.bf16.mxu0 %v928
    %1205 = vmatpush2.bf16.msra.mxu0 %v927
    %1206 = vmatprep.subr.bf16.mxu0 %v925
    %1207 = vmatpush2.bf16.msra.mxu0 %v924
    %1208 = vmatprep.subr.bf16.mxu0 %v922
    %1209 = vmatpush2.bf16.msra.mxu0 %v921
    %1210 = vmatprep.mubr.bf16.mxu0 %v362
    %1211 = vmatmul.mubr.bf16.gmra.mxu0 %v361
    %v1212 = vpop.f32.mrf.mxu0
    %v1213 = vadd.f32 %v1172, %v1212
    %v1214 = vpop.f32.mrf.mxu0
    %v1215 = vadd.f32 %v1174, %v1214
    %v1216 = vpop.f32.mrf.mxu0
    %v1217 = vpop.f32.mrf.mxu0
    %1218 = vdwg.mxu0
    %1219 = vmatprep.subr.bf16.mxu0 %v967
    %1220 = vmatpush1.bf16.msra.mxu0 %v966
    %1221 = vmatprep.subr.bf16.mxu0 %v964
    %1222 = vmatpush1.bf16.msra.mxu0 %v963
    %1223 = vmatprep.subr.bf16.mxu0 %v961
    %1224 = vmatpush1.bf16.msra.mxu0 %v960
    %1225 = vmatprep.subr.bf16.mxu0 %v958
    %1226 = vmatpush1.bf16.msra.mxu0 %v957
    %1227 = vmatprep.subr.bf16.mxu0 %v955
    %1228 = vmatpush1.bf16.msra.mxu0 %v954
    %1229 = vmatprep.subr.bf16.mxu0 %v952
    %1230 = vmatpush1.bf16.msra.mxu0 %v951
    %1231 = vmatprep.subr.bf16.mxu0 %v949
    %1232 = vmatpush1.bf16.msra.mxu0 %v948
    %1233 = vmatprep.subr.bf16.mxu0 %v946
    %1234 = vmatpush1.bf16.msra.mxu0 %v945
    %1235 = vmatprep.subr.bf16.mxu0 %v991
    %1236 = vmatpush2.bf16.msra.mxu0 %v990
    %1237 = vmatprep.subr.bf16.mxu0 %v988
    %1238 = vmatpush2.bf16.msra.mxu0 %v987
    %1239 = vmatprep.subr.bf16.mxu0 %v985
    %1240 = vmatpush2.bf16.msra.mxu0 %v984
    %1241 = vmatprep.subr.bf16.mxu0 %v982
    %1242 = vmatpush2.bf16.msra.mxu0 %v981
    %1243 = vmatprep.subr.bf16.mxu0 %v979
    %1244 = vmatpush2.bf16.msra.mxu0 %v978
    %1245 = vmatprep.subr.bf16.mxu0 %v976
    %1246 = vmatpush2.bf16.msra.mxu0 %v975
    %1247 = vmatprep.subr.bf16.mxu0 %v973
    %1248 = vmatpush2.bf16.msra.mxu0 %v972
    %1249 = vmatprep.subr.bf16.mxu0 %v970
    %1250 = vmatpush2.bf16.msra.mxu0 %v969
    %1251 = vmatprep.mubr.bf16.mxu0 %v360
    %1252 = vmatmul.mubr.bf16.gmra.mxu0 %v346
    %v1253 = vpop.f32.mrf.mxu0
    %v1254 = vadd.f32 %v1213, %v1253
    %v1255 = vpop.f32.mrf.mxu0
    %v1256 = vadd.f32 %v1215, %v1255
    %v1257 = vpop.f32.mrf.mxu0
    %v1258 = vpop.f32.mrf.mxu0
    %1259 = vdwg.mxu0
    %1260 = vmatprep.subr.bf16.mxu0 0
    %1261 = vmatpush1.bf16.msra.mxu0 %v872
    %1262 = vmatprep.subr.bf16.mxu0 0
    %1263 = vmatpush1.bf16.msra.mxu0 %v869
    %1264 = vmatprep.subr.bf16.mxu0 0
    %1265 = vmatpush1.bf16.msra.mxu0 %v866
    %1266 = vmatprep.subr.bf16.mxu0 0
    %1267 = vmatpush1.bf16.msra.mxu0 %v863
    %1268 = vmatprep.subr.bf16.mxu0 0
    %1269 = vmatpush1.bf16.msra.mxu0 %v860
    %1270 = vmatprep.subr.bf16.mxu0 0
    %1271 = vmatpush1.bf16.msra.mxu0 %v857
    %1272 = vmatprep.subr.bf16.mxu0 0
    %1273 = vmatpush1.bf16.msra.mxu0 %v854
    %1274 = vmatprep.subr.bf16.mxu0 0
    %1275 = vmatpush1.bf16.msra.mxu0 %v851
    %1276 = vmatprep.subr.bf16.mxu0 0
    %1277 = vmatpush2.bf16.msra.mxu0 %v896
    %1278 = vmatprep.subr.bf16.mxu0 0
    %1279 = vmatpush2.bf16.msra.mxu0 %v893
    %1280 = vmatprep.subr.bf16.mxu0 0
    %1281 = vmatpush2.bf16.msra.mxu0 %v890
    %1282 = vmatprep.subr.bf16.mxu0 0
    %1283 = vmatpush2.bf16.msra.mxu0 %v887
    %1284 = vmatprep.subr.bf16.mxu0 0
    %1285 = vmatpush2.bf16.msra.mxu0 %v884
    %1286 = vmatprep.subr.bf16.mxu0 0
    %1287 = vmatpush2.bf16.msra.mxu0 %v881
    %1288 = vmatprep.subr.bf16.mxu0 0
    %1289 = vmatpush2.bf16.msra.mxu0 %v878
    %1290 = vmatprep.subr.bf16.mxu0 0
    %1291 = vmatpush2.bf16.msra.mxu0 %v875
    %1292 = vmatprep.mubr.bf16.mxu0 %v353
    %1293 = vmatmul.mubr.bf16.gmra.mxu0 %v339
    %v1294 = vpop.f32.mrf.mxu0
    %v1295 = vadd.f32 %v311, %v1294
    %v1296 = vpop.f32.mrf.mxu0
    %v1297 = vpop.f32.mrf.mxu0
    %v1298 = vpop.f32.mrf.mxu0
    %1299 = vdwg.mxu0
    %1300 = vmatprep.subr.bf16.mxu0 0
    %1301 = vmatpush1.bf16.msra.mxu0 %v920
    %1302 = vmatprep.subr.bf16.mxu0 0
    %1303 = vmatpush1.bf16.msra.mxu0 %v917
    %1304 = vmatprep.subr.bf16.mxu0 0
    %1305 = vmatpush1.bf16.msra.mxu0 %v914
    %1306 = vmatprep.subr.bf16.mxu0 0
    %1307 = vmatpush1.bf16.msra.mxu0 %v911
    %1308 = vmatprep.subr.bf16.mxu0 0
    %1309 = vmatpush1.bf16.msra.mxu0 %v908
    %1310 = vmatprep.subr.bf16.mxu0 0
    %1311 = vmatpush1.bf16.msra.mxu0 %v905
    %1312 = vmatprep.subr.bf16.mxu0 0
    %1313 = vmatpush1.bf16.msra.mxu0 %v902
    %1314 = vmatprep.subr.bf16.mxu0 0
    %1315 = vmatpush1.bf16.msra.mxu0 %v899
    %1316 = vmatprep.subr.bf16.mxu0 0
    %1317 = vmatpush2.bf16.msra.mxu0 %v944
    %1318 = vmatprep.subr.bf16.mxu0 0
    %1319 = vmatpush2.bf16.msra.mxu0 %v941
    %1320 = vmatprep.subr.bf16.mxu0 0
    %1321 = vmatpush2.bf16.msra.mxu0 %v938
    %1322 = vmatprep.subr.bf16.mxu0 0
    %1323 = vmatpush2.bf16.msra.mxu0 %v935
    %1324 = vmatprep.subr.bf16.mxu0 0
    %1325 = vmatpush2.bf16.msra.mxu0 %v932
    %1326 = vmatprep.subr.bf16.mxu0 0
    %1327 = vmatpush2.bf16.msra.mxu0 %v929
    %1328 = vmatprep.subr.bf16.mxu0 0
    %1329 = vmatpush2.bf16.msra.mxu0 %v926
    %1330 = vmatprep.subr.bf16.mxu0 0
    %1331 = vmatpush2.bf16.msra.mxu0 %v923
    %1332 = vmatprep.mubr.bf16.mxu0 %v362
    %1333 = vmatmul.mubr.bf16.gmra.mxu0 %v361
    %v1334 = vpop.f32.mrf.mxu0
    %v1335 = vadd.f32 %v1295, %v1334
    %v1336 = vpop.f32.mrf.mxu0
    %v1337 = vpop.f32.mrf.mxu0
    %v1338 = vpop.f32.mrf.mxu0
    %1339 = vdwg.mxu0
    %1340 = vmatprep.subr.bf16.mxu0 0
    %1341 = vmatpush1.bf16.msra.mxu0 %v968
    %1342 = vmatprep.subr.bf16.mxu0 0
    %1343 = vmatpush1.bf16.msra.mxu0 %v965
    %1344 = vmatprep.subr.bf16.mxu0 0
    %1345 = vmatpush1.bf16.msra.mxu0 %v962
    %1346 = vmatprep.subr.bf16.mxu0 0
    %1347 = vmatpush1.bf16.msra.mxu0 %v959
    %1348 = vmatprep.subr.bf16.mxu0 0
    %1349 = vmatpush1.bf16.msra.mxu0 %v956
    %1350 = vmatprep.subr.bf16.mxu0 0
    %1351 = vmatpush1.bf16.msra.mxu0 %v953
    %1352 = vmatprep.subr.bf16.mxu0 0
    %1353 = vmatpush1.bf16.msra.mxu0 %v950
    %1354 = vmatprep.subr.bf16.mxu0 0
    %1355 = vmatpush1.bf16.msra.mxu0 %v947
    %1356 = vmatprep.subr.bf16.mxu0 0
    %1357 = vmatpush2.bf16.msra.mxu0 %v992
    %1358 = vmatprep.subr.bf16.mxu0 0
    %1359 = vmatpush2.bf16.msra.mxu0 %v989
    %1360 = vmatprep.subr.bf16.mxu0 0
    %1361 = vmatpush2.bf16.msra.mxu0 %v986
    %1362 = vmatprep.subr.bf16.mxu0 0
    %1363 = vmatpush2.bf16.msra.mxu0 %v983
    %1364 = vmatprep.subr.bf16.mxu0 0
    %1365 = vmatpush2.bf16.msra.mxu0 %v980
    %1366 = vmatprep.subr.bf16.mxu0 0
    %1367 = vmatpush2.bf16.msra.mxu0 %v977
    %1368 = vmatprep.subr.bf16.mxu0 0
    %1369 = vmatpush2.bf16.msra.mxu0 %v974
    %1370 = vmatprep.subr.bf16.mxu0 0
    %1371 = vmatpush2.bf16.msra.mxu0 %v971
    %1372 = vmatprep.mubr.bf16.mxu0 %v360
    %1373 = vmatmul.mubr.bf16.gmra.mxu0 %v346
    %v1374 = vpop.f32.mrf.mxu0
    %v1375 = vadd.f32 %v1335, %v1374
    %v1376 = vpop.f32.mrf.mxu0
    %v1377 = vpop.f32.mrf.mxu0
    %v1378 = vpop.f32.mrf.mxu0
    %1379 = vdwg.mxu0
    %v1383 = vcombine.low %v1254, %v1256
    %v1385 = vunpack.c.l.s4 1983009808
    %v1386 = vunpack.c.0.s8 %v1385
    %v1387 = vlaneseq
    %v1388 = vshrl.u32 %v1387, 7
    %v1389 = vsub.s32 %v1386, %v1388
    %v1390 = vrot.slane %v1383, %v1389
    %v1392 = vunpack.c.l.s4 1983009808
    %v1393 = vunpack.c.0.s8 %v1392
    %v1394 = vlaneseq
    %v1395 = vshrl.u32 %v1394, 7
    %v1396 = vsub.s32 %v1393, %v1395
    %v1397 = vrot.slane %v1375, %v1396
    %v1398 = vcombine.low %v1390, %v1397
    %1400 = vst [vmem:[#allocation10] sm:$0x3f] %v1398
    %v1401 = vld [vmem:[#allocation7] sm:$0xff]
    %v1402 = vld [vmem:[#allocation7 + $0x8] sm:$0xff]
    %v1403 = vld [vmem:[#allocation7 + $0x10] sm:$0xff]
    %v1404 = vld [vmem:[#allocation7 + $0x18] sm:$0xff]
    %v1405 = vld [vmem:[#allocation7 + $0x20] sm:$0xff]
    %v1406 = vld [vmem:[#allocation7 + $0x28] sm:$0xff]
    %v1407 = vld [vmem:[#allocation7 + $0x30] sm:$0xff]
    %v1408 = vld [vmem:[#allocation7 + $0x38] sm:$0xff]
    %v1409 = vld [vmem:[#allocation7 + $0x40] sm:$0xff]
    %v1410 = vld [vmem:[#allocation7 + $0x48] sm:$0xff]
    %v1411 = vld [vmem:[#allocation7 + $0x50] sm:$0xff]
    %v1412 = vld [vmem:[#allocation7 + $0x58] sm:$0xff]
    %v1413 = vld [vmem:[#allocation7 + $0x60] sm:$0xff]
    %v1414 = vld [vmem:[#allocation7 + $0x68] sm:$0xff]
    %v1415 = vld [vmem:[#allocation7 + $0x70] sm:$0xff]
    %v1416 = vld [vmem:[#allocation7 + $0x78] sm:$0xff]
    %v1417 = vld [vmem:[#allocation7 + $0x80] sm:$0xff]
    %v1418 = vld [vmem:[#allocation7 + $0x88] sm:$0xff]
    %v1419 = vld [vmem:[#allocation7 + $0x90] sm:$0xff]
    %v1420 = vld [vmem:[#allocation7 + $0x98] sm:$0xff]
    %v1421 = vld [vmem:[#allocation7 + $0xa0] sm:$0xff]
    %v1422 = vld [vmem:[#allocation7 + $0xa8] sm:$0xff]
    %v1423 = vld [vmem:[#allocation7 + $0xb0] sm:$0xff]
    %v1424 = vld [vmem:[#allocation7 + $0xb8] sm:$0xff]
    %v1425 = vld [vmem:[#allocation7 + $0xc0] sm:$0xff]
    %v1426 = vld [vmem:[#allocation7 + $0xc8] sm:$0xff]
    %v1427 = vld [vmem:[#allocation7 + $0xd0] sm:$0xff]
    %v1428 = vld [vmem:[#allocation7 + $0xd8] sm:$0xff]
    %v1429 = vld [vmem:[#allocation7 + $0xe0] sm:$0xff]
    %v1430 = vld [vmem:[#allocation7 + $0xe8] sm:$0xff]
    %v1431 = vld [vmem:[#allocation7 + $0xf0] sm:$0xff]
    %v1432 = vld [vmem:[#allocation7 + $0xf8] sm:$0xff]
    %v1433 = vld [vmem:[#allocation7 + $0x100] sm:$0xff]
    %v1434 = vld [vmem:[#allocation7 + $0x108] sm:$0xff]
    %v1435 = vld [vmem:[#allocation7 + $0x110] sm:$0xff]
    %v1436 = vld [vmem:[#allocation7 + $0x118] sm:$0xff]
    %v1437 = vld [vmem:[#allocation7 + $0x120] sm:$0xff]
    %v1438 = vld [vmem:[#allocation7 + $0x128] sm:$0xff]
    %v1439 = vld [vmem:[#allocation7 + $0x130] sm:$0xff]
    %v1440 = vld [vmem:[#allocation7 + $0x138] sm:$0xff]
    %v1441 = vld [vmem:[#allocation7 + $0x140] sm:$0xff]
    %v1442 = vld [vmem:[#allocation7 + $0x148] sm:$0xff]
    %v1443 = vld [vmem:[#allocation7 + $0x150] sm:$0xff]
    %v1444 = vld [vmem:[#allocation7 + $0x158] sm:$0xff]
    %v1445 = vld [vmem:[#allocation7 + $0x160] sm:$0xff]
    %v1446 = vld [vmem:[#allocation7 + $0x168] sm:$0xff]
    %v1447 = vld [vmem:[#allocation7 + $0x170] sm:$0xff]
    %v1448 = vld [vmem:[#allocation7 + $0x178] sm:$0xff]
    %v1449 = vld [vmem:[#allocation7 + $0x180] sm:$0xff]
    %v1450 = vld [vmem:[#allocation7 + $0x188] sm:$0xff]
    %v1451 = vld [vmem:[#allocation7 + $0x190] sm:$0xff]
    %v1452 = vld [vmem:[#allocation7 + $0x198] sm:$0xff]
    %v1453 = vld [vmem:[#allocation7 + $0x1a0] sm:$0xff]
    %v1454 = vld [vmem:[#allocation7 + $0x1a8] sm:$0xff]
    %v1455 = vld [vmem:[#allocation7 + $0x1b0] sm:$0xff]
    %v1456 = vld [vmem:[#allocation7 + $0x1b8] sm:$0xff]
    %v1457 = vld [vmem:[#allocation7 + $0x1c0] sm:$0xff]
    %v1458 = vld [vmem:[#allocation7 + $0x1c8] sm:$0xff]
    %v1459 = vld [vmem:[#allocation7 + $0x1d0] sm:$0xff]
    %v1460 = vld [vmem:[#allocation7 + $0x1d8] sm:$0xff]
    %v1461 = vld [vmem:[#allocation7 + $0x1e0] sm:$0xff]
    %v1462 = vld [vmem:[#allocation7 + $0x1e8] sm:$0xff]
    %v1463 = vld [vmem:[#allocation7 + $0x1f0] sm:$0xff]
    %v1464 = vld [vmem:[#allocation7 + $0x1f8] sm:$0xff]
    %v1465 = vld [vmem:[#allocation7 + $0x200] sm:$0xff]
    %v1466 = vld [vmem:[#allocation7 + $0x208] sm:$0xff]
    %v1467 = vld [vmem:[#allocation7 + $0x210] sm:$0xff]
    %v1468 = vld [vmem:[#allocation7 + $0x218] sm:$0xff]
    %v1469 = vld [vmem:[#allocation7 + $0x220] sm:$0xff]
    %v1470 = vld [vmem:[#allocation7 + $0x228] sm:$0xff]
    %v1471 = vld [vmem:[#allocation7 + $0x230] sm:$0xff]
    %v1472 = vld [vmem:[#allocation7 + $0x238] sm:$0xff]
    %v1473 = vld [vmem:[#allocation7 + $0x240] sm:$0xff]
    %v1474 = vld [vmem:[#allocation7 + $0x248] sm:$0xff]
    %v1475 = vld [vmem:[#allocation7 + $0x250] sm:$0xff]
    %v1476 = vld [vmem:[#allocation7 + $0x258] sm:$0xff]
    %v1477 = vld [vmem:[#allocation7 + $0x260] sm:$0xff]
    %v1478 = vld [vmem:[#allocation7 + $0x268] sm:$0xff]
    %v1479 = vld [vmem:[#allocation7 + $0x270] sm:$0xff]
    %v1480 = vld [vmem:[#allocation7 + $0x278] sm:$0xff]
    %v1481 = vld [vmem:[#allocation7 + $0x280] sm:$0xff]
    %v1482 = vld [vmem:[#allocation7 + $0x288] sm:$0xff]
    %v1483 = vld [vmem:[#allocation7 + $0x290] sm:$0xff]
    %v1484 = vld [vmem:[#allocation7 + $0x298] sm:$0xff]
    %v1485 = vld [vmem:[#allocation7 + $0x2a0] sm:$0xff]
    %v1486 = vld [vmem:[#allocation7 + $0x2a8] sm:$0xff]
    %v1487 = vld [vmem:[#allocation7 + $0x2b0] sm:$0xff]
    %v1488 = vld [vmem:[#allocation7 + $0x2b8] sm:$0xff]
    %v1489 = vld [vmem:[#allocation7 + $0x2c0] sm:$0xff]
    %v1490 = vld [vmem:[#allocation7 + $0x2c8] sm:$0xff]
    %v1491 = vld [vmem:[#allocation7 + $0x2d0] sm:$0xff]
    %v1492 = vld [vmem:[#allocation7 + $0x2d8] sm:$0xff]
    %v1493 = vld [vmem:[#allocation7 + $0x2e0] sm:$0xff]
    %v1494 = vld [vmem:[#allocation7 + $0x2e8] sm:$0xff]
    %v1495 = vld [vmem:[#allocation7 + $0x2f0] sm:$0xff]
    %v1496 = vld [vmem:[#allocation7 + $0x2f8] sm:$0xff]
    %v1497 = vld [vmem:[#allocation8] sm:$0x3]
    %v1499 = vlaneseq
    %v1500 = vshrl.u32 %v1499, 7
    %v1501 = vsub.s32 0, %v1500
    %v1502 = vrot.slane %v1497, %v1501
    %v1503 = vlaneseq
    %v1504 = vshrl.u32 %v1503, 7
    %v1505 = vsub.s32 1, %v1504
    %v1506 = vrot.slane %v1497, %v1505
    %1509 = vmatprep.subr.mxu0 %v1432
    %1510 = vmatpush1.msra.mxu0 %v1431
    %1511 = vmatprep.subr.mxu0 %v1430
    %1512 = vmatpush1.msra.mxu0 %v1429
    %1513 = vmatprep.subr.mxu0 %v1428
    %1514 = vmatpush1.msra.mxu0 %v1427
    %1515 = vmatprep.subr.mxu0 %v1426
    %1516 = vmatpush1.msra.mxu0 %v1425
    %1517 = vmatprep.subr.mxu0 %v1424
    %1518 = vmatpush1.msra.mxu0 %v1423
    %1519 = vmatprep.subr.mxu0 %v1422
    %1520 = vmatpush1.msra.mxu0 %v1421
    %1521 = vmatprep.subr.mxu0 %v1420
    %1522 = vmatpush1.msra.mxu0 %v1419
    %1523 = vmatprep.subr.mxu0 %v1418
    %1524 = vmatpush1.msra.mxu0 %v1417
    %1525 = vmatprep.subr.mxu0 %v1416
    %1526 = vmatpush1.msra.mxu0 %v1415
    %1527 = vmatprep.subr.mxu0 %v1414
    %1528 = vmatpush1.msra.mxu0 %v1413
    %1529 = vmatprep.subr.mxu0 %v1412
    %1530 = vmatpush1.msra.mxu0 %v1411
    %1531 = vmatprep.subr.mxu0 %v1410
    %1532 = vmatpush1.msra.mxu0 %v1409
    %1533 = vmatprep.subr.mxu0 %v1408
    %1534 = vmatpush1.msra.mxu0 %v1407
    %1535 = vmatprep.subr.mxu0 %v1406
    %1536 = vmatpush1.msra.mxu0 %v1405
    %1537 = vmatprep.subr.mxu0 %v1404
    %1538 = vmatpush1.msra.mxu0 %v1403
    %1539 = vmatprep.subr.mxu0 %v1402
    %1540 = vmatpush1.msra.mxu0 %v1401
    %1541 = vmatprep.subr.mxu0 %v1464
    %1542 = vmatpush2.msra.mxu0 %v1463
    %1543 = vmatprep.subr.mxu0 %v1462
    %1544 = vmatpush2.msra.mxu0 %v1461
    %1545 = vmatprep.subr.mxu0 %v1460
    %1546 = vmatpush2.msra.mxu0 %v1459
    %1547 = vmatprep.subr.mxu0 %v1458
    %1548 = vmatpush2.msra.mxu0 %v1457
    %1549 = vmatprep.subr.mxu0 %v1456
    %1550 = vmatpush2.msra.mxu0 %v1455
    %1551 = vmatprep.subr.mxu0 %v1454
    %1552 = vmatpush2.msra.mxu0 %v1453
    %1553 = vmatprep.subr.mxu0 %v1452
    %1554 = vmatpush2.msra.mxu0 %v1451
    %1555 = vmatprep.subr.mxu0 %v1450
    %1556 = vmatpush2.msra.mxu0 %v1449
    %1557 = vmatprep.subr.mxu0 %v1448
    %1558 = vmatpush2.msra.mxu0 %v1447
    %1559 = vmatprep.subr.mxu0 %v1446
    %1560 = vmatpush2.msra.mxu0 %v1445
    %1561 = vmatprep.subr.mxu0 %v1444
    %1562 = vmatpush2.msra.mxu0 %v1443
    %1563 = vmatprep.subr.mxu0 %v1442
    %1564 = vmatpush2.msra.mxu0 %v1441
    %1565 = vmatprep.subr.mxu0 %v1440
    %1566 = vmatpush2.msra.mxu0 %v1439
    %1567 = vmatprep.subr.mxu0 %v1438
    %1568 = vmatpush2.msra.mxu0 %v1437
    %1569 = vmatprep.subr.mxu0 %v1436
    %1570 = vmatpush2.msra.mxu0 %v1435
    %1571 = vmatprep.subr.mxu0 %v1434
    %1572 = vmatpush2.msra.mxu0 %v1433
    %1573 = vmatprep.mubr.f32.mxu0 %v1256
    %1574 = vmatmul.mubr.f32.gmra.mxu0 %v1254
    %v1575 = vpop.f32.mrf.mxu0
    %v1576 = vadd.f32 %v1502, %v1575
    %v1577 = vpop.f32.mrf.mxu0
    %v1578 = vadd.f32 %v1506, %v1577
    %1579 = vdwg.mxu0
    %1580 = vmatprep.subr.mxu0 %v1496
    %1581 = vmatpush1.msra.mxu0 %v1495
    %1582 = vmatprep.subr.mxu0 %v1494
    %1583 = vmatpush1.msra.mxu0 %v1493
    %1584 = vmatprep.subr.mxu0 %v1492
    %1585 = vmatpush1.msra.mxu0 %v1491
    %1586 = vmatprep.subr.mxu0 %v1490
    %1587 = vmatpush1.msra.mxu0 %v1489
    %1588 = vmatprep.subr.mxu0 %v1488
    %1589 = vmatpush1.msra.mxu0 %v1487
    %1590 = vmatprep.subr.mxu0 %v1486
    %1591 = vmatpush1.msra.mxu0 %v1485
    %1592 = vmatprep.subr.mxu0 %v1484
    %1593 = vmatpush1.msra.mxu0 %v1483
    %1594 = vmatprep.subr.mxu0 %v1482
    %1595 = vmatpush1.msra.mxu0 %v1481
    %1596 = vmatprep.subr.mxu0 %v1480
    %1597 = vmatpush1.msra.mxu0 %v1479
    %1598 = vmatprep.subr.mxu0 %v1478
    %1599 = vmatpush1.msra.mxu0 %v1477
    %1600 = vmatprep.subr.mxu0 %v1476
    %1601 = vmatpush1.msra.mxu0 %v1475
    %1602 = vmatprep.subr.mxu0 %v1474
    %1603 = vmatpush1.msra.mxu0 %v1473
    %1604 = vmatprep.subr.mxu0 %v1472
    %1605 = vmatpush1.msra.mxu0 %v1471
    %1606 = vmatprep.subr.mxu0 %v1470
    %1607 = vmatpush1.msra.mxu0 %v1469
    %1608 = vmatprep.subr.mxu0 %v1468
    %1609 = vmatpush1.msra.mxu0 %v1467
    %1610 = vmatprep.subr.mxu0 %v1466
    %1611 = vmatpush1.msra.mxu0 %v1465
    %1612 = vmatprep.subr.mxu0 0.0
    %1613 = vmatpush2.msra.mxu0 0.0
    %1614 = vmatprep.subr.mxu0 0.0
    %1615 = vmatpush2.msra.mxu0 0.0
    %1616 = vmatprep.subr.mxu0 0.0
    %1617 = vmatpush2.msra.mxu0 0.0
    %1618 = vmatprep.subr.mxu0 0.0
    %1619 = vmatpush2.msra.mxu0 0.0
    %1620 = vmatprep.subr.mxu0 0.0
    %1621 = vmatpush2.msra.mxu0 0.0
    %1622 = vmatprep.subr.mxu0 0.0
    %1623 = vmatpush2.msra.mxu0 0.0
    %1624 = vmatprep.subr.mxu0 0.0
    %1625 = vmatpush2.msra.mxu0 0.0
    %1626 = vmatprep.subr.mxu0 0.0
    %1627 = vmatpush2.msra.mxu0 0.0
    %1628 = vmatprep.subr.mxu0 0.0
    %1629 = vmatpush2.msra.mxu0 0.0
    %1630 = vmatprep.subr.mxu0 0.0
    %1631 = vmatpush2.msra.mxu0 0.0
    %1632 = vmatprep.subr.mxu0 0.0
    %1633 = vmatpush2.msra.mxu0 0.0
    %1634 = vmatprep.subr.mxu0 0.0
    %1635 = vmatpush2.msra.mxu0 0.0
    %1636 = vmatprep.subr.mxu0 0.0
    %1637 = vmatpush2.msra.mxu0 0.0
    %1638 = vmatprep.subr.mxu0 0.0
    %1639 = vmatpush2.msra.mxu0 0.0
    %1640 = vmatprep.subr.mxu0 0.0
    %1641 = vmatpush2.msra.mxu0 0.0
    %1642 = vmatprep.subr.mxu0 0.0
    %1643 = vmatpush2.msra.mxu0 0.0
    %1644 = vmatprep.mubr.f32.mxu0 0.0
    %1645 = vmatmul.mubr.f32.gmra.mxu0 %v1375
    %v1646 = vpop.f32.mrf.mxu0
    %v1647 = vadd.f32 %v1576, %v1646
    %v1648 = vpop.f32.mrf.mxu0
    %v1649 = vadd.f32 %v1578, %v1648
    %1650 = vdwg.mxu0
    %v1651 = vld [vmem:[%s9] sm:$0xf]
    %v1652 = vld [vmem:[%s9 + $0x4] sm:$0xf]
    %v1653 = vld [vmem:[%s9 + $0x8] sm:$0xf]
    %v1654 = vld [vmem:[%s9 + $0xc] sm:$0xf]
    %v1655 = vld [vmem:[%s5] sm:$0xff]
    %v1656 = vld [vmem:[%s5 + $0x8] sm:$0xff]
    %v1657 = vld [vmem:[%s5 + $0x10] sm:$0xff]
    %v1658 = vld [vmem:[%s5 + $0x18] sm:$0xff]
    %v1659 = vlaneseq
    %v1660 = vshrl.u32 %v1659, 7
    %v1661 = vsub.s32 0, %v1660
    %v1662 = vrot.slane %v1647, %v1661
    %v1663 = vmul.f32 %v1655, %v1662
    %v1664 = vmul.f32 %v1656, %v1662
    %v1665 = vmul.f32 %v1657, %v1662
    %v1666 = vmul.f32 %v1658, %v1662
    %v1667 = vmul.f32 %v1663, %v1663
    %v1668 = vmul.f32 %v1664, %v1664
    %v1669 = vmul.f32 %v1665, %v1665
    %v1670 = vmul.f32 %v1666, %v1666
    %vm1671 = vcmask 261120
    %v1672 = vsel %vm1671, %v1667, 0.0
    %1673 = vadd.xlane.f32.xlu0 %v1672
    %v1674 = vpop.xlane.xlu0 %1673
    %v1675 = vsel %vm1671, %v1668, 0.0
    %1676 = vadd.xlane.f32.xlu0 %v1675
    %v1677 = vpop.xlane.xlu0 %1676
    %v1678 = vsel %vm1671, %v1669, 0.0
    %1679 = vadd.xlane.f32.xlu0 %v1678
    %v1680 = vpop.xlane.xlu0 %1679
    %v1681 = vsel %vm1671, %v1670, 0.0
    %1682 = vadd.xlane.f32.xlu0 %v1681
    %v1683 = vpop.xlane.xlu0 %1682
    %v1684 = vmul.f32 %v1674, 0.5
    %v1685 = vmul.f32 %v1677, 0.5
    %v1686 = vmul.f32 %v1680, 0.5
    %v1687 = vmul.f32 %v1683, 0.5
    %v1688 = vadd.f32 %v1684, 5e-09
    %v1689 = vadd.f32 %v1685, 5e-09
    %v1690 = vadd.f32 %v1686, 5e-09
    %v1691 = vadd.f32 %v1687, 5e-09
    %v1692 = vrsqrt.pop %v1688
    %v1693 = vrsqrt.pop %v1689
    %v1694 = vrsqrt.pop %v1690
    %v1695 = vrsqrt.pop %v1691
    %v1696 = vmul.f32 %v1663, %v1692
    %v1697 = vmul.f32 %v1664, %v1693
    %v1698 = vmul.f32 %v1665, %v1694
    %v1699 = vmul.f32 %v1666, %v1695
    %v1700 = vpack.c.bf16 %v1697, %v1696
    %v1701 = vpack.c.bf16 %v1699, %v1698
    %v1702 = vld [vmem:[%s6] sm:$0xff]
    %v1703 = vld [vmem:[%s6 + $0x8] sm:$0xff]
    %v1704 = vld [vmem:[%s6 + $0x10] sm:$0xff]
    %v1705 = vld [vmem:[%s6 + $0x18] sm:$0xff]
    %1707 = vset.pattern.permute.xlu0 0
    %1708 = vperm.xlu0 %1707, %v1702
    %v1709 = vpop.permute.xlu0 %1708
    %1712 = vset.pattern.permute.xlu0 0
    %1713 = vperm.xlu0 %1712, %v1703
    %v1714 = vpop.permute.xlu0 %1713
    %1717 = vset.pattern.permute.xlu0 0
    %1718 = vperm.xlu0 %1717, %v1704
    %v1719 = vpop.permute.xlu0 %1718
    %1722 = vset.pattern.permute.xlu0 0
    %1723 = vperm.xlu0 %1722, %v1705
    %v1724 = vpop.permute.xlu0 %1723
    %v1730 = vunpack.c.l.b16 %v1651
    %v1731 = vunpack.c.l.b16 %v1652
    %v1732 = vunpack.c.l.b16 %v1653
    %v1733 = vunpack.c.l.b16 %v1654
    %v1734 = vpack.c.b16 %v1731, %v1730
    %v1735 = vpack.c.b16 %v1733, %v1732
    %v1739 = vsel %vm1671, %v1700, 0
    %v1742 = vsel %vm1671, %v1701, 0
    %1744 = vmatprep.subr.bf16.mxu0 0
    %1745 = vmatpush1.bf16.msra.mxu0 0
    %1746 = vmatprep.subr.bf16.mxu0 0
    %1747 = vmatpush1.bf16.msra.mxu0 0
    %1748 = vmatprep.subr.bf16.mxu0 0
    %1749 = vmatpush1.bf16.msra.mxu0 0
    %1750 = vmatprep.subr.bf16.mxu0 0
    %1751 = vmatpush1.bf16.msra.mxu0 0
    %1752 = vmatprep.subr.bf16.mxu0 0
    %1753 = vmatpush1.bf16.msra.mxu0 0
    %1754 = vmatprep.subr.bf16.mxu0 0
    %1755 = vmatpush1.bf16.msra.mxu0 0
    %1756 = vmatprep.subr.bf16.mxu0 0
    %1757 = vmatpush1.bf16.msra.mxu0 %v1735
    %1758 = vmatprep.subr.bf16.mxu0 0
    %1759 = vmatpush1.bf16.msra.mxu0 %v1734
    %1760 = vmatprep.subr.bf16.mxu0 0
    %1761 = vmatpush2.bf16.msra.mxu0 0
    %1762 = vmatprep.subr.bf16.mxu0 0
    %1763 = vmatpush2.bf16.msra.mxu0 0
    %1764 = vmatprep.subr.bf16.mxu0 0
    %1765 = vmatpush2.bf16.msra.mxu0 0
    %1766 = vmatprep.subr.bf16.mxu0 0
    %1767 = vmatpush2.bf16.msra.mxu0 0
    %1768 = vmatprep.subr.bf16.mxu0 0
    %1769 = vmatpush2.bf16.msra.mxu0 0
    %1770 = vmatprep.subr.bf16.mxu0 0
    %1771 = vmatpush2.bf16.msra.mxu0 0
    %1772 = vmatprep.subr.bf16.mxu0 0
    %1773 = vmatpush2.bf16.msra.mxu0 0
    %1774 = vmatprep.subr.bf16.mxu0 0
    %1775 = vmatpush2.bf16.msra.mxu0 0
    %1776 = vmatprep.mubr.bf16.mxu0 0
    %1777 = vmatmul.mubr.bf16.gmra.mxu0 %v1739
    %v1778 = vpop.f32.mrf.mxu0
    %v1779 = vadd.f32 %v1709, %v1778
    %v1780 = vpop.f32.mrf.mxu0
    %v1781 = vpop.f32.mrf.mxu0
    %v1782 = vadd.f32 %v1714, %v1781
    %v1783 = vpop.f32.mrf.mxu0
    %1784 = vmatprep.mubr.bf16.mxu0 0
    %1785 = vmatmul.mubr.bf16.gmra.mxu0 %v1742
    %v1786 = vpop.f32.mrf.mxu0
    %v1787 = vadd.f32 %v1719, %v1786
    %v1788 = vpop.f32.mrf.mxu0
    %v1789 = vpop.f32.mrf.mxu0
    %v1790 = vadd.f32 %v1724, %v1789
    %v1791 = vpop.f32.mrf.mxu0
    %1792 = vdwg.mxu0
    %v1793 = vmul.f32 %v1779, 0.2
    %v1794 = vmul.f32 %v1782, 0.2
    %v1795 = vmul.f32 %v1787, 0.2
    %v1796 = vmul.f32 %v1790, 0.2
    %v1797 = vmax.f32 %v1779, %v1793
    %v1798 = vmax.f32 %v1782, %v1794
    %v1799 = vmax.f32 %v1787, %v1795
    %v1800 = vmax.f32 %v1790, %v1796
    %v1801 = vpack.c.bf16 %v1798, %v1797
    %v1802 = vpack.c.bf16 %v1800, %v1799
    %v1803 = vld [vmem:[%s7] sm:$0x7]
    %v1804 = vlaneseq
    %v1805 = vshrl.u32 %v1804, 7
    %v1806 = vsub.s32 0, %v1805
    %v1807 = vrot.slane %v1649, %v1806
    %1809 = vrot.lane.b32.xlu0 %v1807, 96
    %v1810 = vpop.permute.xlu0 %1809
    %v1812 = vmul.f32 %v1803, %v1810
    %v1813 = vpack.c.bf16 %v1812, %v1812
    %v1814 = vld [vmem:[%s8] sm:$0x7]
    %1816 = vset.pattern.permute.xlu0 0
    %1817 = vperm.xlu0 %1816, %v1814
    %v1818 = vpop.permute.xlu0 %1817
    %v1821 = vsel %vm1671, %v1813, 0
    %1823 = vmatprep.subr.bf16.mxu0 0
    %1824 = vmatpush1.bf16.msra.mxu0 0
    %1825 = vmatprep.subr.bf16.mxu0 0
    %1826 = vmatpush1.bf16.msra.mxu0 0
    %1827 = vmatprep.subr.bf16.mxu0 0
    %1828 = vmatpush1.bf16.msra.mxu0 0
    %1829 = vmatprep.subr.bf16.mxu0 0
    %1830 = vmatpush1.bf16.msra.mxu0 0
    %1831 = vmatprep.subr.bf16.mxu0 0
    %1832 = vmatpush1.bf16.msra.mxu0 0
    %1833 = vmatprep.subr.bf16.mxu0 0
    %1834 = vmatpush1.bf16.msra.mxu0 0
    %1835 = vmatprep.subr.bf16.mxu0 0
    %1836 = vmatpush1.bf16.msra.mxu0 %v1802
    %1837 = vmatprep.subr.bf16.mxu0 0
    %1838 = vmatpush1.bf16.msra.mxu0 %v1801
    %1839 = vmatprep.subr.bf16.mxu0 0
    %1840 = vmatpush2.bf16.msra.mxu0 0
    %1841 = vmatprep.subr.bf16.mxu0 0
    %1842 = vmatpush2.bf16.msra.mxu0 0
    %1843 = vmatprep.subr.bf16.mxu0 0
    %1844 = vmatpush2.bf16.msra.mxu0 0
    %1845 = vmatprep.subr.bf16.mxu0 0
    %1846 = vmatpush2.bf16.msra.mxu0 0
    %1847 = vmatprep.subr.bf16.mxu0 0
    %1848 = vmatpush2.bf16.msra.mxu0 0
    %1849 = vmatprep.subr.bf16.mxu0 0
    %1850 = vmatpush2.bf16.msra.mxu0 0
    %1851 = vmatprep.subr.bf16.mxu0 0
    %1852 = vmatpush2.bf16.msra.mxu0 0
    %1853 = vmatprep.subr.bf16.mxu0 0
    %1854 = vmatpush2.bf16.msra.mxu0 0
    %1855 = vmatprep.mubr.bf16.mxu0 0
    %1856 = vmatmul.mubr.bf16.gmra.mxu0 %v1821
    %v1857 = vpop.f32.mrf.mxu0
    %v1858 = vadd.f32 %v1818, %v1857
    %v1859 = vpop.f32.mrf.mxu0
    %v1860 = vpop.f32.mrf.mxu0
    %v1861 = vpop.f32.mrf.mxu0
    %1862 = vdwg.mxu0
    %v1863 = vpack.c.bf16 %v1858, %v1858
    %v1864 = vld [vmem:[%s12] sm:$0xf]
    %v1865 = vld [vmem:[%s12 + $0x4] sm:$0xf]
    %v1866 = vld [vmem:[%s10] sm:$0xf]
    %v1867 = vld [vmem:[%s10 + $0x4] sm:$0xf]
    %v1870 = vunpack.c.l.b16 %v1866
    %v1871 = vunpack.c.l.b16 %v1867
    %v1872 = vpack.c.b16 %v1871, %v1870
    %vm1874 = vcmask 130048
    %v1876 = vsel %vm1874, %v1801, 0
    %v1879 = vsel %vm1874, %v1802, 0
    %1881 = vmatprep.subr.bf16.mxu0 0
    %1882 = vmatpush1.bf16.msra.mxu0 0
    %1883 = vmatprep.subr.bf16.mxu0 0
    %1884 = vmatpush1.bf16.msra.mxu0 0
    %1885 = vmatprep.subr.bf16.mxu0 0
    %1886 = vmatpush1.bf16.msra.mxu0 0
    %1887 = vmatprep.subr.bf16.mxu0 0
    %1888 = vmatpush1.bf16.msra.mxu0 0
    %1889 = vmatprep.subr.bf16.mxu0 0
    %1890 = vmatpush1.bf16.msra.mxu0 0
    %1891 = vmatprep.subr.bf16.mxu0 0
    %1892 = vmatpush1.bf16.msra.mxu0 0
    %1893 = vmatprep.subr.bf16.mxu0 0
    %1894 = vmatpush1.bf16.msra.mxu0 0
    %1895 = vmatprep.subr.bf16.mxu0 0
    %1896 = vmatpush1.bf16.msra.mxu0 %v1872
    %1897 = vmatprep.subr.bf16.mxu0 0
    %1898 = vmatpush2.bf16.msra.mxu0 0
    %1899 = vmatprep.subr.bf16.mxu0 0
    %1900 = vmatpush2.bf16.msra.mxu0 0
    %1901 = vmatprep.subr.bf16.mxu0 0
    %1902 = vmatpush2.bf16.msra.mxu0 0
    %1903 = vmatprep.subr.bf16.mxu0 0
    %1904 = vmatpush2.bf16.msra.mxu0 0
    %1905 = vmatprep.subr.bf16.mxu0 0
    %1906 = vmatpush2.bf16.msra.mxu0 0
    %1907 = vmatprep.subr.bf16.mxu0 0
    %1908 = vmatpush2.bf16.msra.mxu0 0
    %1909 = vmatprep.subr.bf16.mxu0 0
    %1910 = vmatpush2.bf16.msra.mxu0 0
    %1911 = vmatprep.subr.bf16.mxu0 0
    %1912 = vmatpush2.bf16.msra.mxu0 0
    %1913 = vmatprep.mubr.bf16.mxu0 0
    %1914 = vmatmul.mubr.bf16.gmra.mxu0 %v1876
    %v1915 = vpop.f32.mrf.mxu0
    %v1916 = vadd.f32 0.0, %v1915
    %v1917 = vpop.f32.mrf.mxu0
    %v1918 = vpop.f32.mrf.mxu0
    %v1919 = vadd.f32 0.0, %v1918
    %v1920 = vpop.f32.mrf.mxu0
    %1921 = vmatprep.mubr.bf16.mxu0 0
    %1922 = vmatmul.mubr.bf16.gmra.mxu0 %v1879
    %v1923 = vpop.f32.mrf.mxu0
    %v1924 = vadd.f32 0.0, %v1923
    %v1925 = vpop.f32.mrf.mxu0
    %v1926 = vpop.f32.mrf.mxu0
    %v1927 = vadd.f32 0.0, %v1926
    %v1928 = vpop.f32.mrf.mxu0
    %1929 = vdwg.mxu0
    %v1930 = vpack.c.bf16 %v1919, %v1916
    %v1931 = vpack.c.bf16 %v1927, %v1924
    %s1932 = scalar_lea.vmem %s5, 32
    %v1933 = vld [vmem:[%s1932] sm:$0xff]
    %v1934 = vld [vmem:[%s1932 + $0x8] sm:$0xff]
    %v1935 = vld [vmem:[%s1932 + $0x10] sm:$0xff]
    %v1936 = vld [vmem:[%s1932 + $0x18] sm:$0xff]
    %1938 = vrot.lane.b32.xlu0 %v1662, 96
    %v1939 = vpop.permute.xlu0 %1938
    %v1941 = vmul.f32 %v1933, %v1939
    %v1942 = vmul.f32 %v1934, %v1939
    %v1943 = vmul.f32 %v1935, %v1939
    %v1944 = vmul.f32 %v1936, %v1939
    %v1945 = vmul.f32 %v1941, %v1941
    %v1946 = vmul.f32 %v1942, %v1942
    %v1947 = vmul.f32 %v1943, %v1943
    %v1948 = vmul.f32 %v1944, %v1944
    %v1949 = vsel %vm1671, %v1945, 0.0
    %1950 = vadd.xlane.f32.xlu0 %v1949
    %v1951 = vpop.xlane.xlu0 %1950
    %v1952 = vsel %vm1671, %v1946, 0.0
    %1953 = vadd.xlane.f32.xlu0 %v1952
    %v1954 = vpop.xlane.xlu0 %1953
    %v1955 = vsel %vm1671, %v1947, 0.0
    %1956 = vadd.xlane.f32.xlu0 %v1955
    %v1957 = vpop.xlane.xlu0 %1956
    %v1958 = vsel %vm1671, %v1948, 0.0
    %1959 = vadd.xlane.f32.xlu0 %v1958
    %v1960 = vpop.xlane.xlu0 %1959
    %v1961 = vmul.f32 %v1951, 0.5
    %v1962 = vmul.f32 %v1954, 0.5
    %v1963 = vmul.f32 %v1957, 0.5
    %v1964 = vmul.f32 %v1960, 0.5
    %v1965 = vadd.f32 %v1961, 5e-09
    %v1966 = vadd.f32 %v1962, 5e-09
    %v1967 = vadd.f32 %v1963, 5e-09
    %v1968 = vadd.f32 %v1964, 5e-09
    %v1969 = vrsqrt.pop %v1965
    %v1970 = vrsqrt.pop %v1966
    %v1971 = vrsqrt.pop %v1967
    %v1972 = vrsqrt.pop %v1968
    %v1973 = vmul.f32 %v1941, %v1969
    %v1974 = vmul.f32 %v1942, %v1970
    %v1975 = vmul.f32 %v1943, %v1971
    %v1976 = vmul.f32 %v1944, %v1972
    %v1977 = vpack.c.bf16 %v1974, %v1973
    %v1978 = vpack.c.bf16 %v1976, %v1975
    %s1979 = scalar_lea.vmem %s6, 32
    %v1980 = vld [vmem:[%s1979] sm:$0xff]
    %v1981 = vld [vmem:[%s1979 + $0x8] sm:$0xff]
    %v1982 = vld [vmem:[%s1979 + $0x10] sm:$0xff]
    %v1983 = vld [vmem:[%s1979 + $0x18] sm:$0xff]
    %1985 = vset.pattern.permute.xlu0 0
    %1986 = vperm.xlu0 %1985, %v1980
    %v1987 = vpop.permute.xlu0 %1986
    %1990 = vset.pattern.permute.xlu0 0
    %1991 = vperm.xlu0 %1990, %v1981
    %v1992 = vpop.permute.xlu0 %1991
    %1995 = vset.pattern.permute.xlu0 0
    %1996 = vperm.xlu0 %1995, %v1982
    %v1997 = vpop.permute.xlu0 %1996
    %2000 = vset.pattern.permute.xlu0 0
    %2001 = vperm.xlu0 %2000, %v1983
    %v2002 = vpop.permute.xlu0 %2001
    %v2005 = vsel %vm1671, %v1977, 0
    %v2008 = vsel %vm1671, %v1978, 0
    %2010 = vmatprep.subr.bf16.mxu0 0
    %2011 = vmatpush1.bf16.msra.mxu0 0
    %2012 = vmatprep.subr.bf16.mxu0 0
    %2013 = vmatpush1.bf16.msra.mxu0 0
    %2014 = vmatprep.subr.bf16.mxu0 0
    %2015 = vmatpush1.bf16.msra.mxu0 0
    %2016 = vmatprep.subr.bf16.mxu0 0
    %2017 = vmatpush1.bf16.msra.mxu0 0
    %2018 = vmatprep.subr.bf16.mxu0 0
    %2019 = vmatpush1.bf16.msra.mxu0 0
    %2020 = vmatprep.subr.bf16.mxu0 0
    %2021 = vmatpush1.bf16.msra.mxu0 0
    %2022 = vmatprep.subr.bf16.mxu0 0
    %2023 = vmatpush1.bf16.msra.mxu0 %v1931
    %2024 = vmatprep.subr.bf16.mxu0 0
    %2025 = vmatpush1.bf16.msra.mxu0 %v1930
    %2026 = vmatprep.subr.bf16.mxu0 0
    %2027 = vmatpush2.bf16.msra.mxu0 0
    %2028 = vmatprep.subr.bf16.mxu0 0
    %2029 = vmatpush2.bf16.msra.mxu0 0
    %2030 = vmatprep.subr.bf16.mxu0 0
    %2031 = vmatpush2.bf16.msra.mxu0 0
    %2032 = vmatprep.subr.bf16.mxu0 0
    %2033 = vmatpush2.bf16.msra.mxu0 0
    %2034 = vmatprep.subr.bf16.mxu0 0
    %2035 = vmatpush2.bf16.msra.mxu0 0
    %2036 = vmatprep.subr.bf16.mxu0 0
    %2037 = vmatpush2.bf16.msra.mxu0 0
    %2038 = vmatprep.subr.bf16.mxu0 0
    %2039 = vmatpush2.bf16.msra.mxu0 0
    %2040 = vmatprep.subr.bf16.mxu0 0
    %2041 = vmatpush2.bf16.msra.mxu0 0
    %2042 = vmatprep.mubr.bf16.mxu0 0
    %2043 = vmatmul.mubr.bf16.gmra.mxu0 %v2005
    %v2044 = vpop.f32.mrf.mxu0
    %v2045 = vadd.f32 %v1987, %v2044
    %v2046 = vpop.f32.mrf.mxu0
    %v2047 = vpop.f32.mrf.mxu0
    %v2048 = vadd.f32 %v1992, %v2047
    %v2049 = vpop.f32.mrf.mxu0
    %2050 = vmatprep.mubr.bf16.mxu0 0
    %2051 = vmatmul.mubr.bf16.gmra.mxu0 %v2008
    %v2052 = vpop.f32.mrf.mxu0
    %v2053 = vadd.f32 %v1997, %v2052
    %v2054 = vpop.f32.mrf.mxu0
    %v2055 = vpop.f32.mrf.mxu0
    %v2056 = vadd.f32 %v2002, %v2055
    %v2057 = vpop.f32.mrf.mxu0
    %2058 = vdwg.mxu0
    %v2059 = vmul.f32 %v2045, 0.2
    %v2060 = vmul.f32 %v2048, 0.2
    %v2061 = vmul.f32 %v2053, 0.2
    %v2062 = vmul.f32 %v2056, 0.2
    %v2063 = vmax.f32 %v2045, %v2059
    %v2064 = vmax.f32 %v2048, %v2060
    %v2065 = vmax.f32 %v2053, %v2061
    %v2066 = vmax.f32 %v2056, %v2062
    %v2067 = vpack.c.bf16 %v2064, %v2063
    %v2068 = vpack.c.bf16 %v2066, %v2065
    %s2069 = scalar_lea.vmem %s5, 64
    %v2070 = vld [vmem:[%s2069] sm:$0xff]
    %v2071 = vld [vmem:[%s2069 + $0x8] sm:$0xff]
    %v2072 = vld [vmem:[%s2069 + $0x10] sm:$0xff]
    %v2073 = vld [vmem:[%s2069 + $0x18] sm:$0xff]
    %2074 = vrot.lane.b32.xlu0 %v1662, 64
    %v2075 = vpop.permute.xlu0 %2074
    %v2077 = vmul.f32 %v2070, %v2075
    %v2078 = vmul.f32 %v2071, %v2075
    %v2079 = vmul.f32 %v2072, %v2075
    %v2080 = vmul.f32 %v2073, %v2075
    %v2081 = vmul.f32 %v2077, %v2077
    %v2082 = vmul.f32 %v2078, %v2078
    %v2083 = vmul.f32 %v2079, %v2079
    %v2084 = vmul.f32 %v2080, %v2080
    %v2085 = vsel %vm1671, %v2081, 0.0
    %2086 = vadd.xlane.f32.xlu0 %v2085
    %v2087 = vpop.xlane.xlu0 %2086
    %v2088 = vsel %vm1671, %v2082, 0.0
    %2089 = vadd.xlane.f32.xlu0 %v2088
    %v2090 = vpop.xlane.xlu0 %2089
    %v2091 = vsel %vm1671, %v2083, 0.0
    %2092 = vadd.xlane.f32.xlu0 %v2091
    %v2093 = vpop.xlane.xlu0 %2092
    %v2094 = vsel %vm1671, %v2084, 0.0
    %2095 = vadd.xlane.f32.xlu0 %v2094
    %v2096 = vpop.xlane.xlu0 %2095
    %v2097 = vmul.f32 %v2087, 0.5
    %v2098 = vmul.f32 %v2090, 0.5
    %v2099 = vmul.f32 %v2093, 0.5
    %v2100 = vmul.f32 %v2096, 0.5
    %v2101 = vadd.f32 %v2097, 5e-09
    %v2102 = vadd.f32 %v2098, 5e-09
    %v2103 = vadd.f32 %v2099, 5e-09
    %v2104 = vadd.f32 %v2100, 5e-09
    %v2105 = vrsqrt.pop %v2101
    %v2106 = vrsqrt.pop %v2102
    %v2107 = vrsqrt.pop %v2103
    %v2108 = vrsqrt.pop %v2104
    %v2109 = vmul.f32 %v2077, %v2105
    %v2110 = vmul.f32 %v2078, %v2106
    %v2111 = vmul.f32 %v2079, %v2107
    %v2112 = vmul.f32 %v2080, %v2108
    %v2113 = vpack.c.bf16 %v2110, %v2109
    %v2114 = vpack.c.bf16 %v2112, %v2111
    %s2115 = scalar_lea.vmem %s6, 64
    %v2116 = vld [vmem:[%s2115] sm:$0xff]
    %v2117 = vld [vmem:[%s2115 + $0x8] sm:$0xff]
    %v2118 = vld [vmem:[%s2115 + $0x10] sm:$0xff]
    %v2119 = vld [vmem:[%s2115 + $0x18] sm:$0xff]
    %2121 = vset.pattern.permute.xlu0 0
    %2122 = vperm.xlu0 %2121, %v2116
    %v2123 = vpop.permute.xlu0 %2122
    %2126 = vset.pattern.permute.xlu0 0
    %2127 = vperm.xlu0 %2126, %v2117
    %v2128 = vpop.permute.xlu0 %2127
    %2131 = vset.pattern.permute.xlu0 0
    %2132 = vperm.xlu0 %2131, %v2118
    %v2133 = vpop.permute.xlu0 %2132
    %2136 = vset.pattern.permute.xlu0 0
    %2137 = vperm.xlu0 %2136, %v2119
    %v2138 = vpop.permute.xlu0 %2137
    %v2141 = vsel %vm1671, %v2113, 0
    %v2144 = vsel %vm1671, %v2114, 0
    %2146 = vmatprep.subr.bf16.mxu0 0
    %2147 = vmatpush1.bf16.msra.mxu0 0
    %2148 = vmatprep.subr.bf16.mxu0 0
    %2149 = vmatpush1.bf16.msra.mxu0 0
    %2150 = vmatprep.subr.bf16.mxu0 0
    %2151 = vmatpush1.bf16.msra.mxu0 0
    %2152 = vmatprep.subr.bf16.mxu0 0
    %2153 = vmatpush1.bf16.msra.mxu0 0
    %2154 = vmatprep.subr.bf16.mxu0 0
    %2155 = vmatpush1.bf16.msra.mxu0 0
    %2156 = vmatprep.subr.bf16.mxu0 0
    %2157 = vmatpush1.bf16.msra.mxu0 0
    %2158 = vmatprep.subr.bf16.mxu0 0
    %2159 = vmatpush1.bf16.msra.mxu0 %v2068
    %2160 = vmatprep.subr.bf16.mxu0 0
    %2161 = vmatpush1.bf16.msra.mxu0 %v2067
    %2162 = vmatprep.subr.bf16.mxu0 0
    %2163 = vmatpush2.bf16.msra.mxu0 0
    %2164 = vmatprep.subr.bf16.mxu0 0
    %2165 = vmatpush2.bf16.msra.mxu0 0
    %2166 = vmatprep.subr.bf16.mxu0 0
    %2167 = vmatpush2.bf16.msra.mxu0 0
    %2168 = vmatprep.subr.bf16.mxu0 0
    %2169 = vmatpush2.bf16.msra.mxu0 0
    %2170 = vmatprep.subr.bf16.mxu0 0
    %2171 = vmatpush2.bf16.msra.mxu0 0
    %2172 = vmatprep.subr.bf16.mxu0 0
    %2173 = vmatpush2.bf16.msra.mxu0 0
    %2174 = vmatprep.subr.bf16.mxu0 0
    %2175 = vmatpush2.bf16.msra.mxu0 0
    %2176 = vmatprep.subr.bf16.mxu0 0
    %2177 = vmatpush2.bf16.msra.mxu0 0
    %2178 = vmatprep.mubr.bf16.mxu0 0
    %2179 = vmatmul.mubr.bf16.gmra.mxu0 %v2141
    %v2180 = vpop.f32.mrf.mxu0
    %v2181 = vadd.f32 %v2123, %v2180
    %v2182 = vpop.f32.mrf.mxu0
    %v2183 = vpop.f32.mrf.mxu0
    %v2184 = vadd.f32 %v2128, %v2183
    %v2185 = vpop.f32.mrf.mxu0
    %2186 = vmatprep.mubr.bf16.mxu0 0
    %2187 = vmatmul.mubr.bf16.gmra.mxu0 %v2144
    %v2188 = vpop.f32.mrf.mxu0
    %v2189 = vadd.f32 %v2133, %v2188
    %v2190 = vpop.f32.mrf.mxu0
    %v2191 = vpop.f32.mrf.mxu0
    %v2192 = vadd.f32 %v2138, %v2191
    %v2193 = vpop.f32.mrf.mxu0
    %2194 = vdwg.mxu0
    %v2195 = vmul.f32 %v2181, 0.2
    %v2196 = vmul.f32 %v2184, 0.2
    %v2197 = vmul.f32 %v2189, 0.2
    %v2198 = vmul.f32 %v2192, 0.2
    %v2199 = vmax.f32 %v2181, %v2195
    %v2200 = vmax.f32 %v2184, %v2196
    %v2201 = vmax.f32 %v2189, %v2197
    %v2202 = vmax.f32 %v2192, %v2198
    %v2203 = vpack.c.bf16 %v2200, %v2199
    %v2204 = vpack.c.bf16 %v2202, %v2201
    %s2205 = scalar_lea.vmem %s7, 4
    %v2206 = vld [vmem:[%s2205] sm:$0x7]
    %2207 = vrot.lane.b32.xlu0 %v1807, 64
    %v2208 = vpop.permute.xlu0 %2207
    %v2210 = vmul.f32 %v2206, %v2208
    %v2211 = vpack.c.bf16 %v2210, %v2210
    %s2212 = scalar_lea.vmem %s8, 4
    %v2213 = vld [vmem:[%s2212] sm:$0x7]
    %2215 = vset.pattern.permute.xlu0 0
    %2216 = vperm.xlu0 %2215, %v2213
    %v2217 = vpop.permute.xlu0 %2216
    %v2220 = vsel %vm1671, %v2211, 0
    %2222 = vmatprep.subr.bf16.mxu0 0
    %2223 = vmatpush1.bf16.msra.mxu0 0
    %2224 = vmatprep.subr.bf16.mxu0 0
    %2225 = vmatpush1.bf16.msra.mxu0 0
    %2226 = vmatprep.subr.bf16.mxu0 0
    %2227 = vmatpush1.bf16.msra.mxu0 0
    %2228 = vmatprep.subr.bf16.mxu0 0
    %2229 = vmatpush1.bf16.msra.mxu0 0
    %2230 = vmatprep.subr.bf16.mxu0 0
    %2231 = vmatpush1.bf16.msra.mxu0 0
    %2232 = vmatprep.subr.bf16.mxu0 0
    %2233 = vmatpush1.bf16.msra.mxu0 0
    %2234 = vmatprep.subr.bf16.mxu0 0
    %2235 = vmatpush1.bf16.msra.mxu0 %v2204
    %2236 = vmatprep.subr.bf16.mxu0 0
    %2237 = vmatpush1.bf16.msra.mxu0 %v2203
    %2238 = vmatprep.subr.bf16.mxu0 0
    %2239 = vmatpush2.bf16.msra.mxu0 0
    %2240 = vmatprep.subr.bf16.mxu0 0
    %2241 = vmatpush2.bf16.msra.mxu0 0
    %2242 = vmatprep.subr.bf16.mxu0 0
    %2243 = vmatpush2.bf16.msra.mxu0 0
    %2244 = vmatprep.subr.bf16.mxu0 0
    %2245 = vmatpush2.bf16.msra.mxu0 0
    %2246 = vmatprep.subr.bf16.mxu0 0
    %2247 = vmatpush2.bf16.msra.mxu0 0
    %2248 = vmatprep.subr.bf16.mxu0 0
    %2249 = vmatpush2.bf16.msra.mxu0 0
    %2250 = vmatprep.subr.bf16.mxu0 0
    %2251 = vmatpush2.bf16.msra.mxu0 0
    %2252 = vmatprep.subr.bf16.mxu0 0
    %2253 = vmatpush2.bf16.msra.mxu0 0
    %2254 = vmatprep.mubr.bf16.mxu0 0
    %2255 = vmatmul.mubr.bf16.gmra.mxu0 %v2220
    %v2256 = vpop.f32.mrf.mxu0
    %v2257 = vadd.f32 %v2217, %v2256
    %v2258 = vpop.f32.mrf.mxu0
    %v2259 = vpop.f32.mrf.mxu0
    %v2260 = vpop.f32.mrf.mxu0
    %2261 = vdwg.mxu0
    %v2262 = vpack.c.bf16 %v2257, %v2257
    %v2263 = vld [vmem:[%s13] sm:$0xf]
    %v2264 = vld [vmem:[%s13 + $0x4] sm:$0xf]
    %v2265 = vld [vmem:[%s13 + $0x8] sm:$0xf]
    %v2266 = vld [vmem:[%s13 + $0xc] sm:$0xf]
    %v2267 = vld [vmem:[%s13 + $0x10] sm:$0xf]
    %v2268 = vld [vmem:[%s13 + $0x14] sm:$0xf]
    %v2269 = vld [vmem:[%s13 + $0x18] sm:$0xf]
    %v2270 = vld [vmem:[%s13 + $0x1c] sm:$0xf]
    %v2279 = vunpack.c.l.b16 %v2263
    %v2280 = vunpack.c.l.b16 %v2264
    %v2281 = vunpack.c.l.b16 %v2265
    %v2282 = vunpack.c.l.b16 %v2266
    %v2283 = vunpack.c.l.b16 %v2267
    %v2284 = vunpack.c.l.b16 %v2268
    %v2285 = vunpack.c.l.b16 %v2269
    %v2286 = vunpack.c.l.b16 %v2270
    %v2287 = vpack.c.b16 %v2280, %v2279
    %v2288 = vpack.c.b16 %v2282, %v2281
    %v2289 = vpack.c.b16 %v2284, %v2283
    %v2290 = vpack.c.b16 %v2286, %v2285
    %vm2295 = vcmask 523264
    %v2297 = vsel %vm2295, %v2262, 0
    %2299 = vmatprep.subr.bf16.mxu0 0
    %2300 = vmatpush1.bf16.msra.mxu0 0
    %2301 = vmatprep.subr.bf16.mxu0 0
    %2302 = vmatpush1.bf16.msra.mxu0 0
    %2303 = vmatprep.subr.bf16.mxu0 0
    %2304 = vmatpush1.bf16.msra.mxu0 0
    %2305 = vmatprep.subr.bf16.mxu0 0
    %2306 = vmatpush1.bf16.msra.mxu0 0
    %2307 = vmatprep.subr.bf16.mxu0 0
    %2308 = vmatpush1.bf16.msra.mxu0 %v2290
    %2309 = vmatprep.subr.bf16.mxu0 0
    %2310 = vmatpush1.bf16.msra.mxu0 %v2289
    %2311 = vmatprep.subr.bf16.mxu0 0
    %2312 = vmatpush1.bf16.msra.mxu0 %v2288
    %2313 = vmatprep.subr.bf16.mxu0 0
    %2314 = vmatpush1.bf16.msra.mxu0 %v2287
    %2315 = vmatprep.subr.bf16.mxu0 0
    %2316 = vmatpush2.bf16.msra.mxu0 0
    %2317 = vmatprep.subr.bf16.mxu0 0
    %2318 = vmatpush2.bf16.msra.mxu0 0
    %2319 = vmatprep.subr.bf16.mxu0 0
    %2320 = vmatpush2.bf16.msra.mxu0 0
    %2321 = vmatprep.subr.bf16.mxu0 0
    %2322 = vmatpush2.bf16.msra.mxu0 0
    %2323 = vmatprep.subr.bf16.mxu0 0
    %2324 = vmatpush2.bf16.msra.mxu0 0
    %2325 = vmatprep.subr.bf16.mxu0 0
    %2326 = vmatpush2.bf16.msra.mxu0 0
    %2327 = vmatprep.subr.bf16.mxu0 0
    %2328 = vmatpush2.bf16.msra.mxu0 0
    %2329 = vmatprep.subr.bf16.mxu0 0
    %2330 = vmatpush2.bf16.msra.mxu0 0
    %2331 = vmatprep.mubr.bf16.mxu0 0
    %2332 = vmatmul.mubr.bf16.gmra.mxu0 %v2297
    %v2333 = vpop.f32.mrf.mxu0
    %v2334 = vadd.f32 0.0, %v2333
    %v2335 = vpop.f32.mrf.mxu0
    %v2336 = vpop.f32.mrf.mxu0
    %v2337 = vpop.f32.mrf.mxu0
    %2338 = vdwg.mxu0
    %v2341 = vunpack.c.l.b16 %v1864
    %v2342 = vunpack.c.l.b16 %v1865
    %v2343 = vpack.c.b16 %v2342, %v2341
    %v2346 = vsel %vm1874, %v1863, 0
    %2348 = vmatprep.subr.bf16.mxu0 0
    %2349 = vmatpush1.bf16.msra.mxu0 0
    %2350 = vmatprep.subr.bf16.mxu0 0
    %2351 = vmatpush1.bf16.msra.mxu0 0
    %2352 = vmatprep.subr.bf16.mxu0 0
    %2353 = vmatpush1.bf16.msra.mxu0 0
    %2354 = vmatprep.subr.bf16.mxu0 0
    %2355 = vmatpush1.bf16.msra.mxu0 0
    %2356 = vmatprep.subr.bf16.mxu0 0
    %2357 = vmatpush1.bf16.msra.mxu0 0
    %2358 = vmatprep.subr.bf16.mxu0 0
    %2359 = vmatpush1.bf16.msra.mxu0 0
    %2360 = vmatprep.subr.bf16.mxu0 0
    %2361 = vmatpush1.bf16.msra.mxu0 0
    %2362 = vmatprep.subr.bf16.mxu0 0
    %2363 = vmatpush1.bf16.msra.mxu0 %v2343
    %2364 = vmatprep.subr.bf16.mxu0 0
    %2365 = vmatpush2.bf16.msra.mxu0 0
    %2366 = vmatprep.subr.bf16.mxu0 0
    %2367 = vmatpush2.bf16.msra.mxu0 0
    %2368 = vmatprep.subr.bf16.mxu0 0
    %2369 = vmatpush2.bf16.msra.mxu0 0
    %2370 = vmatprep.subr.bf16.mxu0 0
    %2371 = vmatpush2.bf16.msra.mxu0 0
    %2372 = vmatprep.subr.bf16.mxu0 0
    %2373 = vmatpush2.bf16.msra.mxu0 0
    %2374 = vmatprep.subr.bf16.mxu0 0
    %2375 = vmatpush2.bf16.msra.mxu0 0
    %2376 = vmatprep.subr.bf16.mxu0 0
    %2377 = vmatpush2.bf16.msra.mxu0 0
    %2378 = vmatprep.subr.bf16.mxu0 0
    %2379 = vmatpush2.bf16.msra.mxu0 0
    %2380 = vmatprep.mubr.bf16.mxu0 0
    %2381 = vmatmul.mubr.bf16.gmra.mxu0 %v2346
    %v2382 = vpop.f32.mrf.mxu0
    %v2383 = vadd.f32 %v2334, %v2382
    %v2384 = vpop.f32.mrf.mxu0
    %v2385 = vpop.f32.mrf.mxu0
    %v2386 = vpop.f32.mrf.mxu0
    %2387 = vdwg.mxu0
    %v2388 = vld [vmem:[%s11] sm:$0xff]
    %v2389 = vld [vmem:[%s11 + $0x8] sm:$0xff]
    %v2390 = vld [vmem:[%s11 + $0x10] sm:$0xff]
    %v2391 = vld [vmem:[%s11 + $0x18] sm:$0xff]
    %v2392 = vld [vmem:[%s11 + $0x20] sm:$0xff]
    %v2393 = vld [vmem:[%s11 + $0x28] sm:$0xff]
    %v2394 = vld [vmem:[%s11 + $0x30] sm:$0xff]
    %v2395 = vld [vmem:[%s11 + $0x38] sm:$0xff]
    %v2404 = vunpack.c.l.b16 %v2388
    %v2405 = vunpack.c.h.b16 %v2388
    %v2406 = vunpack.c.l.b16 %v2389
    %v2407 = vunpack.c.h.b16 %v2389
    %v2408 = vunpack.c.l.b16 %v2390
    %v2409 = vunpack.c.h.b16 %v2390
    %v2410 = vunpack.c.l.b16 %v2391
    %v2411 = vunpack.c.h.b16 %v2391
    %v2412 = vunpack.c.l.b16 %v2392
    %v2413 = vunpack.c.h.b16 %v2392
    %v2414 = vunpack.c.l.b16 %v2393
    %v2415 = vunpack.c.h.b16 %v2393
    %v2416 = vunpack.c.l.b16 %v2394
    %v2417 = vunpack.c.h.b16 %v2394
    %v2418 = vunpack.c.l.b16 %v2395
    %v2419 = vunpack.c.h.b16 %v2395
    %v2420 = vpack.c.b16 %v2406, %v2404
    %v2421 = vpack.c.b16 %v2407, %v2405
    %v2422 = vpack.c.b16 %v2410, %v2408
    %v2423 = vpack.c.b16 %v2411, %v2409
    %v2424 = vpack.c.b16 %v2414, %v2412
    %v2425 = vpack.c.b16 %v2415, %v2413
    %v2426 = vpack.c.b16 %v2418, %v2416
    %v2427 = vpack.c.b16 %v2419, %v2417
    %v2437 = vsel %vm2295, %v2203, 0
    %v2440 = vsel %vm2295, %v2204, 0
    %2442 = vmatprep.subr.bf16.mxu0 0
    %2443 = vmatpush1.bf16.msra.mxu0 0
    %2444 = vmatprep.subr.bf16.mxu0 0
    %2445 = vmatpush1.bf16.msra.mxu0 0
    %2446 = vmatprep.subr.bf16.mxu0 0
    %2447 = vmatpush1.bf16.msra.mxu0 0
    %2448 = vmatprep.subr.bf16.mxu0 0
    %2449 = vmatpush1.bf16.msra.mxu0 0
    %2450 = vmatprep.subr.bf16.mxu0 %v2427
    %2451 = vmatpush1.bf16.msra.mxu0 %v2426
    %2452 = vmatprep.subr.bf16.mxu0 %v2425
    %2453 = vmatpush1.bf16.msra.mxu0 %v2424
    %2454 = vmatprep.subr.bf16.mxu0 %v2423
    %2455 = vmatpush1.bf16.msra.mxu0 %v2422
    %2456 = vmatprep.subr.bf16.mxu0 %v2421
    %2457 = vmatpush1.bf16.msra.mxu0 %v2420
    %2458 = vmatprep.subr.bf16.mxu0 0
    %2459 = vmatpush2.bf16.msra.mxu0 0
    %2460 = vmatprep.subr.bf16.mxu0 0
    %2461 = vmatpush2.bf16.msra.mxu0 0
    %2462 = vmatprep.subr.bf16.mxu0 0
    %2463 = vmatpush2.bf16.msra.mxu0 0
    %2464 = vmatprep.subr.bf16.mxu0 0
    %2465 = vmatpush2.bf16.msra.mxu0 0
    %2466 = vmatprep.subr.bf16.mxu0 0
    %2467 = vmatpush2.bf16.msra.mxu0 0
    %2468 = vmatprep.subr.bf16.mxu0 0
    %2469 = vmatpush2.bf16.msra.mxu0 0
    %2470 = vmatprep.subr.bf16.mxu0 0
    %2471 = vmatpush2.bf16.msra.mxu0 0
    %2472 = vmatprep.subr.bf16.mxu0 0
    %2473 = vmatpush2.bf16.msra.mxu0 0
    %2474 = vmatprep.mubr.bf16.mxu0 0
    %2475 = vmatmul.mubr.bf16.gmra.mxu0 %v2437
    %v2476 = vpop.f32.mrf.mxu0
    %v2477 = vadd.f32 0.0, %v2476
    %v2478 = vpop.f32.mrf.mxu0
    %v2479 = vadd.f32 0.0, %v2478
    %v2480 = vpop.f32.mrf.mxu0
    %v2481 = vadd.f32 0.0, %v2480
    %v2482 = vpop.f32.mrf.mxu0
    %v2483 = vadd.f32 0.0, %v2482
    %2484 = vmatprep.mubr.bf16.mxu0 0
    %2485 = vmatmul.mubr.bf16.gmra.mxu0 %v2440
    %v2486 = vpop.f32.mrf.mxu0
    %v2487 = vadd.f32 0.0, %v2486
    %v2488 = vpop.f32.mrf.mxu0
    %v2489 = vadd.f32 0.0, %v2488
    %v2490 = vpop.f32.mrf.mxu0
    %v2491 = vadd.f32 0.0, %v2490
    %v2492 = vpop.f32.mrf.mxu0
    %v2493 = vadd.f32 0.0, %v2492
    %2494 = vdwg.mxu0
    %v2495 = vpack.c.bf16 %v2481, %v2477
    %v2496 = vpack.c.bf16 %v2483, %v2479
    %v2497 = vpack.c.bf16 %v2491, %v2487
    %v2498 = vpack.c.bf16 %v2493, %v2489
    %s2499 = scalar_lea.vmem %s5, 96
    %v2500 = vld [vmem:[%s2499] sm:$0xff]
    %v2501 = vld [vmem:[%s2499 + $0x8] sm:$0xff]
    %v2502 = vld [vmem:[%s2499 + $0x10] sm:$0xff]
    %v2503 = vld [vmem:[%s2499 + $0x18] sm:$0xff]
    %2504 = vrot.lane.b32.xlu0 %v1662, 32
    %v2505 = vpop.permute.xlu0 %2504
    %v2507 = vmul.f32 %v2500, %v2505
    %v2508 = vmul.f32 %v2501, %v2505
    %v2509 = vmul.f32 %v2502, %v2505
    %v2510 = vmul.f32 %v2503, %v2505
    %v2511 = vmul.f32 %v2507, %v2507
    %v2512 = vmul.f32 %v2508, %v2508
    %v2513 = vmul.f32 %v2509, %v2509
    %v2514 = vmul.f32 %v2510, %v2510
    %v2515 = vsel %vm1671, %v2511, 0.0
    %2516 = vadd.xlane.f32.xlu0 %v2515
    %v2517 = vpop.xlane.xlu0 %2516
    %v2518 = vsel %vm1671, %v2512, 0.0
    %2519 = vadd.xlane.f32.xlu0 %v2518
    %v2520 = vpop.xlane.xlu0 %2519
    %v2521 = vsel %vm1671, %v2513, 0.0
    %2522 = vadd.xlane.f32.xlu0 %v2521
    %v2523 = vpop.xlane.xlu0 %2522
    %v2524 = vsel %vm1671, %v2514, 0.0
    %2525 = vadd.xlane.f32.xlu0 %v2524
    %v2526 = vpop.xlane.xlu0 %2525
    %v2527 = vmul.f32 %v2517, 0.5
    %v2528 = vmul.f32 %v2520, 0.5
    %v2529 = vmul.f32 %v2523, 0.5
    %v2530 = vmul.f32 %v2526, 0.5
    %v2531 = vadd.f32 %v2527, 5e-09
    %v2532 = vadd.f32 %v2528, 5e-09
    %v2533 = vadd.f32 %v2529, 5e-09
    %v2534 = vadd.f32 %v2530, 5e-09
    %v2535 = vrsqrt.pop %v2531
    %v2536 = vrsqrt.pop %v2532
    %v2537 = vrsqrt.pop %v2533
    %v2538 = vrsqrt.pop %v2534
    %v2539 = vmul.f32 %v2507, %v2535
    %v2540 = vmul.f32 %v2508, %v2536
    %v2541 = vmul.f32 %v2509, %v2537
    %v2542 = vmul.f32 %v2510, %v2538
    %v2543 = vpack.c.bf16 %v2540, %v2539
    %v2544 = vpack.c.bf16 %v2542, %v2541
    %s2545 = scalar_lea.vmem %s6, 96
    %v2546 = vld [vmem:[%s2545] sm:$0xff]
    %v2547 = vld [vmem:[%s2545 + $0x8] sm:$0xff]
    %v2548 = vld [vmem:[%s2545 + $0x10] sm:$0xff]
    %v2549 = vld [vmem:[%s2545 + $0x18] sm:$0xff]
    %2551 = vset.pattern.permute.xlu0 0
    %2552 = vperm.xlu0 %2551, %v2546
    %v2553 = vpop.permute.xlu0 %2552
    %2556 = vset.pattern.permute.xlu0 0
    %2557 = vperm.xlu0 %2556, %v2547
    %v2558 = vpop.permute.xlu0 %2557
    %2561 = vset.pattern.permute.xlu0 0
    %2562 = vperm.xlu0 %2561, %v2548
    %v2563 = vpop.permute.xlu0 %2562
    %2566 = vset.pattern.permute.xlu0 0
    %2567 = vperm.xlu0 %2566, %v2549
    %v2568 = vpop.permute.xlu0 %2567
    %v2571 = vsel %vm1671, %v2543, 0
    %v2574 = vsel %vm1671, %v2544, 0
    %2576 = vmatprep.subr.bf16.mxu0 0
    %2577 = vmatpush1.bf16.msra.mxu0 0
    %2578 = vmatprep.subr.bf16.mxu0 0
    %2579 = vmatpush1.bf16.msra.mxu0 0
    %2580 = vmatprep.subr.bf16.mxu0 0
    %2581 = vmatpush1.bf16.msra.mxu0 0
    %2582 = vmatprep.subr.bf16.mxu0 0
    %2583 = vmatpush1.bf16.msra.mxu0 0
    %2584 = vmatprep.subr.bf16.mxu0 0
    %2585 = vmatpush1.bf16.msra.mxu0 0
    %2586 = vmatprep.subr.bf16.mxu0 0
    %2587 = vmatpush1.bf16.msra.mxu0 0
    %2588 = vmatprep.subr.bf16.mxu0 %v2498
    %2589 = vmatpush1.bf16.msra.mxu0 %v2497
    %2590 = vmatprep.subr.bf16.mxu0 %v2496
    %2591 = vmatpush1.bf16.msra.mxu0 %v2495
    %2592 = vmatprep.subr.bf16.mxu0 0
    %2593 = vmatpush2.bf16.msra.mxu0 0
    %2594 = vmatprep.subr.bf16.mxu0 0
    %2595 = vmatpush2.bf16.msra.mxu0 0
    %2596 = vmatprep.subr.bf16.mxu0 0
    %2597 = vmatpush2.bf16.msra.mxu0 0
    %2598 = vmatprep.subr.bf16.mxu0 0
    %2599 = vmatpush2.bf16.msra.mxu0 0
    %2600 = vmatprep.subr.bf16.mxu0 0
    %2601 = vmatpush2.bf16.msra.mxu0 0
    %2602 = vmatprep.subr.bf16.mxu0 0
    %2603 = vmatpush2.bf16.msra.mxu0 0
    %2604 = vmatprep.subr.bf16.mxu0 0
    %2605 = vmatpush2.bf16.msra.mxu0 0
    %2606 = vmatprep.subr.bf16.mxu0 0
    %2607 = vmatpush2.bf16.msra.mxu0 0
    %2608 = vmatprep.mubr.bf16.mxu0 0
    %2609 = vmatmul.mubr.bf16.gmra.mxu0 %v2571
    %v2610 = vpop.f32.mrf.mxu0
    %v2611 = vadd.f32 %v2553, %v2610
    %v2612 = vpop.f32.mrf.mxu0
    %v2613 = vadd.f32 %v2553, %v2612
    %v2614 = vpop.f32.mrf.mxu0
    %v2615 = vadd.f32 %v2558, %v2614
    %v2616 = vpop.f32.mrf.mxu0
    %v2617 = vadd.f32 %v2558, %v2616
    %2618 = vmatprep.mubr.bf16.mxu0 0
    %2619 = vmatmul.mubr.bf16.gmra.mxu0 %v2574
    %v2620 = vpop.f32.mrf.mxu0
    %v2621 = vadd.f32 %v2563, %v2620
    %v2622 = vpop.f32.mrf.mxu0
    %v2623 = vadd.f32 %v2563, %v2622
    %v2624 = vpop.f32.mrf.mxu0
    %v2625 = vadd.f32 %v2568, %v2624
    %v2626 = vpop.f32.mrf.mxu0
    %v2627 = vadd.f32 %v2568, %v2626
    %2628 = vdwg.mxu0
    %v2629 = vmul.f32 %v2611, 0.2
    %v2630 = vmul.f32 %v2613, 0.2
    %v2631 = vmul.f32 %v2615, 0.2
    %v2632 = vmul.f32 %v2617, 0.2
    %v2633 = vmul.f32 %v2621, 0.2
    %v2634 = vmul.f32 %v2623, 0.2
    %v2635 = vmul.f32 %v2625, 0.2
    %v2636 = vmul.f32 %v2627, 0.2
    %v2637 = vmax.f32 %v2611, %v2629
    %v2638 = vmax.f32 %v2613, %v2630
    %v2639 = vmax.f32 %v2615, %v2631
    %v2640 = vmax.f32 %v2617, %v2632
    %v2641 = vmax.f32 %v2621, %v2633
    %v2642 = vmax.f32 %v2623, %v2634
    %v2643 = vmax.f32 %v2625, %v2635
    %v2644 = vmax.f32 %v2627, %v2636
    %v2645 = vpack.c.bf16 %v2639, %v2637
    %v2646 = vpack.c.bf16 %v2640, %v2638
    %v2647 = vpack.c.bf16 %v2643, %v2641
    %v2648 = vpack.c.bf16 %v2644, %v2642
    %s2649 = scalar_lea.vmem %s5, 128
    %v2650 = vld [vmem:[%s2649] sm:$0xff]
    %v2651 = vld [vmem:[%s2649 + $0x8] sm:$0xff]
    %v2652 = vld [vmem:[%s2649 + $0x10] sm:$0xff]
    %v2653 = vld [vmem:[%s2649 + $0x18] sm:$0xff]
    %v2654 = vmul.f32 %v2650, %v1807
    %v2655 = vmul.f32 %v2651, %v1807
    %v2656 = vmul.f32 %v2652, %v1807
    %v2657 = vmul.f32 %v2653, %v1807
    %v2658 = vmul.f32 %v2654, %v2654
    %v2659 = vmul.f32 %v2655, %v2655
    %v2660 = vmul.f32 %v2656, %v2656
    %v2661 = vmul.f32 %v2657, %v2657
    %v2662 = vsel %vm1671, %v2658, 0.0
    %2663 = vadd.xlane.f32.xlu0 %v2662
    %v2664 = vpop.xlane.xlu0 %2663
    %v2665 = vsel %vm1671, %v2659, 0.0
    %2666 = vadd.xlane.f32.xlu0 %v2665
    %v2667 = vpop.xlane.xlu0 %2666
    %v2668 = vsel %vm1671, %v2660, 0.0
    %2669 = vadd.xlane.f32.xlu0 %v2668
    %v2670 = vpop.xlane.xlu0 %2669
    %v2671 = vsel %vm1671, %v2661, 0.0
    %2672 = vadd.xlane.f32.xlu0 %v2671
    %v2673 = vpop.xlane.xlu0 %2672
    %v2674 = vmul.f32 %v2664, 0.5
    %v2675 = vmul.f32 %v2667, 0.5
    %v2676 = vmul.f32 %v2670, 0.5
    %v2677 = vmul.f32 %v2673, 0.5
    %v2678 = vadd.f32 %v2674, 5e-09
    %v2679 = vadd.f32 %v2675, 5e-09
    %v2680 = vadd.f32 %v2676, 5e-09
    %v2681 = vadd.f32 %v2677, 5e-09
    %v2682 = vrsqrt.pop %v2678
    %v2683 = vrsqrt.pop %v2679
    %v2684 = vrsqrt.pop %v2680
    %v2685 = vrsqrt.pop %v2681
    %v2686 = vmul.f32 %v2654, %v2682
    %v2687 = vmul.f32 %v2655, %v2683
    %v2688 = vmul.f32 %v2656, %v2684
    %v2689 = vmul.f32 %v2657, %v2685
    %v2690 = vpack.c.bf16 %v2687, %v2686
    %v2691 = vpack.c.bf16 %v2689, %v2688
    %s2692 = scalar_lea.vmem %s6, 128
    %v2693 = vld [vmem:[%s2692] sm:$0xff]
    %v2694 = vld [vmem:[%s2692 + $0x8] sm:$0xff]
    %v2695 = vld [vmem:[%s2692 + $0x10] sm:$0xff]
    %v2696 = vld [vmem:[%s2692 + $0x18] sm:$0xff]
    %2698 = vset.pattern.permute.xlu0 0
    %2699 = vperm.xlu0 %2698, %v2693
    %v2700 = vpop.permute.xlu0 %2699
    %2703 = vset.pattern.permute.xlu0 0
    %2704 = vperm.xlu0 %2703, %v2694
    %v2705 = vpop.permute.xlu0 %2704
    %2708 = vset.pattern.permute.xlu0 0
    %2709 = vperm.xlu0 %2708, %v2695
    %v2710 = vpop.permute.xlu0 %2709
    %2713 = vset.pattern.permute.xlu0 0
    %2714 = vperm.xlu0 %2713, %v2696
    %v2715 = vpop.permute.xlu0 %2714
    %v2718 = vsel %vm1671, %v2690, 0
    %v2721 = vsel %vm1671, %v2691, 0
    %2723 = vmatprep.subr.bf16.mxu0 0
    %2724 = vmatpush1.bf16.msra.mxu0 0
    %2725 = vmatprep.subr.bf16.mxu0 0
    %2726 = vmatpush1.bf16.msra.mxu0 0
    %2727 = vmatprep.subr.bf16.mxu0 0
    %2728 = vmatpush1.bf16.msra.mxu0 0
    %2729 = vmatprep.subr.bf16.mxu0 0
    %2730 = vmatpush1.bf16.msra.mxu0 0
    %2731 = vmatprep.subr.bf16.mxu0 0
    %2732 = vmatpush1.bf16.msra.mxu0 0
    %2733 = vmatprep.subr.bf16.mxu0 0
    %2734 = vmatpush1.bf16.msra.mxu0 0
    %2735 = vmatprep.subr.bf16.mxu0 %v2648
    %2736 = vmatpush1.bf16.msra.mxu0 %v2647
    %2737 = vmatprep.subr.bf16.mxu0 %v2646
    %2738 = vmatpush1.bf16.msra.mxu0 %v2645
    %2739 = vmatprep.subr.bf16.mxu0 0
    %2740 = vmatpush2.bf16.msra.mxu0 0
    %2741 = vmatprep.subr.bf16.mxu0 0
    %2742 = vmatpush2.bf16.msra.mxu0 0
    %2743 = vmatprep.subr.bf16.mxu0 0
    %2744 = vmatpush2.bf16.msra.mxu0 0
    %2745 = vmatprep.subr.bf16.mxu0 0
    %2746 = vmatpush2.bf16.msra.mxu0 0
    %2747 = vmatprep.subr.bf16.mxu0 0
    %2748 = vmatpush2.bf16.msra.mxu0 0
    %2749 = vmatprep.subr.bf16.mxu0 0
    %2750 = vmatpush2.bf16.msra.mxu0 0
    %2751 = vmatprep.subr.bf16.mxu0 0
    %2752 = vmatpush2.bf16.msra.mxu0 0
    %2753 = vmatprep.subr.bf16.mxu0 0
    %2754 = vmatpush2.bf16.msra.mxu0 0
    %2755 = vmatprep.mubr.bf16.mxu0 0
    %2756 = vmatmul.mubr.bf16.gmra.mxu0 %v2718
    %v2757 = vpop.f32.mrf.mxu0
    %v2758 = vadd.f32 %v2700, %v2757
    %v2759 = vpop.f32.mrf.mxu0
    %v2760 = vadd.f32 %v2700, %v2759
    %v2761 = vpop.f32.mrf.mxu0
    %v2762 = vadd.f32 %v2705, %v2761
    %v2763 = vpop.f32.mrf.mxu0
    %v2764 = vadd.f32 %v2705, %v2763
    %2765 = vmatprep.mubr.bf16.mxu0 0
    %2766 = vmatmul.mubr.bf16.gmra.mxu0 %v2721
    %v2767 = vpop.f32.mrf.mxu0
    %v2768 = vadd.f32 %v2710, %v2767
    %v2769 = vpop.f32.mrf.mxu0
    %v2770 = vadd.f32 %v2710, %v2769
    %v2771 = vpop.f32.mrf.mxu0
    %v2772 = vadd.f32 %v2715, %v2771
    %v2773 = vpop.f32.mrf.mxu0
    %v2774 = vadd.f32 %v2715, %v2773
    %2775 = vdwg.mxu0
    %v2776 = vmul.f32 %v2758, 0.2
    %v2777 = vmul.f32 %v2760, 0.2
    %v2778 = vmul.f32 %v2762, 0.2
    %v2779 = vmul.f32 %v2764, 0.2
    %v2780 = vmul.f32 %v2768, 0.2
    %v2781 = vmul.f32 %v2770, 0.2
    %v2782 = vmul.f32 %v2772, 0.2
    %v2783 = vmul.f32 %v2774, 0.2
    %v2784 = vmax.f32 %v2758, %v2776
    %v2785 = vmax.f32 %v2760, %v2777
    %v2786 = vmax.f32 %v2762, %v2778
    %v2787 = vmax.f32 %v2764, %v2779
    %v2788 = vmax.f32 %v2768, %v2780
    %v2789 = vmax.f32 %v2770, %v2781
    %v2790 = vmax.f32 %v2772, %v2782
    %v2791 = vmax.f32 %v2774, %v2783
    %v2792 = vpack.c.bf16 %v2786, %v2784
    %v2793 = vpack.c.bf16 %v2787, %v2785
    %v2794 = vpack.c.bf16 %v2790, %v2788
    %v2795 = vpack.c.bf16 %v2791, %v2789
    %s2796 = scalar_lea.vmem %s7, 8
    %v2797 = vld [vmem:[%s2796] sm:$0x7]
    %2798 = vrot.lane.b32.xlu0 %v1807, 32
    %v2799 = vpop.permute.xlu0 %2798
    %v2801 = vmul.f32 %v2797, %v2799
    %v2802 = vpack.c.bf16 %v2801, %v2801
    %s2803 = scalar_lea.vmem %s8, 8
    %v2804 = vld [vmem:[%s2803] sm:$0x7]
    %2806 = vset.pattern.permute.xlu0 0
    %2807 = vperm.xlu0 %2806, %v2804
    %v2808 = vpop.permute.xlu0 %2807
    %v2811 = vsel %vm1671, %v2802, 0
    %2813 = vmatprep.subr.bf16.mxu0 0
    %2814 = vmatpush1.bf16.msra.mxu0 0
    %2815 = vmatprep.subr.bf16.mxu0 0
    %2816 = vmatpush1.bf16.msra.mxu0 0
    %2817 = vmatprep.subr.bf16.mxu0 0
    %2818 = vmatpush1.bf16.msra.mxu0 0
    %2819 = vmatprep.subr.bf16.mxu0 0
    %2820 = vmatpush1.bf16.msra.mxu0 0
    %2821 = vmatprep.subr.bf16.mxu0 0
    %2822 = vmatpush1.bf16.msra.mxu0 0
    %2823 = vmatprep.subr.bf16.mxu0 0
    %2824 = vmatpush1.bf16.msra.mxu0 0
    %2825 = vmatprep.subr.bf16.mxu0 %v2795
    %2826 = vmatpush1.bf16.msra.mxu0 %v2794
    %2827 = vmatprep.subr.bf16.mxu0 %v2793
    %2828 = vmatpush1.bf16.msra.mxu0 %v2792
    %2829 = vmatprep.subr.bf16.mxu0 0
    %2830 = vmatpush2.bf16.msra.mxu0 0
    %2831 = vmatprep.subr.bf16.mxu0 0
    %2832 = vmatpush2.bf16.msra.mxu0 0
    %2833 = vmatprep.subr.bf16.mxu0 0
    %2834 = vmatpush2.bf16.msra.mxu0 0
    %2835 = vmatprep.subr.bf16.mxu0 0
    %2836 = vmatpush2.bf16.msra.mxu0 0
    %2837 = vmatprep.subr.bf16.mxu0 0
    %2838 = vmatpush2.bf16.msra.mxu0 0
    %2839 = vmatprep.subr.bf16.mxu0 0
    %2840 = vmatpush2.bf16.msra.mxu0 0
    %2841 = vmatprep.subr.bf16.mxu0 0
    %2842 = vmatpush2.bf16.msra.mxu0 0
    %2843 = vmatprep.subr.bf16.mxu0 0
    %2844 = vmatpush2.bf16.msra.mxu0 0
    %2845 = vmatprep.mubr.bf16.mxu0 0
    %2846 = vmatmul.mubr.bf16.gmra.mxu0 %v2811
    %v2847 = vpop.f32.mrf.mxu0
    %v2848 = vadd.f32 %v2808, %v2847
    %v2849 = vpop.f32.mrf.mxu0
    %v2850 = vadd.f32 %v2808, %v2849
    %v2851 = vpop.f32.mrf.mxu0
    %v2852 = vpop.f32.mrf.mxu0
    %2853 = vdwg.mxu0
    %v2854 = vpack.c.bf16 %v2848, %v2848
    %v2855 = vpack.c.bf16 %v2850, %v2850
    %v2856 = vld [vmem:[%s14] sm:$0xf]
    %v2857 = vld [vmem:[%s14 + $0x4] sm:$0xf]
    %v2858 = vld [vmem:[%s14 + $0x8] sm:$0xf]
    %v2859 = vld [vmem:[%s14 + $0xc] sm:$0xf]
    %v2860 = vld [vmem:[%s14 + $0x10] sm:$0xf]
    %v2861 = vld [vmem:[%s14 + $0x14] sm:$0xf]
    %v2862 = vld [vmem:[%s14 + $0x18] sm:$0xf]
    %v2863 = vld [vmem:[%s14 + $0x1c] sm:$0xf]
    %v2864 = vld [vmem:[%s14 + $0x20] sm:$0xf]
    %v2865 = vld [vmem:[%s14 + $0x24] sm:$0xf]
    %v2866 = vld [vmem:[%s14 + $0x28] sm:$0xf]
    %v2867 = vld [vmem:[%s14 + $0x2c] sm:$0xf]
    %v2868 = vld [vmem:[%s14 + $0x30] sm:$0xf]
    %v2869 = vld [vmem:[%s14 + $0x34] sm:$0xf]
    %v2870 = vld [vmem:[%s14 + $0x38] sm:$0xf]
    %v2871 = vld [vmem:[%s14 + $0x3c] sm:$0xf]
    %v2872 = vld [vmem:[%s14 + $0x40] sm:$0xf]
    %v2873 = vld [vmem:[%s14 + $0x44] sm:$0xf]
    %v2874 = vld [vmem:[%s14 + $0x48] sm:$0xf]
    %v2875 = vld [vmem:[%s14 + $0x4c] sm:$0xf]
    %v2876 = vld [vmem:[%s14 + $0x50] sm:$0xf]
    %v2877 = vld [vmem:[%s14 + $0x54] sm:$0xf]
    %v2878 = vld [vmem:[%s14 + $0x58] sm:$0xf]
    %v2879 = vld [vmem:[%s14 + $0x5c] sm:$0xf]
    %v2880 = vld [vmem:[%s14 + $0x60] sm:$0xf]
    %v2881 = vld [vmem:[%s14 + $0x64] sm:$0xf]
    %v2882 = vld [vmem:[%s14 + $0x68] sm:$0xf]
    %v2883 = vld [vmem:[%s14 + $0x6c] sm:$0xf]
    %v2884 = vld [vmem:[%s14 + $0x70] sm:$0xf]
    %v2885 = vld [vmem:[%s14 + $0x74] sm:$0xf]
    %v2886 = vld [vmem:[%s14 + $0x78] sm:$0xf]
    %v2887 = vld [vmem:[%s14 + $0x7c] sm:$0xf]
    %v2920 = vunpack.c.l.b16 %v2856
    %v2921 = vunpack.c.l.b16 %v2857
    %v2922 = vunpack.c.l.b16 %v2858
    %v2923 = vunpack.c.l.b16 %v2859
    %v2924 = vunpack.c.l.b16 %v2860
    %v2925 = vunpack.c.l.b16 %v2861
    %v2926 = vunpack.c.l.b16 %v2862
    %v2927 = vunpack.c.l.b16 %v2863
    %v2928 = vunpack.c.l.b16 %v2864
    %v2929 = vunpack.c.l.b16 %v2865
    %v2930 = vunpack.c.l.b16 %v2866
    %v2931 = vunpack.c.l.b16 %v2867
    %v2932 = vunpack.c.l.b16 %v2868
    %v2933 = vunpack.c.l.b16 %v2869
    %v2934 = vunpack.c.l.b16 %v2870
    %v2935 = vunpack.c.l.b16 %v2871
    %v2936 = vunpack.c.l.b16 %v2872
    %v2937 = vunpack.c.l.b16 %v2873
    %v2938 = vunpack.c.l.b16 %v2874
    %v2939 = vunpack.c.l.b16 %v2875
    %v2940 = vunpack.c.l.b16 %v2876
    %v2941 = vunpack.c.l.b16 %v2877
    %v2942 = vunpack.c.l.b16 %v2878
    %v2943 = vunpack.c.l.b16 %v2879
    %v2944 = vunpack.c.l.b16 %v2880
    %v2945 = vunpack.c.l.b16 %v2881
    %v2946 = vunpack.c.l.b16 %v2882
    %v2947 = vunpack.c.l.b16 %v2883
    %v2948 = vunpack.c.l.b16 %v2884
    %v2949 = vunpack.c.l.b16 %v2885
    %v2950 = vunpack.c.l.b16 %v2886
    %v2951 = vunpack.c.l.b16 %v2887
    %v2952 = vpack.c.b16 %v2921, %v2920
    %v2953 = vpack.c.b16 %v2923, %v2922
    %v2954 = vpack.c.b16 %v2925, %v2924
    %v2955 = vpack.c.b16 %v2927, %v2926
    %v2956 = vpack.c.b16 %v2929, %v2928
    %v2957 = vpack.c.b16 %v2931, %v2930
    %v2958 = vpack.c.b16 %v2933, %v2932
    %v2959 = vpack.c.b16 %v2935, %v2934
    %v2960 = vpack.c.b16 %v2937, %v2936
    %v2961 = vpack.c.b16 %v2939, %v2938
    %v2962 = vpack.c.b16 %v2941, %v2940
    %v2963 = vpack.c.b16 %v2943, %v2942
    %v2964 = vpack.c.b16 %v2945, %v2944
    %v2965 = vpack.c.b16 %v2947, %v2946
    %v2966 = vpack.c.b16 %v2949, %v2948
    %v2967 = vpack.c.b16 %v2951, %v2950
    %2984 = vmatprep.subr.bf16.mxu0 0
    %2985 = vmatpush1.bf16.msra.mxu0 %v2959
    %2986 = vmatprep.subr.bf16.mxu0 0
    %2987 = vmatpush1.bf16.msra.mxu0 %v2958
    %2988 = vmatprep.subr.bf16.mxu0 0
    %2989 = vmatpush1.bf16.msra.mxu0 %v2957
    %2990 = vmatprep.subr.bf16.mxu0 0
    %2991 = vmatpush1.bf16.msra.mxu0 %v2956
    %2992 = vmatprep.subr.bf16.mxu0 0
    %2993 = vmatpush1.bf16.msra.mxu0 %v2955
    %2994 = vmatprep.subr.bf16.mxu0 0
    %2995 = vmatpush1.bf16.msra.mxu0 %v2954
    %2996 = vmatprep.subr.bf16.mxu0 0
    %2997 = vmatpush1.bf16.msra.mxu0 %v2953
    %2998 = vmatprep.subr.bf16.mxu0 0
    %2999 = vmatpush1.bf16.msra.mxu0 %v2952
    %3000 = vmatprep.subr.bf16.mxu0 0
    %3001 = vmatpush2.bf16.msra.mxu0 %v2967
    %3002 = vmatprep.subr.bf16.mxu0 0
    %3003 = vmatpush2.bf16.msra.mxu0 %v2966
    %3004 = vmatprep.subr.bf16.mxu0 0
    %3005 = vmatpush2.bf16.msra.mxu0 %v2965
    %3006 = vmatprep.subr.bf16.mxu0 0
    %3007 = vmatpush2.bf16.msra.mxu0 %v2964
    %3008 = vmatprep.subr.bf16.mxu0 0
    %3009 = vmatpush2.bf16.msra.mxu0 %v2963
    %3010 = vmatprep.subr.bf16.mxu0 0
    %3011 = vmatpush2.bf16.msra.mxu0 %v2962
    %3012 = vmatprep.subr.bf16.mxu0 0
    %3013 = vmatpush2.bf16.msra.mxu0 %v2961
    %3014 = vmatprep.subr.bf16.mxu0 0
    %3015 = vmatpush2.bf16.msra.mxu0 %v2960
    %3016 = vmatprep.mubr.bf16.mxu0 %v2855
    %3017 = vmatmul.mubr.bf16.gmra.mxu0 %v2854
    %v3018 = vpop.f32.mrf.mxu0
    %v3019 = vadd.f32 0.0, %v3018
    %v3020 = vpop.f32.mrf.mxu0
    %v3021 = vpop.f32.mrf.mxu0
    %v3022 = vpop.f32.mrf.mxu0
    %3023 = vdwg.mxu0
    %v3024 = vadd.f32 %v2383, %v3019
    %vm3025 = vcmask 124928
    %3026 = vst.msk [vmem:[%s15] sm:$0x7] %vm3025, %v3024
    %v3027 = vld [vmem:[%s5] sm:$0xff]
    %v3028 = vld [vmem:[%s5 + $0x8] sm:$0xff]
    %v3029 = vld [vmem:[%s5 + $0x10] sm:$0xff]
    %v3030 = vld [vmem:[%s5 + $0x18] sm:$0xff]
    %v3031 = vlaneseq
    %v3032 = vshrl.u32 %v3031, 7
    %v3033 = vsub.s32 1, %v3032
    %v3034 = vrot.slane %v1647, %v3033
    %v3035 = vmul.f32 %v3027, %v3034
    %v3036 = vmul.f32 %v3028, %v3034
    %v3037 = vmul.f32 %v3029, %v3034
    %v3038 = vmul.f32 %v3030, %v3034
    %v3039 = vmul.f32 %v3035, %v3035
    %v3040 = vmul.f32 %v3036, %v3036
    %v3041 = vmul.f32 %v3037, %v3037
    %v3042 = vmul.f32 %v3038, %v3038
    %v3043 = vsel %vm1671, %v3039, 0.0
    %3044 = vadd.xlane.f32.xlu0 %v3043
    %v3045 = vpop.xlane.xlu0 %3044
    %v3046 = vsel %vm1671, %v3040, 0.0
    %3047 = vadd.xlane.f32.xlu0 %v3046
    %v3048 = vpop.xlane.xlu0 %3047
    %v3049 = vsel %vm1671, %v3041, 0.0
    %3050 = vadd.xlane.f32.xlu0 %v3049
    %v3051 = vpop.xlane.xlu0 %3050
    %v3052 = vsel %vm1671, %v3042, 0.0
    %3053 = vadd.xlane.f32.xlu0 %v3052
    %v3054 = vpop.xlane.xlu0 %3053
    %v3055 = vmul.f32 %v3045, 0.5
    %v3056 = vmul.f32 %v3048, 0.5
    %v3057 = vmul.f32 %v3051, 0.5
    %v3058 = vmul.f32 %v3054, 0.5
    %v3059 = vadd.f32 %v3055, 5e-09
    %v3060 = vadd.f32 %v3056, 5e-09
    %v3061 = vadd.f32 %v3057, 5e-09
    %v3062 = vadd.f32 %v3058, 5e-09
    %v3063 = vrsqrt.pop %v3059
    %v3064 = vrsqrt.pop %v3060
    %v3065 = vrsqrt.pop %v3061
    %v3066 = vrsqrt.pop %v3062
    %v3067 = vmul.f32 %v3035, %v3063
    %v3068 = vmul.f32 %v3036, %v3064
    %v3069 = vmul.f32 %v3037, %v3065
    %v3070 = vmul.f32 %v3038, %v3066
    %v3071 = vpack.c.bf16 %v3068, %v3067
    %v3072 = vpack.c.bf16 %v3070, %v3069
    %v3073 = vld [vmem:[%s6] sm:$0xff]
    %v3074 = vld [vmem:[%s6 + $0x8] sm:$0xff]
    %v3075 = vld [vmem:[%s6 + $0x10] sm:$0xff]
    %v3076 = vld [vmem:[%s6 + $0x18] sm:$0xff]
    %3078 = vset.pattern.permute.xlu0 0
    %3079 = vperm.xlu0 %3078, %v3073
    %v3080 = vpop.permute.xlu0 %3079
    %3083 = vset.pattern.permute.xlu0 0
    %3084 = vperm.xlu0 %3083, %v3074
    %v3085 = vpop.permute.xlu0 %3084
    %3088 = vset.pattern.permute.xlu0 0
    %3089 = vperm.xlu0 %3088, %v3075
    %v3090 = vpop.permute.xlu0 %3089
    %3093 = vset.pattern.permute.xlu0 0
    %3094 = vperm.xlu0 %3093, %v3076
    %v3095 = vpop.permute.xlu0 %3094
    %v3098 = vsel %vm1671, %v3071, 0
    %v3101 = vsel %vm1671, %v3072, 0
    %3103 = vmatprep.subr.bf16.mxu0 0
    %3104 = vmatpush1.bf16.msra.mxu0 0
    %3105 = vmatprep.subr.bf16.mxu0 0
    %3106 = vmatpush1.bf16.msra.mxu0 0
    %3107 = vmatprep.subr.bf16.mxu0 0
    %3108 = vmatpush1.bf16.msra.mxu0 0
    %3109 = vmatprep.subr.bf16.mxu0 0
    %3110 = vmatpush1.bf16.msra.mxu0 0
    %3111 = vmatprep.subr.bf16.mxu0 0
    %3112 = vmatpush1.bf16.msra.mxu0 0
    %3113 = vmatprep.subr.bf16.mxu0 0
    %3114 = vmatpush1.bf16.msra.mxu0 0
    %3115 = vmatprep.subr.bf16.mxu0 0
    %3116 = vmatpush1.bf16.msra.mxu0 %v1735
    %3117 = vmatprep.subr.bf16.mxu0 0
    %3118 = vmatpush1.bf16.msra.mxu0 %v1734
    %3119 = vmatprep.subr.bf16.mxu0 0
    %3120 = vmatpush2.bf16.msra.mxu0 0
    %3121 = vmatprep.subr.bf16.mxu0 0
    %3122 = vmatpush2.bf16.msra.mxu0 0
    %3123 = vmatprep.subr.bf16.mxu0 0
    %3124 = vmatpush2.bf16.msra.mxu0 0
    %3125 = vmatprep.subr.bf16.mxu0 0
    %3126 = vmatpush2.bf16.msra.mxu0 0
    %3127 = vmatprep.subr.bf16.mxu0 0
    %3128 = vmatpush2.bf16.msra.mxu0 0
    %3129 = vmatprep.subr.bf16.mxu0 0
    %3130 = vmatpush2.bf16.msra.mxu0 0
    %3131 = vmatprep.subr.bf16.mxu0 0
    %3132 = vmatpush2.bf16.msra.mxu0 0
    %3133 = vmatprep.subr.bf16.mxu0 0
    %3134 = vmatpush2.bf16.msra.mxu0 0
    %3135 = vmatprep.mubr.bf16.mxu0 0
    %3136 = vmatmul.mubr.bf16.gmra.mxu0 %v3098
    %v3137 = vpop.f32.mrf.mxu0
    %v3138 = vadd.f32 %v3080, %v3137
    %v3139 = vpop.f32.mrf.mxu0
    %v3140 = vpop.f32.mrf.mxu0
    %v3141 = vadd.f32 %v3085, %v3140
    %v3142 = vpop.f32.mrf.mxu0
    %3143 = vmatprep.mubr.bf16.mxu0 0
    %3144 = vmatmul.mubr.bf16.gmra.mxu0 %v3101
    %v3145 = vpop.f32.mrf.mxu0
    %v3146 = vadd.f32 %v3090, %v3145
    %v3147 = vpop.f32.mrf.mxu0
    %v3148 = vpop.f32.mrf.mxu0
    %v3149 = vadd.f32 %v3095, %v3148
    %v3150 = vpop.f32.mrf.mxu0
    %3151 = vdwg.mxu0
    %v3152 = vmul.f32 %v3138, 0.2
    %v3153 = vmul.f32 %v3141, 0.2
    %v3154 = vmul.f32 %v3146, 0.2
    %v3155 = vmul.f32 %v3149, 0.2
    %v3156 = vmax.f32 %v3138, %v3152
    %v3157 = vmax.f32 %v3141, %v3153
    %v3158 = vmax.f32 %v3146, %v3154
    %v3159 = vmax.f32 %v3149, %v3155
    %v3160 = vpack.c.bf16 %v3157, %v3156
    %v3161 = vpack.c.bf16 %v3159, %v3158
    %v3162 = vld [vmem:[%s7] sm:$0x7]
    %v3163 = vlaneseq
    %v3164 = vshrl.u32 %v3163, 7
    %v3165 = vsub.s32 1, %v3164
    %v3166 = vrot.slane %v1649, %v3165
    %3168 = vrot.lane.b32.xlu0 %v3166, 96
    %v3169 = vpop.permute.xlu0 %3168
    %v3171 = vmul.f32 %v3162, %v3169
    %v3172 = vpack.c.bf16 %v3171, %v3171
    %v3173 = vld [vmem:[%s8] sm:$0x7]
    %3175 = vset.pattern.permute.xlu0 0
    %3176 = vperm.xlu0 %3175, %v3173
    %v3177 = vpop.permute.xlu0 %3176
    %v3180 = vsel %vm1671, %v3172, 0
    %3182 = vmatprep.subr.bf16.mxu0 0
    %3183 = vmatpush1.bf16.msra.mxu0 0
    %3184 = vmatprep.subr.bf16.mxu0 0
    %3185 = vmatpush1.bf16.msra.mxu0 0
    %3186 = vmatprep.subr.bf16.mxu0 0
    %3187 = vmatpush1.bf16.msra.mxu0 0
    %3188 = vmatprep.subr.bf16.mxu0 0
    %3189 = vmatpush1.bf16.msra.mxu0 0
    %3190 = vmatprep.subr.bf16.mxu0 0
    %3191 = vmatpush1.bf16.msra.mxu0 0
    %3192 = vmatprep.subr.bf16.mxu0 0
    %3193 = vmatpush1.bf16.msra.mxu0 0
    %3194 = vmatprep.subr.bf16.mxu0 0
    %3195 = vmatpush1.bf16.msra.mxu0 %v3161
    %3196 = vmatprep.subr.bf16.mxu0 0
    %3197 = vmatpush1.bf16.msra.mxu0 %v3160
    %3198 = vmatprep.subr.bf16.mxu0 0
    %3199 = vmatpush2.bf16.msra.mxu0 0
    %3200 = vmatprep.subr.bf16.mxu0 0
    %3201 = vmatpush2.bf16.msra.mxu0 0
    %3202 = vmatprep.subr.bf16.mxu0 0
    %3203 = vmatpush2.bf16.msra.mxu0 0
    %3204 = vmatprep.subr.bf16.mxu0 0
    %3205 = vmatpush2.bf16.msra.mxu0 0
    %3206 = vmatprep.subr.bf16.mxu0 0
    %3207 = vmatpush2.bf16.msra.mxu0 0
    %3208 = vmatprep.subr.bf16.mxu0 0
    %3209 = vmatpush2.bf16.msra.mxu0 0
    %3210 = vmatprep.subr.bf16.mxu0 0
    %3211 = vmatpush2.bf16.msra.mxu0 0
    %3212 = vmatprep.subr.bf16.mxu0 0
    %3213 = vmatpush2.bf16.msra.mxu0 0
    %3214 = vmatprep.mubr.bf16.mxu0 0
    %3215 = vmatmul.mubr.bf16.gmra.mxu0 %v3180
    %v3216 = vpop.f32.mrf.mxu0
    %v3217 = vadd.f32 %v3177, %v3216
    %v3218 = vpop.f32.mrf.mxu0
    %v3219 = vpop.f32.mrf.mxu0
    %v3220 = vpop.f32.mrf.mxu0
    %3221 = vdwg.mxu0
    %v3222 = vpack.c.bf16 %v3217, %v3217
    %v3223 = vld [vmem:[%s12] sm:$0xf]
    %v3224 = vld [vmem:[%s12 + $0x4] sm:$0xf]
    %v3225 = vld [vmem:[%s10] sm:$0xf]
    %v3226 = vld [vmem:[%s10 + $0x4] sm:$0xf]
    %v3229 = vunpack.c.l.b16 %v3225
    %v3230 = vunpack.c.l.b16 %v3226
    %v3231 = vpack.c.b16 %v3230, %v3229
    %v3234 = vsel %vm1874, %v3160, 0
    %v3237 = vsel %vm1874, %v3161, 0
    %3239 = vmatprep.subr.bf16.mxu0 0
    %3240 = vmatpush1.bf16.msra.mxu0 0
    %3241 = vmatprep.subr.bf16.mxu0 0
    %3242 = vmatpush1.bf16.msra.mxu0 0
    %3243 = vmatprep.subr.bf16.mxu0 0
    %3244 = vmatpush1.bf16.msra.mxu0 0
    %3245 = vmatprep.subr.bf16.mxu0 0
    %3246 = vmatpush1.bf16.msra.mxu0 0
    %3247 = vmatprep.subr.bf16.mxu0 0
    %3248 = vmatpush1.bf16.msra.mxu0 0
    %3249 = vmatprep.subr.bf16.mxu0 0
    %3250 = vmatpush1.bf16.msra.mxu0 0
    %3251 = vmatprep.subr.bf16.mxu0 0
    %3252 = vmatpush1.bf16.msra.mxu0 0
    %3253 = vmatprep.subr.bf16.mxu0 0
    %3254 = vmatpush1.bf16.msra.mxu0 %v3231
    %3255 = vmatprep.subr.bf16.mxu0 0
    %3256 = vmatpush2.bf16.msra.mxu0 0
    %3257 = vmatprep.subr.bf16.mxu0 0
    %3258 = vmatpush2.bf16.msra.mxu0 0
    %3259 = vmatprep.subr.bf16.mxu0 0
    %3260 = vmatpush2.bf16.msra.mxu0 0
    %3261 = vmatprep.subr.bf16.mxu0 0
    %3262 = vmatpush2.bf16.msra.mxu0 0
    %3263 = vmatprep.subr.bf16.mxu0 0
    %3264 = vmatpush2.bf16.msra.mxu0 0
    %3265 = vmatprep.subr.bf16.mxu0 0
    %3266 = vmatpush2.bf16.msra.mxu0 0
    %3267 = vmatprep.subr.bf16.mxu0 0
    %3268 = vmatpush2.bf16.msra.mxu0 0
    %3269 = vmatprep.subr.bf16.mxu0 0
    %3270 = vmatpush2.bf16.msra.mxu0 0
    %3271 = vmatprep.mubr.bf16.mxu0 0
    %3272 = vmatmul.mubr.bf16.gmra.mxu0 %v3234
    %v3273 = vpop.f32.mrf.mxu0
    %v3274 = vadd.f32 0.0, %v3273
    %v3275 = vpop.f32.mrf.mxu0
    %v3276 = vpop.f32.mrf.mxu0
    %v3277 = vadd.f32 0.0, %v3276
    %v3278 = vpop.f32.mrf.mxu0
    %3279 = vmatprep.mubr.bf16.mxu0 0
    %3280 = vmatmul.mubr.bf16.gmra.mxu0 %v3237
    %v3281 = vpop.f32.mrf.mxu0
    %v3282 = vadd.f32 0.0, %v3281
    %v3283 = vpop.f32.mrf.mxu0
    %v3284 = vpop.f32.mrf.mxu0
    %v3285 = vadd.f32 0.0, %v3284
    %v3286 = vpop.f32.mrf.mxu0
    %3287 = vdwg.mxu0
    %v3288 = vpack.c.bf16 %v3277, %v3274
    %v3289 = vpack.c.bf16 %v3285, %v3282
    %v3290 = vld [vmem:[%s1932] sm:$0xff]
    %v3291 = vld [vmem:[%s1932 + $0x8] sm:$0xff]
    %v3292 = vld [vmem:[%s1932 + $0x10] sm:$0xff]
    %v3293 = vld [vmem:[%s1932 + $0x18] sm:$0xff]
    %3295 = vrot.lane.b32.xlu0 %v3034, 96
    %v3296 = vpop.permute.xlu0 %3295
    %v3298 = vmul.f32 %v3290, %v3296
    %v3299 = vmul.f32 %v3291, %v3296
    %v3300 = vmul.f32 %v3292, %v3296
    %v3301 = vmul.f32 %v3293, %v3296
    %v3302 = vmul.f32 %v3298, %v3298
    %v3303 = vmul.f32 %v3299, %v3299
    %v3304 = vmul.f32 %v3300, %v3300
    %v3305 = vmul.f32 %v3301, %v3301
    %v3306 = vsel %vm1671, %v3302, 0.0
    %3307 = vadd.xlane.f32.xlu0 %v3306
    %v3308 = vpop.xlane.xlu0 %3307
    %v3309 = vsel %vm1671, %v3303, 0.0
    %3310 = vadd.xlane.f32.xlu0 %v3309
    %v3311 = vpop.xlane.xlu0 %3310
    %v3312 = vsel %vm1671, %v3304, 0.0
    %3313 = vadd.xlane.f32.xlu0 %v3312
    %v3314 = vpop.xlane.xlu0 %3313
    %v3315 = vsel %vm1671, %v3305, 0.0
    %3316 = vadd.xlane.f32.xlu0 %v3315
    %v3317 = vpop.xlane.xlu0 %3316
    %v3318 = vmul.f32 %v3308, 0.5
    %v3319 = vmul.f32 %v3311, 0.5
    %v3320 = vmul.f32 %v3314, 0.5
    %v3321 = vmul.f32 %v3317, 0.5
    %v3322 = vadd.f32 %v3318, 5e-09
    %v3323 = vadd.f32 %v3319, 5e-09
    %v3324 = vadd.f32 %v3320, 5e-09
    %v3325 = vadd.f32 %v3321, 5e-09
    %v3326 = vrsqrt.pop %v3322
    %v3327 = vrsqrt.pop %v3323
    %v3328 = vrsqrt.pop %v3324
    %v3329 = vrsqrt.pop %v3325
    %v3330 = vmul.f32 %v3298, %v3326
    %v3331 = vmul.f32 %v3299, %v3327
    %v3332 = vmul.f32 %v3300, %v3328
    %v3333 = vmul.f32 %v3301, %v3329
    %v3334 = vpack.c.bf16 %v3331, %v3330
    %v3335 = vpack.c.bf16 %v3333, %v3332
    %v3336 = vld [vmem:[%s1979] sm:$0xff]
    %v3337 = vld [vmem:[%s1979 + $0x8] sm:$0xff]
    %v3338 = vld [vmem:[%s1979 + $0x10] sm:$0xff]
    %v3339 = vld [vmem:[%s1979 + $0x18] sm:$0xff]
    %3341 = vset.pattern.permute.xlu0 0
    %3342 = vperm.xlu0 %3341, %v3336
    %v3343 = vpop.permute.xlu0 %3342
    %3346 = vset.pattern.permute.xlu0 0
    %3347 = vperm.xlu0 %3346, %v3337
    %v3348 = vpop.permute.xlu0 %3347
    %3351 = vset.pattern.permute.xlu0 0
    %3352 = vperm.xlu0 %3351, %v3338
    %v3353 = vpop.permute.xlu0 %3352
    %3356 = vset.pattern.permute.xlu0 0
    %3357 = vperm.xlu0 %3356, %v3339
    %v3358 = vpop.permute.xlu0 %3357
    %v3361 = vsel %vm1671, %v3334, 0
    %v3364 = vsel %vm1671, %v3335, 0
    %3366 = vmatprep.subr.bf16.mxu0 0
    %3367 = vmatpush1.bf16.msra.mxu0 0
    %3368 = vmatprep.subr.bf16.mxu0 0
    %3369 = vmatpush1.bf16.msra.mxu0 0
    %3370 = vmatprep.subr.bf16.mxu0 0
    %3371 = vmatpush1.bf16.msra.mxu0 0
    %3372 = vmatprep.subr.bf16.mxu0 0
    %3373 = vmatpush1.bf16.msra.mxu0 0
    %3374 = vmatprep.subr.bf16.mxu0 0
    %3375 = vmatpush1.bf16.msra.mxu0 0
    %3376 = vmatprep.subr.bf16.mxu0 0
    %3377 = vmatpush1.bf16.msra.mxu0 0
    %3378 = vmatprep.subr.bf16.mxu0 0
    %3379 = vmatpush1.bf16.msra.mxu0 %v3289
    %3380 = vmatprep.subr.bf16.mxu0 0
    %3381 = vmatpush1.bf16.msra.mxu0 %v3288
    %3382 = vmatprep.subr.bf16.mxu0 0
    %3383 = vmatpush2.bf16.msra.mxu0 0
    %3384 = vmatprep.subr.bf16.mxu0 0
    %3385 = vmatpush2.bf16.msra.mxu0 0
    %3386 = vmatprep.subr.bf16.mxu0 0
    %3387 = vmatpush2.bf16.msra.mxu0 0
    %3388 = vmatprep.subr.bf16.mxu0 0
    %3389 = vmatpush2.bf16.msra.mxu0 0
    %3390 = vmatprep.subr.bf16.mxu0 0
    %3391 = vmatpush2.bf16.msra.mxu0 0
    %3392 = vmatprep.subr.bf16.mxu0 0
    %3393 = vmatpush2.bf16.msra.mxu0 0
    %3394 = vmatprep.subr.bf16.mxu0 0
    %3395 = vmatpush2.bf16.msra.mxu0 0
    %3396 = vmatprep.subr.bf16.mxu0 0
    %3397 = vmatpush2.bf16.msra.mxu0 0
    %3398 = vmatprep.mubr.bf16.mxu0 0
    %3399 = vmatmul.mubr.bf16.gmra.mxu0 %v3361
    %v3400 = vpop.f32.mrf.mxu0
    %v3401 = vadd.f32 %v3343, %v3400
    %v3402 = vpop.f32.mrf.mxu0
    %v3403 = vpop.f32.mrf.mxu0
    %v3404 = vadd.f32 %v3348, %v3403
    %v3405 = vpop.f32.mrf.mxu0
    %3406 = vmatprep.mubr.bf16.mxu0 0
    %3407 = vmatmul.mubr.bf16.gmra.mxu0 %v3364
    %v3408 = vpop.f32.mrf.mxu0
    %v3409 = vadd.f32 %v3353, %v3408
    %v3410 = vpop.f32.mrf.mxu0
    %v3411 = vpop.f32.mrf.mxu0
    %v3412 = vadd.f32 %v3358, %v3411
    %v3413 = vpop.f32.mrf.mxu0
    %3414 = vdwg.mxu0
    %v3415 = vmul.f32 %v3401, 0.2
    %v3416 = vmul.f32 %v3404, 0.2
    %v3417 = vmul.f32 %v3409, 0.2
    %v3418 = vmul.f32 %v3412, 0.2
    %v3419 = vmax.f32 %v3401, %v3415
    %v3420 = vmax.f32 %v3404, %v3416
    %v3421 = vmax.f32 %v3409, %v3417
    %v3422 = vmax.f32 %v3412, %v3418
    %v3423 = vpack.c.bf16 %v3420, %v3419
    %v3424 = vpack.c.bf16 %v3422, %v3421
    %v3425 = vld [vmem:[%s2069] sm:$0xff]
    %v3426 = vld [vmem:[%s2069 + $0x8] sm:$0xff]
    %v3427 = vld [vmem:[%s2069 + $0x10] sm:$0xff]
    %v3428 = vld [vmem:[%s2069 + $0x18] sm:$0xff]
    %3429 = vrot.lane.b32.xlu0 %v3034, 64
    %v3430 = vpop.permute.xlu0 %3429
    %v3432 = vmul.f32 %v3425, %v3430
    %v3433 = vmul.f32 %v3426, %v3430
    %v3434 = vmul.f32 %v3427, %v3430
    %v3435 = vmul.f32 %v3428, %v3430
    %v3436 = vmul.f32 %v3432, %v3432
    %v3437 = vmul.f32 %v3433, %v3433
    %v3438 = vmul.f32 %v3434, %v3434
    %v3439 = vmul.f32 %v3435, %v3435
    %v3440 = vsel %vm1671, %v3436, 0.0
    %3441 = vadd.xlane.f32.xlu0 %v3440
    %v3442 = vpop.xlane.xlu0 %3441
    %v3443 = vsel %vm1671, %v3437, 0.0
    %3444 = vadd.xlane.f32.xlu0 %v3443
    %v3445 = vpop.xlane.xlu0 %3444
    %v3446 = vsel %vm1671, %v3438, 0.0
    %3447 = vadd.xlane.f32.xlu0 %v3446
    %v3448 = vpop.xlane.xlu0 %3447
    %v3449 = vsel %vm1671, %v3439, 0.0
    %3450 = vadd.xlane.f32.xlu0 %v3449
    %v3451 = vpop.xlane.xlu0 %3450
    %v3452 = vmul.f32 %v3442, 0.5
    %v3453 = vmul.f32 %v3445, 0.5
    %v3454 = vmul.f32 %v3448, 0.5
    %v3455 = vmul.f32 %v3451, 0.5
    %v3456 = vadd.f32 %v3452, 5e-09
    %v3457 = vadd.f32 %v3453, 5e-09
    %v3458 = vadd.f32 %v3454, 5e-09
    %v3459 = vadd.f32 %v3455, 5e-09
    %v3460 = vrsqrt.pop %v3456
    %v3461 = vrsqrt.pop %v3457
    %v3462 = vrsqrt.pop %v3458
    %v3463 = vrsqrt.pop %v3459
    %v3464 = vmul.f32 %v3432, %v3460
    %v3465 = vmul.f32 %v3433, %v3461
    %v3466 = vmul.f32 %v3434, %v3462
    %v3467 = vmul.f32 %v3435, %v3463
    %v3468 = vpack.c.bf16 %v3465, %v3464
    %v3469 = vpack.c.bf16 %v3467, %v3466
    %v3470 = vld [vmem:[%s2115] sm:$0xff]
    %v3471 = vld [vmem:[%s2115 + $0x8] sm:$0xff]
    %v3472 = vld [vmem:[%s2115 + $0x10] sm:$0xff]
    %v3473 = vld [vmem:[%s2115 + $0x18] sm:$0xff]
    %3475 = vset.pattern.permute.xlu0 0
    %3476 = vperm.xlu0 %3475, %v3470
    %v3477 = vpop.permute.xlu0 %3476
    %3480 = vset.pattern.permute.xlu0 0
    %3481 = vperm.xlu0 %3480, %v3471
    %v3482 = vpop.permute.xlu0 %3481
    %3485 = vset.pattern.permute.xlu0 0
    %3486 = vperm.xlu0 %3485, %v3472
    %v3487 = vpop.permute.xlu0 %3486
    %3490 = vset.pattern.permute.xlu0 0
    %3491 = vperm.xlu0 %3490, %v3473
    %v3492 = vpop.permute.xlu0 %3491
    %v3495 = vsel %vm1671, %v3468, 0
    %v3498 = vsel %vm1671, %v3469, 0
    %3500 = vmatprep.subr.bf16.mxu0 0
    %3501 = vmatpush1.bf16.msra.mxu0 0
    %3502 = vmatprep.subr.bf16.mxu0 0
    %3503 = vmatpush1.bf16.msra.mxu0 0
    %3504 = vmatprep.subr.bf16.mxu0 0
    %3505 = vmatpush1.bf16.msra.mxu0 0
    %3506 = vmatprep.subr.bf16.mxu0 0
    %3507 = vmatpush1.bf16.msra.mxu0 0
    %3508 = vmatprep.subr.bf16.mxu0 0
    %3509 = vmatpush1.bf16.msra.mxu0 0
    %3510 = vmatprep.subr.bf16.mxu0 0
    %3511 = vmatpush1.bf16.msra.mxu0 0
    %3512 = vmatprep.subr.bf16.mxu0 0
    %3513 = vmatpush1.bf16.msra.mxu0 %v3424
    %3514 = vmatprep.subr.bf16.mxu0 0
    %3515 = vmatpush1.bf16.msra.mxu0 %v3423
    %3516 = vmatprep.subr.bf16.mxu0 0
    %3517 = vmatpush2.bf16.msra.mxu0 0
    %3518 = vmatprep.subr.bf16.mxu0 0
    %3519 = vmatpush2.bf16.msra.mxu0 0
    %3520 = vmatprep.subr.bf16.mxu0 0
    %3521 = vmatpush2.bf16.msra.mxu0 0
    %3522 = vmatprep.subr.bf16.mxu0 0
    %3523 = vmatpush2.bf16.msra.mxu0 0
    %3524 = vmatprep.subr.bf16.mxu0 0
    %3525 = vmatpush2.bf16.msra.mxu0 0
    %3526 = vmatprep.subr.bf16.mxu0 0
    %3527 = vmatpush2.bf16.msra.mxu0 0
    %3528 = vmatprep.subr.bf16.mxu0 0
    %3529 = vmatpush2.bf16.msra.mxu0 0
    %3530 = vmatprep.subr.bf16.mxu0 0
    %3531 = vmatpush2.bf16.msra.mxu0 0
    %3532 = vmatprep.mubr.bf16.mxu0 0
    %3533 = vmatmul.mubr.bf16.gmra.mxu0 %v3495
    %v3534 = vpop.f32.mrf.mxu0
    %v3535 = vadd.f32 %v3477, %v3534
    %v3536 = vpop.f32.mrf.mxu0
    %v3537 = vpop.f32.mrf.mxu0
    %v3538 = vadd.f32 %v3482, %v3537
    %v3539 = vpop.f32.mrf.mxu0
    %3540 = vmatprep.mubr.bf16.mxu0 0
    %3541 = vmatmul.mubr.bf16.gmra.mxu0 %v3498
    %v3542 = vpop.f32.mrf.mxu0
    %v3543 = vadd.f32 %v3487, %v3542
    %v3544 = vpop.f32.mrf.mxu0
    %v3545 = vpop.f32.mrf.mxu0
    %v3546 = vadd.f32 %v3492, %v3545
    %v3547 = vpop.f32.mrf.mxu0
    %3548 = vdwg.mxu0
    %v3549 = vmul.f32 %v3535, 0.2
    %v3550 = vmul.f32 %v3538, 0.2
    %v3551 = vmul.f32 %v3543, 0.2
    %v3552 = vmul.f32 %v3546, 0.2
    %v3553 = vmax.f32 %v3535, %v3549
    %v3554 = vmax.f32 %v3538, %v3550
    %v3555 = vmax.f32 %v3543, %v3551
    %v3556 = vmax.f32 %v3546, %v3552
    %v3557 = vpack.c.bf16 %v3554, %v3553
    %v3558 = vpack.c.bf16 %v3556, %v3555
    %v3559 = vld [vmem:[%s2205] sm:$0x7]
    %3560 = vrot.lane.b32.xlu0 %v3166, 64
    %v3561 = vpop.permute.xlu0 %3560
    %v3563 = vmul.f32 %v3559, %v3561
    %v3564 = vpack.c.bf16 %v3563, %v3563
    %v3565 = vld [vmem:[%s2212] sm:$0x7]
    %3567 = vset.pattern.permute.xlu0 0
    %3568 = vperm.xlu0 %3567, %v3565
    %v3569 = vpop.permute.xlu0 %3568
    %v3572 = vsel %vm1671, %v3564, 0
    %3574 = vmatprep.subr.bf16.mxu0 0
    %3575 = vmatpush1.bf16.msra.mxu0 0
    %3576 = vmatprep.subr.bf16.mxu0 0
    %3577 = vmatpush1.bf16.msra.mxu0 0
    %3578 = vmatprep.subr.bf16.mxu0 0
    %3579 = vmatpush1.bf16.msra.mxu0 0
    %3580 = vmatprep.subr.bf16.mxu0 0
    %3581 = vmatpush1.bf16.msra.mxu0 0
    %3582 = vmatprep.subr.bf16.mxu0 0
    %3583 = vmatpush1.bf16.msra.mxu0 0
    %3584 = vmatprep.subr.bf16.mxu0 0
    %3585 = vmatpush1.bf16.msra.mxu0 0
    %3586 = vmatprep.subr.bf16.mxu0 0
    %3587 = vmatpush1.bf16.msra.mxu0 %v3558
    %3588 = vmatprep.subr.bf16.mxu0 0
    %3589 = vmatpush1.bf16.msra.mxu0 %v3557
    %3590 = vmatprep.subr.bf16.mxu0 0
    %3591 = vmatpush2.bf16.msra.mxu0 0
    %3592 = vmatprep.subr.bf16.mxu0 0
    %3593 = vmatpush2.bf16.msra.mxu0 0
    %3594 = vmatprep.subr.bf16.mxu0 0
    %3595 = vmatpush2.bf16.msra.mxu0 0
    %3596 = vmatprep.subr.bf16.mxu0 0
    %3597 = vmatpush2.bf16.msra.mxu0 0
    %3598 = vmatprep.subr.bf16.mxu0 0
    %3599 = vmatpush2.bf16.msra.mxu0 0
    %3600 = vmatprep.subr.bf16.mxu0 0
    %3601 = vmatpush2.bf16.msra.mxu0 0
    %3602 = vmatprep.subr.bf16.mxu0 0
    %3603 = vmatpush2.bf16.msra.mxu0 0
    %3604 = vmatprep.subr.bf16.mxu0 0
    %3605 = vmatpush2.bf16.msra.mxu0 0
    %3606 = vmatprep.mubr.bf16.mxu0 0
    %3607 = vmatmul.mubr.bf16.gmra.mxu0 %v3572
    %v3608 = vpop.f32.mrf.mxu0
    %v3609 = vadd.f32 %v3569, %v3608
    %v3610 = vpop.f32.mrf.mxu0
    %v3611 = vpop.f32.mrf.mxu0
    %v3612 = vpop.f32.mrf.mxu0
    %3613 = vdwg.mxu0
    %v3614 = vpack.c.bf16 %v3609, %v3609
    %v3615 = vld [vmem:[%s13] sm:$0xf]
    %v3616 = vld [vmem:[%s13 + $0x4] sm:$0xf]
    %v3617 = vld [vmem:[%s13 + $0x8] sm:$0xf]
    %v3618 = vld [vmem:[%s13 + $0xc] sm:$0xf]
    %v3619 = vld [vmem:[%s13 + $0x10] sm:$0xf]
    %v3620 = vld [vmem:[%s13 + $0x14] sm:$0xf]
    %v3621 = vld [vmem:[%s13 + $0x18] sm:$0xf]
    %v3622 = vld [vmem:[%s13 + $0x1c] sm:$0xf]
    %v3631 = vunpack.c.l.b16 %v3615
    %v3632 = vunpack.c.l.b16 %v3616
    %v3633 = vunpack.c.l.b16 %v3617
    %v3634 = vunpack.c.l.b16 %v3618
    %v3635 = vunpack.c.l.b16 %v3619
    %v3636 = vunpack.c.l.b16 %v3620
    %v3637 = vunpack.c.l.b16 %v3621
    %v3638 = vunpack.c.l.b16 %v3622
    %v3639 = vpack.c.b16 %v3632, %v3631
    %v3640 = vpack.c.b16 %v3634, %v3633
    %v3641 = vpack.c.b16 %v3636, %v3635
    %v3642 = vpack.c.b16 %v3638, %v3637
    %v3648 = vsel %vm2295, %v3614, 0
    %3650 = vmatprep.subr.bf16.mxu0 0
    %3651 = vmatpush1.bf16.msra.mxu0 0
    %3652 = vmatprep.subr.bf16.mxu0 0
    %3653 = vmatpush1.bf16.msra.mxu0 0
    %3654 = vmatprep.subr.bf16.mxu0 0
    %3655 = vmatpush1.bf16.msra.mxu0 0
    %3656 = vmatprep.subr.bf16.mxu0 0
    %3657 = vmatpush1.bf16.msra.mxu0 0
    %3658 = vmatprep.subr.bf16.mxu0 0
    %3659 = vmatpush1.bf16.msra.mxu0 %v3642
    %3660 = vmatprep.subr.bf16.mxu0 0
    %3661 = vmatpush1.bf16.msra.mxu0 %v3641
    %3662 = vmatprep.subr.bf16.mxu0 0
    %3663 = vmatpush1.bf16.msra.mxu0 %v3640
    %3664 = vmatprep.subr.bf16.mxu0 0
    %3665 = vmatpush1.bf16.msra.mxu0 %v3639
    %3666 = vmatprep.subr.bf16.mxu0 0
    %3667 = vmatpush2.bf16.msra.mxu0 0
    %3668 = vmatprep.subr.bf16.mxu0 0
    %3669 = vmatpush2.bf16.msra.mxu0 0
    %3670 = vmatprep.subr.bf16.mxu0 0
    %3671 = vmatpush2.bf16.msra.mxu0 0
    %3672 = vmatprep.subr.bf16.mxu0 0
    %3673 = vmatpush2.bf16.msra.mxu0 0
    %3674 = vmatprep.subr.bf16.mxu0 0
    %3675 = vmatpush2.bf16.msra.mxu0 0
    %3676 = vmatprep.subr.bf16.mxu0 0
    %3677 = vmatpush2.bf16.msra.mxu0 0
    %3678 = vmatprep.subr.bf16.mxu0 0
    %3679 = vmatpush2.bf16.msra.mxu0 0
    %3680 = vmatprep.subr.bf16.mxu0 0
    %3681 = vmatpush2.bf16.msra.mxu0 0
    %3682 = vmatprep.mubr.bf16.mxu0 0
    %3683 = vmatmul.mubr.bf16.gmra.mxu0 %v3648
    %v3684 = vpop.f32.mrf.mxu0
    %v3685 = vadd.f32 0.0, %v3684
    %v3686 = vpop.f32.mrf.mxu0
    %v3687 = vpop.f32.mrf.mxu0
    %v3688 = vpop.f32.mrf.mxu0
    %3689 = vdwg.mxu0
    %v3692 = vunpack.c.l.b16 %v3223
    %v3693 = vunpack.c.l.b16 %v3224
    %v3694 = vpack.c.b16 %v3693, %v3692
    %v3697 = vsel %vm1874, %v3222, 0
    %3699 = vmatprep.subr.bf16.mxu0 0
    %3700 = vmatpush1.bf16.msra.mxu0 0
    %3701 = vmatprep.subr.bf16.mxu0 0
    %3702 = vmatpush1.bf16.msra.mxu0 0
    %3703 = vmatprep.subr.bf16.mxu0 0
    %3704 = vmatpush1.bf16.msra.mxu0 0
    %3705 = vmatprep.subr.bf16.mxu0 0
    %3706 = vmatpush1.bf16.msra.mxu0 0
    %3707 = vmatprep.subr.bf16.mxu0 0
    %3708 = vmatpush1.bf16.msra.mxu0 0
    %3709 = vmatprep.subr.bf16.mxu0 0
    %3710 = vmatpush1.bf16.msra.mxu0 0
    %3711 = vmatprep.subr.bf16.mxu0 0
    %3712 = vmatpush1.bf16.msra.mxu0 0
    %3713 = vmatprep.subr.bf16.mxu0 0
    %3714 = vmatpush1.bf16.msra.mxu0 %v3694
    %3715 = vmatprep.subr.bf16.mxu0 0
    %3716 = vmatpush2.bf16.msra.mxu0 0
    %3717 = vmatprep.subr.bf16.mxu0 0
    %3718 = vmatpush2.bf16.msra.mxu0 0
    %3719 = vmatprep.subr.bf16.mxu0 0
    %3720 = vmatpush2.bf16.msra.mxu0 0
    %3721 = vmatprep.subr.bf16.mxu0 0
    %3722 = vmatpush2.bf16.msra.mxu0 0
    %3723 = vmatprep.subr.bf16.mxu0 0
    %3724 = vmatpush2.bf16.msra.mxu0 0
    %3725 = vmatprep.subr.bf16.mxu0 0
    %3726 = vmatpush2.bf16.msra.mxu0 0
    %3727 = vmatprep.subr.bf16.mxu0 0
    %3728 = vmatpush2.bf16.msra.mxu0 0
    %3729 = vmatprep.subr.bf16.mxu0 0
    %3730 = vmatpush2.bf16.msra.mxu0 0
    %3731 = vmatprep.mubr.bf16.mxu0 0
    %3732 = vmatmul.mubr.bf16.gmra.mxu0 %v3697
    %v3733 = vpop.f32.mrf.mxu0
    %v3734 = vadd.f32 %v3685, %v3733
    %v3735 = vpop.f32.mrf.mxu0
    %v3736 = vpop.f32.mrf.mxu0
    %v3737 = vpop.f32.mrf.mxu0
    %3738 = vdwg.mxu0
    %v3739 = vld [vmem:[%s11] sm:$0xff]
    %v3740 = vld [vmem:[%s11 + $0x8] sm:$0xff]
    %v3741 = vld [vmem:[%s11 + $0x10] sm:$0xff]
    %v3742 = vld [vmem:[%s11 + $0x18] sm:$0xff]
    %v3743 = vld [vmem:[%s11 + $0x20] sm:$0xff]
    %v3744 = vld [vmem:[%s11 + $0x28] sm:$0xff]
    %v3745 = vld [vmem:[%s11 + $0x30] sm:$0xff]
    %v3746 = vld [vmem:[%s11 + $0x38] sm:$0xff]
    %v3755 = vunpack.c.l.b16 %v3739
    %v3756 = vunpack.c.h.b16 %v3739
    %v3757 = vunpack.c.l.b16 %v3740
    %v3758 = vunpack.c.h.b16 %v3740
    %v3759 = vunpack.c.l.b16 %v3741
    %v3760 = vunpack.c.h.b16 %v3741
    %v3761 = vunpack.c.l.b16 %v3742
    %v3762 = vunpack.c.h.b16 %v3742
    %v3763 = vunpack.c.l.b16 %v3743
    %v3764 = vunpack.c.h.b16 %v3743
    %v3765 = vunpack.c.l.b16 %v3744
    %v3766 = vunpack.c.h.b16 %v3744
    %v3767 = vunpack.c.l.b16 %v3745
    %v3768 = vunpack.c.h.b16 %v3745
    %v3769 = vunpack.c.l.b16 %v3746
    %v3770 = vunpack.c.h.b16 %v3746
    %v3771 = vpack.c.b16 %v3757, %v3755
    %v3772 = vpack.c.b16 %v3758, %v3756
    %v3773 = vpack.c.b16 %v3761, %v3759
    %v3774 = vpack.c.b16 %v3762, %v3760
    %v3775 = vpack.c.b16 %v3765, %v3763
    %v3776 = vpack.c.b16 %v3766, %v3764
    %v3777 = vpack.c.b16 %v3769, %v3767
    %v3778 = vpack.c.b16 %v3770, %v3768
    %v3788 = vsel %vm2295, %v3557, 0
    %v3791 = vsel %vm2295, %v3558, 0
    %3793 = vmatprep.subr.bf16.mxu0 0
    %3794 = vmatpush1.bf16.msra.mxu0 0
    %3795 = vmatprep.subr.bf16.mxu0 0
    %3796 = vmatpush1.bf16.msra.mxu0 0
    %3797 = vmatprep.subr.bf16.mxu0 0
    %3798 = vmatpush1.bf16.msra.mxu0 0
    %3799 = vmatprep.subr.bf16.mxu0 0
    %3800 = vmatpush1.bf16.msra.mxu0 0
    %3801 = vmatprep.subr.bf16.mxu0 %v3778
    %3802 = vmatpush1.bf16.msra.mxu0 %v3777
    %3803 = vmatprep.subr.bf16.mxu0 %v3776
    %3804 = vmatpush1.bf16.msra.mxu0 %v3775
    %3805 = vmatprep.subr.bf16.mxu0 %v3774
    %3806 = vmatpush1.bf16.msra.mxu0 %v3773
    %3807 = vmatprep.subr.bf16.mxu0 %v3772
    %3808 = vmatpush1.bf16.msra.mxu0 %v3771
    %3809 = vmatprep.subr.bf16.mxu0 0
    %3810 = vmatpush2.bf16.msra.mxu0 0
    %3811 = vmatprep.subr.bf16.mxu0 0
    %3812 = vmatpush2.bf16.msra.mxu0 0
    %3813 = vmatprep.subr.bf16.mxu0 0
    %3814 = vmatpush2.bf16.msra.mxu0 0
    %3815 = vmatprep.subr.bf16.mxu0 0
    %3816 = vmatpush2.bf16.msra.mxu0 0
    %3817 = vmatprep.subr.bf16.mxu0 0
    %3818 = vmatpush2.bf16.msra.mxu0 0
    %3819 = vmatprep.subr.bf16.mxu0 0
    %3820 = vmatpush2.bf16.msra.mxu0 0
    %3821 = vmatprep.subr.bf16.mxu0 0
    %3822 = vmatpush2.bf16.msra.mxu0 0
    %3823 = vmatprep.subr.bf16.mxu0 0
    %3824 = vmatpush2.bf16.msra.mxu0 0
    %3825 = vmatprep.mubr.bf16.mxu0 0
    %3826 = vmatmul.mubr.bf16.gmra.mxu0 %v3788
    %v3827 = vpop.f32.mrf.mxu0
    %v3828 = vadd.f32 0.0, %v3827
    %v3829 = vpop.f32.mrf.mxu0
    %v3830 = vadd.f32 0.0, %v3829
    %v3831 = vpop.f32.mrf.mxu0
    %v3832 = vadd.f32 0.0, %v3831
    %v3833 = vpop.f32.mrf.mxu0
    %v3834 = vadd.f32 0.0, %v3833
    %3835 = vmatprep.mubr.bf16.mxu0 0
    %3836 = vmatmul.mubr.bf16.gmra.mxu0 %v3791
    %v3837 = vpop.f32.mrf.mxu0
    %v3838 = vadd.f32 0.0, %v3837
    %v3839 = vpop.f32.mrf.mxu0
    %v3840 = vadd.f32 0.0, %v3839
    %v3841 = vpop.f32.mrf.mxu0
    %v3842 = vadd.f32 0.0, %v3841
    %v3843 = vpop.f32.mrf.mxu0
    %v3844 = vadd.f32 0.0, %v3843
    %3845 = vdwg.mxu0
    %v3846 = vpack.c.bf16 %v3832, %v3828
    %v3847 = vpack.c.bf16 %v3834, %v3830
    %v3848 = vpack.c.bf16 %v3842, %v3838
    %v3849 = vpack.c.bf16 %v3844, %v3840
    %v3850 = vld [vmem:[%s2499] sm:$0xff]
    %v3851 = vld [vmem:[%s2499 + $0x8] sm:$0xff]
    %v3852 = vld [vmem:[%s2499 + $0x10] sm:$0xff]
    %v3853 = vld [vmem:[%s2499 + $0x18] sm:$0xff]
    %3854 = vrot.lane.b32.xlu0 %v3034, 32
    %v3855 = vpop.permute.xlu0 %3854
    %v3857 = vmul.f32 %v3850, %v3855
    %v3858 = vmul.f32 %v3851, %v3855
    %v3859 = vmul.f32 %v3852, %v3855
    %v3860 = vmul.f32 %v3853, %v3855
    %v3861 = vmul.f32 %v3857, %v3857
    %v3862 = vmul.f32 %v3858, %v3858
    %v3863 = vmul.f32 %v3859, %v3859
    %v3864 = vmul.f32 %v3860, %v3860
    %v3865 = vsel %vm1671, %v3861, 0.0
    %3866 = vadd.xlane.f32.xlu0 %v3865
    %v3867 = vpop.xlane.xlu0 %3866
    %v3868 = vsel %vm1671, %v3862, 0.0
    %3869 = vadd.xlane.f32.xlu0 %v3868
    %v3870 = vpop.xlane.xlu0 %3869
    %v3871 = vsel %vm1671, %v3863, 0.0
    %3872 = vadd.xlane.f32.xlu0 %v3871
    %v3873 = vpop.xlane.xlu0 %3872
    %v3874 = vsel %vm1671, %v3864, 0.0
    %3875 = vadd.xlane.f32.xlu0 %v3874
    %v3876 = vpop.xlane.xlu0 %3875
    %v3877 = vmul.f32 %v3867, 0.5
    %v3878 = vmul.f32 %v3870, 0.5
    %v3879 = vmul.f32 %v3873, 0.5
    %v3880 = vmul.f32 %v3876, 0.5
    %v3881 = vadd.f32 %v3877, 5e-09
    %v3882 = vadd.f32 %v3878, 5e-09
    %v3883 = vadd.f32 %v3879, 5e-09
    %v3884 = vadd.f32 %v3880, 5e-09
    %v3885 = vrsqrt.pop %v3881
    %v3886 = vrsqrt.pop %v3882
    %v3887 = vrsqrt.pop %v3883
    %v3888 = vrsqrt.pop %v3884
    %v3889 = vmul.f32 %v3857, %v3885
    %v3890 = vmul.f32 %v3858, %v3886
    %v3891 = vmul.f32 %v3859, %v3887
    %v3892 = vmul.f32 %v3860, %v3888
    %v3893 = vpack.c.bf16 %v3890, %v3889
    %v3894 = vpack.c.bf16 %v3892, %v3891
    %v3895 = vld [vmem:[%s2545] sm:$0xff]
    %v3896 = vld [vmem:[%s2545 + $0x8] sm:$0xff]
    %v3897 = vld [vmem:[%s2545 + $0x10] sm:$0xff]
    %v3898 = vld [vmem:[%s2545 + $0x18] sm:$0xff]
    %3900 = vset.pattern.permute.xlu0 0
    %3901 = vperm.xlu0 %3900, %v3895
    %v3902 = vpop.permute.xlu0 %3901
    %3905 = vset.pattern.permute.xlu0 0
    %3906 = vperm.xlu0 %3905, %v3896
    %v3907 = vpop.permute.xlu0 %3906
    %3910 = vset.pattern.permute.xlu0 0
    %3911 = vperm.xlu0 %3910, %v3897
    %v3912 = vpop.permute.xlu0 %3911
    %3915 = vset.pattern.permute.xlu0 0
    %3916 = vperm.xlu0 %3915, %v3898
    %v3917 = vpop.permute.xlu0 %3916
    %v3920 = vsel %vm1671, %v3893, 0
    %v3923 = vsel %vm1671, %v3894, 0
    %3925 = vmatprep.subr.bf16.mxu0 0
    %3926 = vmatpush1.bf16.msra.mxu0 0
    %3927 = vmatprep.subr.bf16.mxu0 0
    %3928 = vmatpush1.bf16.msra.mxu0 0
    %3929 = vmatprep.subr.bf16.mxu0 0
    %3930 = vmatpush1.bf16.msra.mxu0 0
    %3931 = vmatprep.subr.bf16.mxu0 0
    %3932 = vmatpush1.bf16.msra.mxu0 0
    %3933 = vmatprep.subr.bf16.mxu0 0
    %3934 = vmatpush1.bf16.msra.mxu0 0
    %3935 = vmatprep.subr.bf16.mxu0 0
    %3936 = vmatpush1.bf16.msra.mxu0 0
    %3937 = vmatprep.subr.bf16.mxu0 %v3849
    %3938 = vmatpush1.bf16.msra.mxu0 %v3848
    %3939 = vmatprep.subr.bf16.mxu0 %v3847
    %3940 = vmatpush1.bf16.msra.mxu0 %v3846
    %3941 = vmatprep.subr.bf16.mxu0 0
    %3942 = vmatpush2.bf16.msra.mxu0 0
    %3943 = vmatprep.subr.bf16.mxu0 0
    %3944 = vmatpush2.bf16.msra.mxu0 0
    %3945 = vmatprep.subr.bf16.mxu0 0
    %3946 = vmatpush2.bf16.msra.mxu0 0
    %3947 = vmatprep.subr.bf16.mxu0 0
    %3948 = vmatpush2.bf16.msra.mxu0 0
    %3949 = vmatprep.subr.bf16.mxu0 0
    %3950 = vmatpush2.bf16.msra.mxu0 0
    %3951 = vmatprep.subr.bf16.mxu0 0
    %3952 = vmatpush2.bf16.msra.mxu0 0
    %3953 = vmatprep.subr.bf16.mxu0 0
    %3954 = vmatpush2.bf16.msra.mxu0 0
    %3955 = vmatprep.subr.bf16.mxu0 0
    %3956 = vmatpush2.bf16.msra.mxu0 0
    %3957 = vmatprep.mubr.bf16.mxu0 0
    %3958 = vmatmul.mubr.bf16.gmra.mxu0 %v3920
    %v3959 = vpop.f32.mrf.mxu0
    %v3960 = vadd.f32 %v3902, %v3959
    %v3961 = vpop.f32.mrf.mxu0
    %v3962 = vadd.f32 %v3902, %v3961
    %v3963 = vpop.f32.mrf.mxu0
    %v3964 = vadd.f32 %v3907, %v3963
    %v3965 = vpop.f32.mrf.mxu0
    %v3966 = vadd.f32 %v3907, %v3965
    %3967 = vmatprep.mubr.bf16.mxu0 0
    %3968 = vmatmul.mubr.bf16.gmra.mxu0 %v3923
    %v3969 = vpop.f32.mrf.mxu0
    %v3970 = vadd.f32 %v3912, %v3969
    %v3971 = vpop.f32.mrf.mxu0
    %v3972 = vadd.f32 %v3912, %v3971
    %v3973 = vpop.f32.mrf.mxu0
    %v3974 = vadd.f32 %v3917, %v3973
    %v3975 = vpop.f32.mrf.mxu0
    %v3976 = vadd.f32 %v3917, %v3975
    %3977 = vdwg.mxu0
    %v3978 = vmul.f32 %v3960, 0.2
    %v3979 = vmul.f32 %v3962, 0.2
    %v3980 = vmul.f32 %v3964, 0.2
    %v3981 = vmul.f32 %v3966, 0.2
    %v3982 = vmul.f32 %v3970, 0.2
    %v3983 = vmul.f32 %v3972, 0.2
    %v3984 = vmul.f32 %v3974, 0.2
    %v3985 = vmul.f32 %v3976, 0.2
    %v3986 = vmax.f32 %v3960, %v3978
    %v3987 = vmax.f32 %v3962, %v3979
    %v3988 = vmax.f32 %v3964, %v3980
    %v3989 = vmax.f32 %v3966, %v3981
    %v3990 = vmax.f32 %v3970, %v3982
    %v3991 = vmax.f32 %v3972, %v3983
    %v3992 = vmax.f32 %v3974, %v3984
    %v3993 = vmax.f32 %v3976, %v3985
    %v3994 = vpack.c.bf16 %v3988, %v3986
    %v3995 = vpack.c.bf16 %v3989, %v3987
    %v3996 = vpack.c.bf16 %v3992, %v3990
    %v3997 = vpack.c.bf16 %v3993, %v3991
    %v3998 = vld [vmem:[%s2649] sm:$0xff]
    %v3999 = vld [vmem:[%s2649 + $0x8] sm:$0xff]
    %v4000 = vld [vmem:[%s2649 + $0x10] sm:$0xff]
    %v4001 = vld [vmem:[%s2649 + $0x18] sm:$0xff]
    %v4002 = vmul.f32 %v3998, %v3166
    %v4003 = vmul.f32 %v3999, %v3166
    %v4004 = vmul.f32 %v4000, %v3166
    %v4005 = vmul.f32 %v4001, %v3166
    %v4006 = vmul.f32 %v4002, %v4002
    %v4007 = vmul.f32 %v4003, %v4003
    %v4008 = vmul.f32 %v4004, %v4004
    %v4009 = vmul.f32 %v4005, %v4005
    %v4010 = vsel %vm1671, %v4006, 0.0
    %4011 = vadd.xlane.f32.xlu0 %v4010
    %v4012 = vpop.xlane.xlu0 %4011
    %v4013 = vsel %vm1671, %v4007, 0.0
    %4014 = vadd.xlane.f32.xlu0 %v4013
    %v4015 = vpop.xlane.xlu0 %4014
    %v4016 = vsel %vm1671, %v4008, 0.0
    %4017 = vadd.xlane.f32.xlu0 %v4016
    %v4018 = vpop.xlane.xlu0 %4017
    %v4019 = vsel %vm1671, %v4009, 0.0
    %4020 = vadd.xlane.f32.xlu0 %v4019
    %v4021 = vpop.xlane.xlu0 %4020
    %v4022 = vmul.f32 %v4012, 0.5
    %v4023 = vmul.f32 %v4015, 0.5
    %v4024 = vmul.f32 %v4018, 0.5
    %v4025 = vmul.f32 %v4021, 0.5
    %v4026 = vadd.f32 %v4022, 5e-09
    %v4027 = vadd.f32 %v4023, 5e-09
    %v4028 = vadd.f32 %v4024, 5e-09
    %v4029 = vadd.f32 %v4025, 5e-09
    %v4030 = vrsqrt.pop %v4026
    %v4031 = vrsqrt.pop %v4027
    %v4032 = vrsqrt.pop %v4028
    %v4033 = vrsqrt.pop %v4029
    %v4034 = vmul.f32 %v4002, %v4030
    %v4035 = vmul.f32 %v4003, %v4031
    %v4036 = vmul.f32 %v4004, %v4032
    %v4037 = vmul.f32 %v4005, %v4033
    %v4038 = vpack.c.bf16 %v4035, %v4034
    %v4039 = vpack.c.bf16 %v4037, %v4036
    %v4040 = vld [vmem:[%s2692] sm:$0xff]
    %v4041 = vld [vmem:[%s2692 + $0x8] sm:$0xff]
    %v4042 = vld [vmem:[%s2692 + $0x10] sm:$0xff]
    %v4043 = vld [vmem:[%s2692 + $0x18] sm:$0xff]
    %4045 = vset.pattern.permute.xlu0 0
    %4046 = vperm.xlu0 %4045, %v4040
    %v4047 = vpop.permute.xlu0 %4046
    %4050 = vset.pattern.permute.xlu0 0
    %4051 = vperm.xlu0 %4050, %v4041
    %v4052 = vpop.permute.xlu0 %4051
    %4055 = vset.pattern.permute.xlu0 0
    %4056 = vperm.xlu0 %4055, %v4042
    %v4057 = vpop.permute.xlu0 %4056
    %4060 = vset.pattern.permute.xlu0 0
    %4061 = vperm.xlu0 %4060, %v4043
    %v4062 = vpop.permute.xlu0 %4061
    %v4065 = vsel %vm1671, %v4038, 0
    %v4068 = vsel %vm1671, %v4039, 0
    %4070 = vmatprep.subr.bf16.mxu0 0
    %4071 = vmatpush1.bf16.msra.mxu0 0
    %4072 = vmatprep.subr.bf16.mxu0 0
    %4073 = vmatpush1.bf16.msra.mxu0 0
    %4074 = vmatprep.subr.bf16.mxu0 0
    %4075 = vmatpush1.bf16.msra.mxu0 0
    %4076 = vmatprep.subr.bf16.mxu0 0
    %4077 = vmatpush1.bf16.msra.mxu0 0
    %4078 = vmatprep.subr.bf16.mxu0 0
    %4079 = vmatpush1.bf16.msra.mxu0 0
    %4080 = vmatprep.subr.bf16.mxu0 0
    %4081 = vmatpush1.bf16.msra.mxu0 0
    %4082 = vmatprep.subr.bf16.mxu0 %v3997
    %4083 = vmatpush1.bf16.msra.mxu0 %v3996
    %4084 = vmatprep.subr.bf16.mxu0 %v3995
    %4085 = vmatpush1.bf16.msra.mxu0 %v3994
    %4086 = vmatprep.subr.bf16.mxu0 0
    %4087 = vmatpush2.bf16.msra.mxu0 0
    %4088 = vmatprep.subr.bf16.mxu0 0
    %4089 = vmatpush2.bf16.msra.mxu0 0
    %4090 = vmatprep.subr.bf16.mxu0 0
    %4091 = vmatpush2.bf16.msra.mxu0 0
    %4092 = vmatprep.subr.bf16.mxu0 0
    %4093 = vmatpush2.bf16.msra.mxu0 0
    %4094 = vmatprep.subr.bf16.mxu0 0
    %4095 = vmatpush2.bf16.msra.mxu0 0
    %4096 = vmatprep.subr.bf16.mxu0 0
    %4097 = vmatpush2.bf16.msra.mxu0 0
    %4098 = vmatprep.subr.bf16.mxu0 0
    %4099 = vmatpush2.bf16.msra.mxu0 0
    %4100 = vmatprep.subr.bf16.mxu0 0
    %4101 = vmatpush2.bf16.msra.mxu0 0
    %4102 = vmatprep.mubr.bf16.mxu0 0
    %4103 = vmatmul.mubr.bf16.gmra.mxu0 %v4065
    %v4104 = vpop.f32.mrf.mxu0
    %v4105 = vadd.f32 %v4047, %v4104
    %v4106 = vpop.f32.mrf.mxu0
    %v4107 = vadd.f32 %v4047, %v4106
    %v4108 = vpop.f32.mrf.mxu0
    %v4109 = vadd.f32 %v4052, %v4108
    %v4110 = vpop.f32.mrf.mxu0
    %v4111 = vadd.f32 %v4052, %v4110
    %4112 = vmatprep.mubr.bf16.mxu0 0
    %4113 = vmatmul.mubr.bf16.gmra.mxu0 %v4068
    %v4114 = vpop.f32.mrf.mxu0
    %v4115 = vadd.f32 %v4057, %v4114
    %v4116 = vpop.f32.mrf.mxu0
    %v4117 = vadd.f32 %v4057, %v4116
    %v4118 = vpop.f32.mrf.mxu0
    %v4119 = vadd.f32 %v4062, %v4118
    %v4120 = vpop.f32.mrf.mxu0
    %v4121 = vadd.f32 %v4062, %v4120
    %4122 = vdwg.mxu0
    %v4123 = vmul.f32 %v4105, 0.2
    %v4124 = vmul.f32 %v4107, 0.2
    %v4125 = vmul.f32 %v4109, 0.2
    %v4126 = vmul.f32 %v4111, 0.2
    %v4127 = vmul.f32 %v4115, 0.2
    %v4128 = vmul.f32 %v4117, 0.2
    %v4129 = vmul.f32 %v4119, 0.2
    %v4130 = vmul.f32 %v4121, 0.2
    %v4131 = vmax.f32 %v4105, %v4123
    %v4132 = vmax.f32 %v4107, %v4124
    %v4133 = vmax.f32 %v4109, %v4125
    %v4134 = vmax.f32 %v4111, %v4126
    %v4135 = vmax.f32 %v4115, %v4127
    %v4136 = vmax.f32 %v4117, %v4128
    %v4137 = vmax.f32 %v4119, %v4129
    %v4138 = vmax.f32 %v4121, %v4130
    %v4139 = vpack.c.bf16 %v4133, %v4131
    %v4140 = vpack.c.bf16 %v4134, %v4132
    %v4141 = vpack.c.bf16 %v4137, %v4135
    %v4142 = vpack.c.bf16 %v4138, %v4136
    %v4143 = vld [vmem:[%s2796] sm:$0x7]
    %4144 = vrot.lane.b32.xlu0 %v3166, 32
    %v4145 = vpop.permute.xlu0 %4144
    %v4147 = vmul.f32 %v4143, %v4145
    %v4148 = vpack.c.bf16 %v4147, %v4147
    %v4149 = vld [vmem:[%s2803] sm:$0x7]
    %4151 = vset.pattern.permute.xlu0 0
    %4152 = vperm.xlu0 %4151, %v4149
    %v4153 = vpop.permute.xlu0 %4152
    %v4156 = vsel %vm1671, %v4148, 0
    %4158 = vmatprep.subr.bf16.mxu0 0
    %4159 = vmatpush1.bf16.msra.mxu0 0
    %4160 = vmatprep.subr.bf16.mxu0 0
    %4161 = vmatpush1.bf16.msra.mxu0 0
    %4162 = vmatprep.subr.bf16.mxu0 0
    %4163 = vmatpush1.bf16.msra.mxu0 0
    %4164 = vmatprep.subr.bf16.mxu0 0
    %4165 = vmatpush1.bf16.msra.mxu0 0
    %4166 = vmatprep.subr.bf16.mxu0 0
    %4167 = vmatpush1.bf16.msra.mxu0 0
    %4168 = vmatprep.subr.bf16.mxu0 0
    %4169 = vmatpush1.bf16.msra.mxu0 0
    %4170 = vmatprep.subr.bf16.mxu0 %v4142
    %4171 = vmatpush1.bf16.msra.mxu0 %v4141
    %4172 = vmatprep.subr.bf16.mxu0 %v4140
    %4173 = vmatpush1.bf16.msra.mxu0 %v4139
    %4174 = vmatprep.subr.bf16.mxu0 0
    %4175 = vmatpush2.bf16.msra.mxu0 0
    %4176 = vmatprep.subr.bf16.mxu0 0
    %4177 = vmatpush2.bf16.msra.mxu0 0
    %4178 = vmatprep.subr.bf16.mxu0 0
    %4179 = vmatpush2.bf16.msra.mxu0 0
    %4180 = vmatprep.subr.bf16.mxu0 0
    %4181 = vmatpush2.bf16.msra.mxu0 0
    %4182 = vmatprep.subr.bf16.mxu0 0
    %4183 = vmatpush2.bf16.msra.mxu0 0
    %4184 = vmatprep.subr.bf16.mxu0 0
    %4185 = vmatpush2.bf16.msra.mxu0 0
    %4186 = vmatprep.subr.bf16.mxu0 0
    %4187 = vmatpush2.bf16.msra.mxu0 0
    %4188 = vmatprep.subr.bf16.mxu0 0
    %4189 = vmatpush2.bf16.msra.mxu0 0
    %4190 = vmatprep.mubr.bf16.mxu0 0
    %4191 = vmatmul.mubr.bf16.gmra.mxu0 %v4156
    %v4192 = vpop.f32.mrf.mxu0
    %v4193 = vadd.f32 %v4153, %v4192
    %v4194 = vpop.f32.mrf.mxu0
    %v4195 = vadd.f32 %v4153, %v4194
    %v4196 = vpop.f32.mrf.mxu0
    %v4197 = vpop.f32.mrf.mxu0
    %4198 = vdwg.mxu0
    %v4199 = vpack.c.bf16 %v4193, %v4193
    %v4200 = vpack.c.bf16 %v4195, %v4195
    %v4201 = vld [vmem:[%s14] sm:$0xf]
    %v4202 = vld [vmem:[%s14 + $0x4] sm:$0xf]
    %v4203 = vld [vmem:[%s14 + $0x8] sm:$0xf]
    %v4204 = vld [vmem:[%s14 + $0xc] sm:$0xf]
    %v4205 = vld [vmem:[%s14 + $0x10] sm:$0xf]
    %v4206 = vld [vmem:[%s14 + $0x14] sm:$0xf]
    %v4207 = vld [vmem:[%s14 + $0x18] sm:$0xf]
    %v4208 = vld [vmem:[%s14 + $0x1c] sm:$0xf]
    %v4209 = vld [vmem:[%s14 + $0x20] sm:$0xf]
    %v4210 = vld [vmem:[%s14 + $0x24] sm:$0xf]
    %v4211 = vld [vmem:[%s14 + $0x28] sm:$0xf]
    %v4212 = vld [vmem:[%s14 + $0x2c] sm:$0xf]
    %v4213 = vld [vmem:[%s14 + $0x30] sm:$0xf]
    %v4214 = vld [vmem:[%s14 + $0x34] sm:$0xf]
    %v4215 = vld [vmem:[%s14 + $0x38] sm:$0xf]
    %v4216 = vld [vmem:[%s14 + $0x3c] sm:$0xf]
    %v4217 = vld [vmem:[%s14 + $0x40] sm:$0xf]
    %v4218 = vld [vmem:[%s14 + $0x44] sm:$0xf]
    %v4219 = vld [vmem:[%s14 + $0x48] sm:$0xf]
    %v4220 = vld [vmem:[%s14 + $0x4c] sm:$0xf]
    %v4221 = vld [vmem:[%s14 + $0x50] sm:$0xf]
    %v4222 = vld [vmem:[%s14 + $0x54] sm:$0xf]
    %v4223 = vld [vmem:[%s14 + $0x58] sm:$0xf]
    %v4224 = vld [vmem:[%s14 + $0x5c] sm:$0xf]
    %v4225 = vld [vmem:[%s14 + $0x60] sm:$0xf]
    %v4226 = vld [vmem:[%s14 + $0x64] sm:$0xf]
    %v4227 = vld [vmem:[%s14 + $0x68] sm:$0xf]
    %v4228 = vld [vmem:[%s14 + $0x6c] sm:$0xf]
    %v4229 = vld [vmem:[%s14 + $0x70] sm:$0xf]
    %v4230 = vld [vmem:[%s14 + $0x74] sm:$0xf]
    %v4231 = vld [vmem:[%s14 + $0x78] sm:$0xf]
    %v4232 = vld [vmem:[%s14 + $0x7c] sm:$0xf]
    %v4265 = vunpack.c.l.b16 %v4201
    %v4266 = vunpack.c.l.b16 %v4202
    %v4267 = vunpack.c.l.b16 %v4203
    %v4268 = vunpack.c.l.b16 %v4204
    %v4269 = vunpack.c.l.b16 %v4205
    %v4270 = vunpack.c.l.b16 %v4206
    %v4271 = vunpack.c.l.b16 %v4207
    %v4272 = vunpack.c.l.b16 %v4208
    %v4273 = vunpack.c.l.b16 %v4209
    %v4274 = vunpack.c.l.b16 %v4210
    %v4275 = vunpack.c.l.b16 %v4211
    %v4276 = vunpack.c.l.b16 %v4212
    %v4277 = vunpack.c.l.b16 %v4213
    %v4278 = vunpack.c.l.b16 %v4214
    %v4279 = vunpack.c.l.b16 %v4215
    %v4280 = vunpack.c.l.b16 %v4216
    %v4281 = vunpack.c.l.b16 %v4217
    %v4282 = vunpack.c.l.b16 %v4218
    %v4283 = vunpack.c.l.b16 %v4219
    %v4284 = vunpack.c.l.b16 %v4220
    %v4285 = vunpack.c.l.b16 %v4221
    %v4286 = vunpack.c.l.b16 %v4222
    %v4287 = vunpack.c.l.b16 %v4223
    %v4288 = vunpack.c.l.b16 %v4224
    %v4289 = vunpack.c.l.b16 %v4225
    %v4290 = vunpack.c.l.b16 %v4226
    %v4291 = vunpack.c.l.b16 %v4227
    %v4292 = vunpack.c.l.b16 %v4228
    %v4293 = vunpack.c.l.b16 %v4229
    %v4294 = vunpack.c.l.b16 %v4230
    %v4295 = vunpack.c.l.b16 %v4231
    %v4296 = vunpack.c.l.b16 %v4232
    %v4297 = vpack.c.b16 %v4266, %v4265
    %v4298 = vpack.c.b16 %v4268, %v4267
    %v4299 = vpack.c.b16 %v4270, %v4269
    %v4300 = vpack.c.b16 %v4272, %v4271
    %v4301 = vpack.c.b16 %v4274, %v4273
    %v4302 = vpack.c.b16 %v4276, %v4275
    %v4303 = vpack.c.b16 %v4278, %v4277
    %v4304 = vpack.c.b16 %v4280, %v4279
    %v4305 = vpack.c.b16 %v4282, %v4281
    %v4306 = vpack.c.b16 %v4284, %v4283
    %v4307 = vpack.c.b16 %v4286, %v4285
    %v4308 = vpack.c.b16 %v4288, %v4287
    %v4309 = vpack.c.b16 %v4290, %v4289
    %v4310 = vpack.c.b16 %v4292, %v4291
    %v4311 = vpack.c.b16 %v4294, %v4293
    %v4312 = vpack.c.b16 %v4296, %v4295
    %4329 = vmatprep.subr.bf16.mxu0 0
    %4330 = vmatpush1.bf16.msra.mxu0 %v4304
    %4331 = vmatprep.subr.bf16.mxu0 0
    %4332 = vmatpush1.bf16.msra.mxu0 %v4303
    %4333 = vmatprep.subr.bf16.mxu0 0
    %4334 = vmatpush1.bf16.msra.mxu0 %v4302
    %4335 = vmatprep.subr.bf16.mxu0 0
    %4336 = vmatpush1.bf16.msra.mxu0 %v4301
    %4337 = vmatprep.subr.bf16.mxu0 0
    %4338 = vmatpush1.bf16.msra.mxu0 %v4300
    %4339 = vmatprep.subr.bf16.mxu0 0
    %4340 = vmatpush1.bf16.msra.mxu0 %v4299
    %4341 = vmatprep.subr.bf16.mxu0 0
    %4342 = vmatpush1.bf16.msra.mxu0 %v4298
    %4343 = vmatprep.subr.bf16.mxu0 0
    %4344 = vmatpush1.bf16.msra.mxu0 %v4297
    %4345 = vmatprep.subr.bf16.mxu0 0
    %4346 = vmatpush2.bf16.msra.mxu0 %v4312
    %4347 = vmatprep.subr.bf16.mxu0 0
    %4348 = vmatpush2.bf16.msra.mxu0 %v4311
    %4349 = vmatprep.subr.bf16.mxu0 0
    %4350 = vmatpush2.bf16.msra.mxu0 %v4310
    %4351 = vmatprep.subr.bf16.mxu0 0
    %4352 = vmatpush2.bf16.msra.mxu0 %v4309
    %4353 = vmatprep.subr.bf16.mxu0 0
    %4354 = vmatpush2.bf16.msra.mxu0 %v4308
    %4355 = vmatprep.subr.bf16.mxu0 0
    %4356 = vmatpush2.bf16.msra.mxu0 %v4307
    %4357 = vmatprep.subr.bf16.mxu0 0
    %4358 = vmatpush2.bf16.msra.mxu0 %v4306
    %4359 = vmatprep.subr.bf16.mxu0 0
    %4360 = vmatpush2.bf16.msra.mxu0 %v4305
    %4361 = vmatprep.mubr.bf16.mxu0 %v4200
    %4362 = vmatmul.mubr.bf16.gmra.mxu0 %v4199
    %v4363 = vpop.f32.mrf.mxu0
    %v4364 = vadd.f32 0.0, %v4363
    %v4365 = vpop.f32.mrf.mxu0
    %v4366 = vpop.f32.mrf.mxu0
    %v4367 = vpop.f32.mrf.mxu0
    %4368 = vdwg.mxu0
    %v4369 = vadd.f32 %v3734, %v4364
    %s4370 = scalar_lea.vmem %s15, 4
    %4371 = vst.msk [vmem:[%s4370] sm:$0x7] %vm3025, %v4369
    // Predicated region
    $region78: #{e4e_forward.1} parent=1 // pred_check
      _
    $region79: #{e4e_forward.1} parent=1 // pred_check_branch
      %4373 = sbr.rel (0) target = $region81
    $region80: #{e4e_forward.1} parent=1 // pred_region
      _
    $region81: #{e4e_forward.1} parent=1 // pred_fallthru
      _
    // Predicated region
    $region82: #{e4e_forward.1} parent=1 // pred_check
      _
    $region83: #{e4e_forward.1} parent=1 // pred_check_branch
      %4375 = sbr.rel (0) target = $region85
    $region84: #{e4e_forward.1} parent=1 // pred_region
      %s4377 = ssub.s32 96, 96
      %4378 = vsyncadd [#allocation4], %s4377
      %s4380 = sshll.u32 [#allocation10], 4
      %s4381 = int_to_ptr.vmem [resolvable:$true] %s4380
      %4383 = dma.vmem_to_hbm [thread:$0]  %s4381, 96, %s16, [#allocation4]
    $region85: #{e4e_forward.1} parent=1 // pred_fallthru
      _
    // Predicated region
    $region86: #{e4e_forward.1} parent=1 // pred_check
      _
    $region87: #{e4e_forward.1} parent=1 // pred_check_branch
      %4385 = sbr.rel (0) target = $region89
    $region88: #{e4e_forward.1} parent=1 // pred_region
      _
    $region89: #{e4e_forward.1} parent=1 // pred_fallthru
      _
    // Predicated region
    $region90: #{e4e_forward.1} parent=1 // pred_check
      _
    $region91: #{e4e_forward.1} parent=1 // pred_check_branch
      %4387 = sbr.rel (0) target = $region93
    $region92: #{e4e_forward.1} parent=1 // pred_region
      %4388 = dma.done [#allocation4], 96
    $region93: #{e4e_forward.1} parent=1 // pred_fallthru
      _
    %4389 = vsyncpa [#allocation3], 1
    %4390 = vsyncpa [#allocation6], 1
    %4391 = vsyncpa [#allocation9], 1
    %4392 = vsyncpa [#allocation4], 1

</llo_original>
